<compile_context>
chip_gen: v7x
topology: tpu7x:2x2x1
jax: 0.10.0
libtpu: 0.0.40
codegen_flags: <defaults>
</compile_context>

<pallas_src>
import functools

import jax
import jax.numpy as jnp
from jax.experimental import pallas as pl
from jax.experimental.pallas import tpu as pltpu


# ----------------------------------------------------------------------------
# Fused model kernel.
# ----------------------------------------------------------------------------
def _make_fused_kernel(S, Bp, H, L):
    """S: seq len, Bp: padded batch (multiple of 8), H: hidden size, L: lstm layers."""

    def kernel(*refs):
        # inputs: x, then per layer (wih_f, whh_f, b_f, wih_b, whh_b, b_b),
        # then w_attn, folded fc weight, folded fc bias; then output; then scratch.
        x_ref = refs[0]
        layer_refs = refs[1:1 + 6 * L]
        w_ref, fcw_ref, fcb_ref = refs[1 + 6 * L:4 + 6 * L]
        o_ref = refs[4 + 6 * L]
        gxf_scr, gxb_scr, hf_scr, hb_scr = refs[5 + 6 * L:9 + 6 * L]

        hf_list = [None] * S          # final layer hidden states (values, per timestep)
        hb_list = [None] * S

        for l in range(L):
            (wihf_ref, whhf_ref, bf_ref,
             wihb_ref, whhb_ref, bb_ref) = layer_refs[6 * l:6 * l + 6]

            # ---- hoisted input projection for the whole sequence (off the serial path)
            if l == 0:
                x = x_ref[...]                                        # (S*Bp, E)
                gxf = jnp.dot(x, wihf_ref[...], preferred_element_type=jnp.float32)
                gxb = jnp.dot(x, wihb_ref[...], preferred_element_type=jnp.float32)
            else:
                hf_prev = hf_scr[...]                                 # (S*Bp, H)
                hb_prev = hb_scr[...]
                wf = wihf_ref[...]                                    # (2H, 4H)
                wb = wihb_ref[...]
                gxf = (jnp.dot(hf_prev, wf[0:H, :], preferred_element_type=jnp.float32)
                       + jnp.dot(hb_prev, wf[H:2 * H, :], preferred_element_type=jnp.float32))
                gxb = (jnp.dot(hf_prev, wb[0:H, :], preferred_element_type=jnp.float32)
                       + jnp.dot(hb_prev, wb[H:2 * H, :], preferred_element_type=jnp.float32))
            gxf_scr[...] = gxf + bf_ref[...]                          # (S*Bp, 4H)
            gxb_scr[...] = gxb + bb_ref[...]

            whh_f = whhf_ref[...]                                     # (H, 4H)
            whh_b = whhb_ref[...]

            h_f = jnp.zeros((Bp, H), jnp.float32)
            c_f = jnp.zeros((Bp, H), jnp.float32)
            h_b = jnp.zeros((Bp, H), jnp.float32)
            c_b = jnp.zeros((Bp, H), jnp.float32)

            last = (l == L - 1)
            # fully unrolled recurrence; fwd (t) and bwd (S-1-t) chains interleave
            for t in range(S):
                tb = S - 1 - t

                # ---- forward cell ----
                gates_f = (gxf_scr[pl.ds(t * Bp, Bp), :]
                           + jnp.dot(h_f, whh_f, preferred_element_type=jnp.float32))
                sg_f = jax.nn.sigmoid(gates_f)                        # one pass, all gates
                g_f = jnp.tanh(gates_f[:, 2 * H:3 * H])
                c_f = sg_f[:, H:2 * H] * c_f + sg_f[:, 0:H] * g_f
                h_f = sg_f[:, 3 * H:4 * H] * jnp.tanh(c_f)

                # ---- backward cell (independent chain) ----
                gates_b = (gxb_scr[pl.ds(tb * Bp, Bp), :]
                           + jnp.dot(h_b, whh_b, preferred_element_type=jnp.float32))
                sg_b = jax.nn.sigmoid(gates_b)
                g_b = jnp.tanh(gates_b[:, 2 * H:3 * H])
                c_b = sg_b[:, H:2 * H] * c_b + sg_b[:, 0:H] * g_b
                h_b = sg_b[:, 3 * H:4 * H] * jnp.tanh(c_b)

                if last:
                    hf_list[t] = h_f
                    hb_list[tb] = h_b
                else:
                    hf_scr[pl.ds(t * Bp, Bp), :] = h_f
                    hb_scr[pl.ds(tb * Bp, Bp), :] = h_b

        # ---- tanh attention over the final layer hidden states -------------------
        w_vec = w_ref[...]                                            # (1, 2H)
        w_f = w_vec[:, 0:H]
        w_b = w_vec[:, H:2 * H]

        s_list = []
        for t in range(S):
            m_t = jnp.tanh(hf_list[t]) * w_f + jnp.tanh(hb_list[t]) * w_b
            s_list.append(jnp.sum(m_t, axis=-1, keepdims=True))       # (Bp, 1)

        s_max = s_list[0]
        for t in range(1, S):
            s_max = jnp.maximum(s_max, s_list[t])
        e_list = [jnp.exp(s - s_max) for s in s_list]
        den = e_list[0]
        for t in range(1, S):
            den = den + e_list[t]
        inv = pl.reciprocal(den, approx=True)                         # softmax denom (EUP)

        ctx_f = jnp.zeros((Bp, H), jnp.float32)
        ctx_b = jnp.zeros((Bp, H), jnp.float32)
        for t in range(S):
            a_t = e_list[t] * inv
            ctx_f = ctx_f + a_t * hf_list[t]
            ctx_b = ctx_b + a_t * hb_list[t]
        ctx_f = jnp.maximum(ctx_f, 0.0)                               # ReLU
        ctx_b = jnp.maximum(ctx_b, 0.0)

        # ---- folded fc1·fc2 (no nonlinearity between them) ------------------------
        fc_w = fcw_ref[...]                                           # (2H, C)
        out = (jnp.dot(ctx_f, fc_w[0:H, :], preferred_element_type=jnp.float32)
               + jnp.dot(ctx_b, fc_w[H:2 * H, :], preferred_element_type=jnp.float32)
               + fcb_ref[...])
        o_ref[...] = out

    return kernel


# ----------------------------------------------------------------------------
# Model forward (glue: embedding gather + weight prep, then one pallas_call).
# ----------------------------------------------------------------------------
def model_forward(x, params):
    ids = x[0]                                   # (B, S) int32  (module uses x[0])
    B, S = ids.shape
    Bp = max(8, ((B + 7) // 8) * 8)              # pad batch to a full sublane tile
    ids_p = jnp.pad(ids, ((0, Bp - B), (0, 0)))  # padded rows use token 0 (discarded)

    # time-major flatten: row index = t*Bp + b   (embedding gather is XLA glue)
    flat_ids = jnp.transpose(ids_p).reshape(-1)
    emb = params["embedding"][flat_ids]          # (S*Bp, E) float32

    L = len(params["lstm_layers"])
    H = params["lstm_layers"][0][1].shape[0]     # whh_f stored as (H, 4H)
    C = params["fc2_w"].shape[1]

    # fold fc1 and fc2 into a single linear (numerically identical: no nonlinearity between)
    fc_w = params["fc1_w"] @ params["fc2_w"]                         # (2H, C)
    fc_b = params["fc1_b"] @ params["fc2_w"] + params["fc2_b"]       # (1, C)

    layer_args = []
    for lp in params["lstm_layers"]:
        layer_args.extend(lp)

    # TODO(synk): nn.LSTM inter-layer dropout is train-only; omitted (eval semantics).
    kernel = _make_fused_kernel(S, Bp, H, L)
    n_in = 1 + 6 * L + 3
    vmem = pl.BlockSpec(memory_space=pltpu.MemorySpace.VMEM)
    out_p = pl.pallas_call(
        kernel,
        out_shape=jax.ShapeDtypeStruct((Bp, C), jnp.float32),
        in_specs=[vmem] * n_in,
        out_specs=vmem,
        scratch_shapes=[pltpu.VMEM((S * Bp, 4 * H), jnp.float32),    # gates_x forward
                        pltpu.VMEM((S * Bp, 4 * H), jnp.float32),    # gates_x backward
                        pltpu.VMEM((S * Bp, H), jnp.float32),        # inter-layer h fwd
                        pltpu.VMEM((S * Bp, H), jnp.float32)],       # inter-layer h bwd
    )(emb, *layer_args, params["w"], fc_w, fc_b)
    return out_p[:B]


# ----------------------------------------------------------------------------
# Deterministic parameter init (mirrors module __init__ shapes).
# ----------------------------------------------------------------------------
def init_params(key, vocab_size, embed_dim, hidden1, num_layers, hidden2,
                num_classes, pad_id):
    keys = iter(jax.random.split(key, 64))
    emb = jax.random.normal(next(keys), (vocab_size, embed_dim), jnp.float32) * 0.1
    emb = emb.at[pad_id].set(0.0)

    bound = 1.0 / float(hidden1) ** 0.5

    def u(k, shape, b):
        return jax.random.uniform(k, shape, jnp.float32, -b, b)

    lstm_layers = []
    for l in range(num_layers):
        in_dim = embed_dim if l == 0 else 2 * hidden1
        layer = []
        for _direction in range(2):
            wih = u(next(keys), (4 * hidden1, in_dim), bound)
            whh = u(next(keys), (4 * hidden1, hidden1), bound)
            bih = u(next(keys), (4 * hidden1,), bound)
            bhh = u(next(keys), (4 * hidden1,), bound)
            # store pre-transposed for `x @ W` inside the kernel; biases combined
            layer.extend([wih.T, whh.T, (bih + bhh)[None, :]])
        lstm_layers.append(tuple(layer))

    w_attn = jnp.zeros((1, 2 * hidden1), jnp.float32)        # nn.Parameter(torch.zeros(2H))

    b1 = 1.0 / float(2 * hidden1) ** 0.5
    fc1_w = u(next(keys), (hidden2, 2 * hidden1), b1)
    fc1_b = u(next(keys), (hidden2,), b1)
    b2 = 1.0 / float(hidden2) ** 0.5
    fc2_w = u(next(keys), (num_classes, hidden2), b2)
    fc2_b = u(next(keys), (num_classes,), b2)

    return dict(embedding=emb, lstm_layers=lstm_layers, w=w_attn,
                fc1_w=fc1_w.T, fc1_b=fc1_b[None, :],
                fc2_w=fc2_w.T, fc2_b=fc2_b[None, :])


# ----------------------------------------------------------------------------
# Pure-JAX reference (for correctness check).
# ----------------------------------------------------------------------------
def ref_forward(ids, params):
    h = params["embedding"][ids]
    for (wih_f, whh_f, b_f, wih_b, whh_b, b_b) in params["lstm_layers"]:
        B = h.shape[0]
        Hsz = whh_f.shape[0]

        def run_dir(x, wih, whh, b, reverse):
            def step(carry, x_t):
                hp, cp = carry
                gates = x_t @ wih + hp @ whh + b[0]
                i = jax.nn.sigmoid(gates[:, :Hsz])
                f = jax.nn.sigmoid(gates[:, Hsz:2 * Hsz])
                g = jnp.tanh(gates[:, 2 * Hsz:3 * Hsz])
                o = jax.nn.sigmoid(gates[:, 3 * Hsz:4 * Hsz])
                c = f * cp + i * g
                hh = o * jnp.tanh(c)
                return (hh, c), hh

            xs = jnp.transpose(x, (1, 0, 2))
            init = (jnp.zeros((B, Hsz), jnp.float32), jnp.zeros((B, Hsz), jnp.float32))
            _, hs = jax.lax.scan(step, init, xs, reverse=reverse)
            return jnp.transpose(hs, (1, 0, 2))

        hf = run_dir(h, wih_f, whh_f, b_f, False)
        hb = run_dir(h, wih_b, whh_b, b_b, True)
        h = jnp.concatenate([hf, hb], axis=-1)

    M = jnp.tanh(h)
    alpha = jax.nn.softmax(M @ params["w"][0], axis=1)[:, :, None]
    out = jax.nn.relu(jnp.sum(h * alpha, axis=1))
    out = out @ params["fc1_w"] + params["fc1_b"][0]
    out = out @ params["fc2_w"] + params["fc2_b"][0]
    return out


if __name__ == "__main__":
    B, S = 2, 8
    vocab, E, H1, L, H2, C, pad = 64, 32, 32, 2, 64, 4, 0

    key = jax.random.PRNGKey(0)
    pkey, dkey = jax.random.split(key)
    params = init_params(pkey, vocab, E, H1, L, H2, C, pad)

    ids = jax.random.randint(dkey, (B, S), 0, vocab, dtype=jnp.int32)
    seq_len = jnp.full((B,), S, jnp.int32)
    x = (ids, seq_len)            # module uses x[0]

    out = model_forward(x, params)
    out = jax.block_until_ready(out)

    ref = ref_forward(ids, params)
    assert out.shape == (B, C), out.shape
    assert jnp.all(jnp.isfinite(out))
    # approx reciprocal in the softmax + folded fc give a slightly looser tolerance
    assert jnp.allclose(out, ref, atol=2e-3, rtol=2e-3), (out, ref)
    print("KERNEL_OK")
</pallas_src>

<mosaic_0001>
module attributes {stable_mosaic.version = 11 : i64} {
  func.func @kernel(%arg0: memref<64x32xf32, #tpu.memory_space<vmem>>, %arg1: memref<32x128xf32, #tpu.memory_space<vmem>>, %arg2: memref<32x128xf32, #tpu.memory_space<vmem>>, %arg3: memref<1x128xf32, #tpu.memory_space<vmem>>, %arg4: memref<32x128xf32, #tpu.memory_space<vmem>>, %arg5: memref<32x128xf32, #tpu.memory_space<vmem>>, %arg6: memref<1x128xf32, #tpu.memory_space<vmem>>, %arg7: memref<64x128xf32, #tpu.memory_space<vmem>>, %arg8: memref<32x128xf32, #tpu.memory_space<vmem>>, %arg9: memref<1x128xf32, #tpu.memory_space<vmem>>, %arg10: memref<64x128xf32, #tpu.memory_space<vmem>>, %arg11: memref<32x128xf32, #tpu.memory_space<vmem>>, %arg12: memref<1x128xf32, #tpu.memory_space<vmem>>, %arg13: memref<1x64xf32, #tpu.memory_space<vmem>>, %arg14: memref<64x4xf32, #tpu.memory_space<vmem>>, %arg15: memref<1x4xf32, #tpu.memory_space<vmem>>, %arg16: memref<8x4xf32, #tpu.memory_space<vmem>>, %arg17: memref<64x128xf32, #tpu.memory_space<vmem>>, %arg18: memref<64x128xf32, #tpu.memory_space<vmem>>, %arg19: memref<64x32xf32, #tpu.memory_space<vmem>>, %arg20: memref<64x32xf32, #tpu.memory_space<vmem>>) attributes {dimension_semantics = [], scalar_prefetch = 0 : i64, scratch_operands = 4 : i64, tpu.core_type = #tpu.core_type<tc>} {
    %c0 = arith.constant 0 : index
    %c0_0 = arith.constant 0 : index
    %0 = vector.load %arg0[%c0, %c0_0] : memref<64x32xf32, #tpu.memory_space<vmem>>, vector<64x32xf32>
    %c0_1 = arith.constant 0 : index
    %c0_2 = arith.constant 0 : index
    %1 = vector.load %arg1[%c0_1, %c0_2] : memref<32x128xf32, #tpu.memory_space<vmem>>, vector<32x128xf32>
    %cst = arith.constant dense<0.000000e+00> : vector<64x128xf32>
    %2 = tpu.matmul %0, %1, %cst {dimension_numbers = #tpu.dot_dimension_numbers<[1], [0], [0], [1], [0, 0, 1, 1], [], []>} : vector<64x32xf32>, vector<32x128xf32>, vector<64x128xf32> -> vector<64x128xf32>
    %c0_3 = arith.constant 0 : index
    %c0_4 = arith.constant 0 : index
    %3 = vector.load %arg4[%c0_3, %c0_4] : memref<32x128xf32, #tpu.memory_space<vmem>>, vector<32x128xf32>
    %cst_5 = arith.constant dense<0.000000e+00> : vector<64x128xf32>
    %4 = tpu.matmul %0, %3, %cst_5 {dimension_numbers = #tpu.dot_dimension_numbers<[1], [0], [0], [1], [0, 0, 1, 1], [], []>} : vector<64x32xf32>, vector<32x128xf32>, vector<64x128xf32> -> vector<64x128xf32>
    %c0_6 = arith.constant 0 : index
    %c0_7 = arith.constant 0 : index
    %5 = vector.load %arg3[%c0_6, %c0_7] : memref<1x128xf32, #tpu.memory_space<vmem>>, vector<1x128xf32>
    %6 = vector.broadcast %5 : vector<1x128xf32> to vector<64x128xf32>
    %7 = arith.addf %2, %6 : vector<64x128xf32>
    %c0_8 = arith.constant 0 : index
    %c0_9 = arith.constant 0 : index
    %8 = vector.load %arg17[%c0_8, %c0_9] : memref<64x128xf32, #tpu.memory_space<vmem>>, vector<64x128xf32>
    tpu.vector_store %arg17[%c0_8, %c0_9], %7 {strides = array<i32>} : memref<64x128xf32, #tpu.memory_space<vmem>>, vector<64x128xf32>,
    %c0_10 = arith.constant 0 : index
    %c0_11 = arith.constant 0 : index
    %9 = vector.load %arg6[%c0_10, %c0_11] : memref<1x128xf32, #tpu.memory_space<vmem>>, vector<1x128xf32>
    %10 = vector.broadcast %9 : vector<1x128xf32> to vector<64x128xf32>
    %11 = arith.addf %4, %10 : vector<64x128xf32>
    %c0_12 = arith.constant 0 : index
    %c0_13 = arith.constant 0 : index
    %12 = vector.load %arg18[%c0_12, %c0_13] : memref<64x128xf32, #tpu.memory_space<vmem>>, vector<64x128xf32>
    tpu.vector_store %arg18[%c0_12, %c0_13], %11 {strides = array<i32>} : memref<64x128xf32, #tpu.memory_space<vmem>>, vector<64x128xf32>,
    %c0_14 = arith.constant 0 : index
    %c0_15 = arith.constant 0 : index
    %13 = vector.load %arg2[%c0_14, %c0_15] : memref<32x128xf32, #tpu.memory_space<vmem>>, vector<32x128xf32>
    %c0_16 = arith.constant 0 : index
    %c0_17 = arith.constant 0 : index
    %14 = vector.load %arg5[%c0_16, %c0_17] : memref<32x128xf32, #tpu.memory_space<vmem>>, vector<32x128xf32>
    %cst_18 = arith.constant 0.000000e+00 : f32
    %15 = vector.broadcast %cst_18 : f32 to vector<8x32xf32>
    %cst_19 = arith.constant 0.000000e+00 : f32
    %16 = vector.broadcast %cst_19 : f32 to vector<8x32xf32>
    %cst_20 = arith.constant 0.000000e+00 : f32
    %17 = vector.broadcast %cst_20 : f32 to vector<8x32xf32>
    %cst_21 = arith.constant 0.000000e+00 : f32
    %18 = vector.broadcast %cst_21 : f32 to vector<8x32xf32>
    %c0_22 = arith.constant 0 : index
    %c0_23 = arith.constant 0 : index
    %19 = vector.load %arg17[%c0_22, %c0_23] : memref<64x128xf32, #tpu.memory_space<vmem>>, vector<8x128xf32>
    %cst_24 = arith.constant dense<0.000000e+00> : vector<8x128xf32>
    %20 = tpu.matmul %15, %13, %cst_24 {dimension_numbers = #tpu.dot_dimension_numbers<[1], [0], [0], [1], [0, 0, 1, 1], [], []>} : vector<8x32xf32>, vector<32x128xf32>, vector<8x128xf32> -> vector<8x128xf32>
    %21 = arith.addf %19, %20 : vector<8x128xf32>
    %22 = arith.negf %21 : vector<8x128xf32>
    %23 = math.exp %22 : vector<8x128xf32>
    %cst_25 = arith.constant 1.000000e+00 : f32
    %24 = vector.broadcast %cst_25 : f32 to vector<8x128xf32>
    %25 = arith.addf %24, %23 : vector<8x128xf32>
    %26 = arith.divf %24, %25 : vector<8x128xf32>
    %27 = vector.extract_strided_slice %21 {offsets = [0, 64], sizes = [8, 32], strides = [1, 1]} : vector<8x128xf32> to vector<8x32xf32>
    %28 = math.tanh %27 : vector<8x32xf32>
    %29 = vector.extract_strided_slice %26 {offsets = [0, 32], sizes = [8, 32], strides = [1, 1]} : vector<8x128xf32> to vector<8x32xf32>
    %30 = arith.mulf %29, %16 : vector<8x32xf32>
    %31 = vector.extract_strided_slice %26 {offsets = [0, 0], sizes = [8, 32], strides = [1, 1]} : vector<8x128xf32> to vector<8x32xf32>
    %32 = arith.mulf %31, %28 : vector<8x32xf32>
    %33 = arith.addf %30, %32 : vector<8x32xf32>
    %34 = vector.extract_strided_slice %26 {offsets = [0, 96], sizes = [8, 32], strides = [1, 1]} : vector<8x128xf32> to vector<8x32xf32>
    %35 = math.tanh %33 : vector<8x32xf32>
    %36 = arith.mulf %34, %35 : vector<8x32xf32>
    %c56 = arith.constant 56 : index
    %c0_26 = arith.constant 0 : index
    %37 = vector.load %arg18[%c56, %c0_26] : memref<64x128xf32, #tpu.memory_space<vmem>>, vector<8x128xf32>
    %cst_27 = arith.constant dense<0.000000e+00> : vector<8x128xf32>
    %38 = tpu.matmul %17, %14, %cst_27 {dimension_numbers = #tpu.dot_dimension_numbers<[1], [0], [0], [1], [0, 0, 1, 1], [], []>} : vector<8x32xf32>, vector<32x128xf32>, vector<8x128xf32> -> vector<8x128xf32>
    %39 = arith.addf %37, %38 : vector<8x128xf32>
    %40 = arith.negf %39 : vector<8x128xf32>
    %41 = math.exp %40 : vector<8x128xf32>
    %cst_28 = arith.constant 1.000000e+00 : f32
    %42 = vector.broadcast %cst_28 : f32 to vector<8x128xf32>
    %43 = arith.addf %42, %41 : vector<8x128xf32>
    %44 = arith.divf %42, %43 : vector<8x128xf32>
    %45 = vector.extract_strided_slice %39 {offsets = [0, 64], sizes = [8, 32], strides = [1, 1]} : vector<8x128xf32> to vector<8x32xf32>
    %46 = math.tanh %45 : vector<8x32xf32>
    %47 = vector.extract_strided_slice %44 {offsets = [0, 32], sizes = [8, 32], strides = [1, 1]} : vector<8x128xf32> to vector<8x32xf32>
    %48 = arith.mulf %47, %18 : vector<8x32xf32>
    %49 = vector.extract_strided_slice %44 {offsets = [0, 0], sizes = [8, 32], strides = [1, 1]} : vector<8x128xf32> to vector<8x32xf32>
    %50 = arith.mulf %49, %46 : vector<8x32xf32>
    %51 = arith.addf %48, %50 : vector<8x32xf32>
    %52 = vector.extract_strided_slice %44 {offsets = [0, 96], sizes = [8, 32], strides = [1, 1]} : vector<8x128xf32> to vector<8x32xf32>
    %53 = math.tanh %51 : vector<8x32xf32>
    %54 = arith.mulf %52, %53 : vector<8x32xf32>
    %c0_29 = arith.constant 0 : index
    %c0_30 = arith.constant 0 : index
    %55 = vector.load %arg19[%c0_29, %c0_30] : memref<64x32xf32, #tpu.memory_space<vmem>>, vector<8x32xf32>
    tpu.vector_store %arg19[%c0_29, %c0_30], %36 {strides = array<i32>} : memref<64x32xf32, #tpu.memory_space<vmem>>, vector<8x32xf32>,
    %c56_31 = arith.constant 56 : index
    %c0_32 = arith.constant 0 : index
    %56 = vector.load %arg20[%c56_31, %c0_32] : memref<64x32xf32, #tpu.memory_space<vmem>>, vector<8x32xf32>
    tpu.vector_store %arg20[%c56_31, %c0_32], %54 {strides = array<i32>} : memref<64x32xf32, #tpu.memory_space<vmem>>, vector<8x32xf32>,
    %c8 = arith.constant 8 : index
    %c0_33 = arith.constant 0 : index
    %57 = vector.load %arg17[%c8, %c0_33] : memref<64x128xf32, #tpu.memory_space<vmem>>, vector<8x128xf32>
    %cst_34 = arith.constant dense<0.000000e+00> : vector<8x128xf32>
    %58 = tpu.matmul %36, %13, %cst_34 {dimension_numbers = #tpu.dot_dimension_numbers<[1], [0], [0], [1], [0, 0, 1, 1], [], []>} : vector<8x32xf32>, vector<32x128xf32>, vector<8x128xf32> -> vector<8x128xf32>
    %59 = arith.addf %57, %58 : vector<8x128xf32>
    %60 = arith.negf %59 : vector<8x128xf32>
    %61 = math.exp %60 : vector<8x128xf32>
    %cst_35 = arith.constant 1.000000e+00 : f32
    %62 = vector.broadcast %cst_35 : f32 to vector<8x128xf32>
    %63 = arith.addf %62, %61 : vector<8x128xf32>
    %64 = arith.divf %62, %63 : vector<8x128xf32>
    %65 = vector.extract_strided_slice %59 {offsets = [0, 64], sizes = [8, 32], strides = [1, 1]} : vector<8x128xf32> to vector<8x32xf32>
    %66 = math.tanh %65 : vector<8x32xf32>
    %67 = vector.extract_strided_slice %64 {offsets = [0, 32], sizes = [8, 32], strides = [1, 1]} : vector<8x128xf32> to vector<8x32xf32>
    %68 = arith.mulf %67, %33 : vector<8x32xf32>
    %69 = vector.extract_strided_slice %64 {offsets = [0, 0], sizes = [8, 32], strides = [1, 1]} : vector<8x128xf32> to vector<8x32xf32>
    %70 = arith.mulf %69, %66 : vector<8x32xf32>
    %71 = arith.addf %68, %70 : vector<8x32xf32>
    %72 = vector.extract_strided_slice %64 {offsets = [0, 96], sizes = [8, 32], strides = [1, 1]} : vector<8x128xf32> to vector<8x32xf32>
    %73 = math.tanh %71 : vector<8x32xf32>
    %74 = arith.mulf %72, %73 : vector<8x32xf32>
    %c48 = arith.constant 48 : index
    %c0_36 = arith.constant 0 : index
    %75 = vector.load %arg18[%c48, %c0_36] : memref<64x128xf32, #tpu.memory_space<vmem>>, vector<8x128xf32>
    %cst_37 = arith.constant dense<0.000000e+00> : vector<8x128xf32>
    %76 = tpu.matmul %54, %14, %cst_37 {dimension_numbers = #tpu.dot_dimension_numbers<[1], [0], [0], [1], [0, 0, 1, 1], [], []>} : vector<8x32xf32>, vector<32x128xf32>, vector<8x128xf32> -> vector<8x128xf32>
    %77 = arith.addf %75, %76 : vector<8x128xf32>
    %78 = arith.negf %77 : vector<8x128xf32>
    %79 = math.exp %78 : vector<8x128xf32>
    %cst_38 = arith.constant 1.000000e+00 : f32
    %80 = vector.broadcast %cst_38 : f32 to vector<8x128xf32>
    %81 = arith.addf %80, %79 : vector<8x128xf32>
    %82 = arith.divf %80, %81 : vector<8x128xf32>
    %83 = vector.extract_strided_slice %77 {offsets = [0, 64], sizes = [8, 32], strides = [1, 1]} : vector<8x128xf32> to vector<8x32xf32>
    %84 = math.tanh %83 : vector<8x32xf32>
    %85 = vector.extract_strided_slice %82 {offsets = [0, 32], sizes = [8, 32], strides = [1, 1]} : vector<8x128xf32> to vector<8x32xf32>
    %86 = arith.mulf %85, %51 : vector<8x32xf32>
    %87 = vector.extract_strided_slice %82 {offsets = [0, 0], sizes = [8, 32], strides = [1, 1]} : vector<8x128xf32> to vector<8x32xf32>
    %88 = arith.mulf %87, %84 : vector<8x32xf32>
    %89 = arith.addf %86, %88 : vector<8x32xf32>
    %90 = vector.extract_strided_slice %82 {offsets = [0, 96], sizes = [8, 32], strides = [1, 1]} : vector<8x128xf32> to vector<8x32xf32>
    %91 = math.tanh %89 : vector<8x32xf32>
    %92 = arith.mulf %90, %91 : vector<8x32xf32>
    %c8_39 = arith.constant 8 : index
    %c0_40 = arith.constant 0 : index
    %93 = vector.load %arg19[%c8_39, %c0_40] : memref<64x32xf32, #tpu.memory_space<vmem>>, vector<8x32xf32>
    tpu.vector_store %arg19[%c8_39, %c0_40], %74 {strides = array<i32>} : memref<64x32xf32, #tpu.memory_space<vmem>>, vector<8x32xf32>,
    %c48_41 = arith.constant 48 : index
    %c0_42 = arith.constant 0 : index
    %94 = vector.load %arg20[%c48_41, %c0_42] : memref<64x32xf32, #tpu.memory_space<vmem>>, vector<8x32xf32>
    tpu.vector_store %arg20[%c48_41, %c0_42], %92 {strides = array<i32>} : memref<64x32xf32, #tpu.memory_space<vmem>>, vector<8x32xf32>,
    %c16 = arith.constant 16 : index
    %c0_43 = arith.constant 0 : index
    %95 = vector.load %arg17[%c16, %c0_43] : memref<64x128xf32, #tpu.memory_space<vmem>>, vector<8x128xf32>
    %cst_44 = arith.constant dense<0.000000e+00> : vector<8x128xf32>
    %96 = tpu.matmul %74, %13, %cst_44 {dimension_numbers = #tpu.dot_dimension_numbers<[1], [0], [0], [1], [0, 0, 1, 1], [], []>} : vector<8x32xf32>, vector<32x128xf32>, vector<8x128xf32> -> vector<8x128xf32>
    %97 = arith.addf %95, %96 : vector<8x128xf32>
    %98 = arith.negf %97 : vector<8x128xf32>
    %99 = math.exp %98 : vector<8x128xf32>
    %cst_45 = arith.constant 1.000000e+00 : f32
    %100 = vector.broadcast %cst_45 : f32 to vector<8x128xf32>
    %101 = arith.addf %100, %99 : vector<8x128xf32>
    %102 = arith.divf %100, %101 : vector<8x128xf32>
    %103 = vector.extract_strided_slice %97 {offsets = [0, 64], sizes = [8, 32], strides = [1, 1]} : vector<8x128xf32> to vector<8x32xf32>
    %104 = math.tanh %103 : vector<8x32xf32>
    %105 = vector.extract_strided_slice %102 {offsets = [0, 32], sizes = [8, 32], strides = [1, 1]} : vector<8x128xf32> to vector<8x32xf32>
    %106 = arith.mulf %105, %71 : vector<8x32xf32>
    %107 = vector.extract_strided_slice %102 {offsets = [0, 0], sizes = [8, 32], strides = [1, 1]} : vector<8x128xf32> to vector<8x32xf32>
    %108 = arith.mulf %107, %104 : vector<8x32xf32>
    %109 = arith.addf %106, %108 : vector<8x32xf32>
    %110 = vector.extract_strided_slice %102 {offsets = [0, 96], sizes = [8, 32], strides = [1, 1]} : vector<8x128xf32> to vector<8x32xf32>
    %111 = math.tanh %109 : vector<8x32xf32>
    %112 = arith.mulf %110, %111 : vector<8x32xf32>
    %c40 = arith.constant 40 : index
    %c0_46 = arith.constant 0 : index
    %113 = vector.load %arg18[%c40, %c0_46] : memref<64x128xf32, #tpu.memory_space<vmem>>, vector<8x128xf32>
    %cst_47 = arith.constant dense<0.000000e+00> : vector<8x128xf32>
    %114 = tpu.matmul %92, %14, %cst_47 {dimension_numbers = #tpu.dot_dimension_numbers<[1], [0], [0], [1], [0, 0, 1, 1], [], []>} : vector<8x32xf32>, vector<32x128xf32>, vector<8x128xf32> -> vector<8x128xf32>
    %115 = arith.addf %113, %114 : vector<8x128xf32>
    %116 = arith.negf %115 : vector<8x128xf32>
    %117 = math.exp %116 : vector<8x128xf32>
    %cst_48 = arith.constant 1.000000e+00 : f32
    %118 = vector.broadcast %cst_48 : f32 to vector<8x128xf32>
    %119 = arith.addf %118, %117 : vector<8x128xf32>
    %120 = arith.divf %118, %119 : vector<8x128xf32>
    %121 = vector.extract_strided_slice %115 {offsets = [0, 64], sizes = [8, 32], strides = [1, 1]} : vector<8x128xf32> to vector<8x32xf32>
    %122 = math.tanh %121 : vector<8x32xf32>
    %123 = vector.extract_strided_slice %120 {offsets = [0, 32], sizes = [8, 32], strides = [1, 1]} : vector<8x128xf32> to vector<8x32xf32>
    %124 = arith.mulf %123, %89 : vector<8x32xf32>
    %125 = vector.extract_strided_slice %120 {offsets = [0, 0], sizes = [8, 32], strides = [1, 1]} : vector<8x128xf32> to vector<8x32xf32>
    %126 = arith.mulf %125, %122 : vector<8x32xf32>
    %127 = arith.addf %124, %126 : vector<8x32xf32>
    %128 = vector.extract_strided_slice %120 {offsets = [0, 96], sizes = [8, 32], strides = [1, 1]} : vector<8x128xf32> to vector<8x32xf32>
    %129 = math.tanh %127 : vector<8x32xf32>
    %130 = arith.mulf %128, %129 : vector<8x32xf32>
    %c16_49 = arith.constant 16 : index
    %c0_50 = arith.constant 0 : index
    %131 = vector.load %arg19[%c16_49, %c0_50] : memref<64x32xf32, #tpu.memory_space<vmem>>, vector<8x32xf32>
    tpu.vector_store %arg19[%c16_49, %c0_50], %112 {strides = array<i32>} : memref<64x32xf32, #tpu.memory_space<vmem>>, vector<8x32xf32>,
    %c40_51 = arith.constant 40 : index
    %c0_52 = arith.constant 0 : index
    %132 = vector.load %arg20[%c40_51, %c0_52] : memref<64x32xf32, #tpu.memory_space<vmem>>, vector<8x32xf32>
    tpu.vector_store %arg20[%c40_51, %c0_52], %130 {strides = array<i32>} : memref<64x32xf32, #tpu.memory_space<vmem>>, vector<8x32xf32>,
    %c24 = arith.constant 24 : index
    %c0_53 = arith.constant 0 : index
    %133 = vector.load %arg17[%c24, %c0_53] : memref<64x128xf32, #tpu.memory_space<vmem>>, vector<8x128xf32>
    %cst_54 = arith.constant dense<0.000000e+00> : vector<8x128xf32>
    %134 = tpu.matmul %112, %13, %cst_54 {dimension_numbers = #tpu.dot_dimension_numbers<[1], [0], [0], [1], [0, 0, 1, 1], [], []>} : vector<8x32xf32>, vector<32x128xf32>, vector<8x128xf32> -> vector<8x128xf32>
    %135 = arith.addf %133, %134 : vector<8x128xf32>
    %136 = arith.negf %135 : vector<8x128xf32>
    %137 = math.exp %136 : vector<8x128xf32>
    %cst_55 = arith.constant 1.000000e+00 : f32
    %138 = vector.broadcast %cst_55 : f32 to vector<8x128xf32>
    %139 = arith.addf %138, %137 : vector<8x128xf32>
    %140 = arith.divf %138, %139 : vector<8x128xf32>
    %141 = vector.extract_strided_slice %135 {offsets = [0, 64], sizes = [8, 32], strides = [1, 1]} : vector<8x128xf32> to vector<8x32xf32>
    %142 = math.tanh %141 : vector<8x32xf32>
    %143 = vector.extract_strided_slice %140 {offsets = [0, 32], sizes = [8, 32], strides = [1, 1]} : vector<8x128xf32> to vector<8x32xf32>
    %144 = arith.mulf %143, %109 : vector<8x32xf32>
    %145 = vector.extract_strided_slice %140 {offsets = [0, 0], sizes = [8, 32], strides = [1, 1]} : vector<8x128xf32> to vector<8x32xf32>
    %146 = arith.mulf %145, %142 : vector<8x32xf32>
    %147 = arith.addf %144, %146 : vector<8x32xf32>
    %148 = vector.extract_strided_slice %140 {offsets = [0, 96], sizes = [8, 32], strides = [1, 1]} : vector<8x128xf32> to vector<8x32xf32>
    %149 = math.tanh %147 : vector<8x32xf32>
    %150 = arith.mulf %148, %149 : vector<8x32xf32>
    %c32 = arith.constant 32 : index
    %c0_56 = arith.constant 0 : index
    %151 = vector.load %arg18[%c32, %c0_56] : memref<64x128xf32, #tpu.memory_space<vmem>>, vector<8x128xf32>
    %cst_57 = arith.constant dense<0.000000e+00> : vector<8x128xf32>
    %152 = tpu.matmul %130, %14, %cst_57 {dimension_numbers = #tpu.dot_dimension_numbers<[1], [0], [0], [1], [0, 0, 1, 1], [], []>} : vector<8x32xf32>, vector<32x128xf32>, vector<8x128xf32> -> vector<8x128xf32>
    %153 = arith.addf %151, %152 : vector<8x128xf32>
    %154 = arith.negf %153 : vector<8x128xf32>
    %155 = math.exp %154 : vector<8x128xf32>
    %cst_58 = arith.constant 1.000000e+00 : f32
    %156 = vector.broadcast %cst_58 : f32 to vector<8x128xf32>
    %157 = arith.addf %156, %155 : vector<8x128xf32>
    %158 = arith.divf %156, %157 : vector<8x128xf32>
    %159 = vector.extract_strided_slice %153 {offsets = [0, 64], sizes = [8, 32], strides = [1, 1]} : vector<8x128xf32> to vector<8x32xf32>
    %160 = math.tanh %159 : vector<8x32xf32>
    %161 = vector.extract_strided_slice %158 {offsets = [0, 32], sizes = [8, 32], strides = [1, 1]} : vector<8x128xf32> to vector<8x32xf32>
    %162 = arith.mulf %161, %127 : vector<8x32xf32>
    %163 = vector.extract_strided_slice %158 {offsets = [0, 0], sizes = [8, 32], strides = [1, 1]} : vector<8x128xf32> to vector<8x32xf32>
    %164 = arith.mulf %163, %160 : vector<8x32xf32>
    %165 = arith.addf %162, %164 : vector<8x32xf32>
    %166 = vector.extract_strided_slice %158 {offsets = [0, 96], sizes = [8, 32], strides = [1, 1]} : vector<8x128xf32> to vector<8x32xf32>
    %167 = math.tanh %165 : vector<8x32xf32>
    %168 = arith.mulf %166, %167 : vector<8x32xf32>
    %c24_59 = arith.constant 24 : index
    %c0_60 = arith.constant 0 : index
    %169 = vector.load %arg19[%c24_59, %c0_60] : memref<64x32xf32, #tpu.memory_space<vmem>>, vector<8x32xf32>
    tpu.vector_store %arg19[%c24_59, %c0_60], %150 {strides = array<i32>} : memref<64x32xf32, #tpu.memory_space<vmem>>, vector<8x32xf32>,
    %c32_61 = arith.constant 32 : index
    %c0_62 = arith.constant 0 : index
    %170 = vector.load %arg20[%c32_61, %c0_62] : memref<64x32xf32, #tpu.memory_space<vmem>>, vector<8x32xf32>
    tpu.vector_store %arg20[%c32_61, %c0_62], %168 {strides = array<i32>} : memref<64x32xf32, #tpu.memory_space<vmem>>, vector<8x32xf32>,
    %c32_63 = arith.constant 32 : index
    %c0_64 = arith.constant 0 : index
    %171 = vector.load %arg17[%c32_63, %c0_64] : memref<64x128xf32, #tpu.memory_space<vmem>>, vector<8x128xf32>
    %cst_65 = arith.constant dense<0.000000e+00> : vector<8x128xf32>
    %172 = tpu.matmul %150, %13, %cst_65 {dimension_numbers = #tpu.dot_dimension_numbers<[1], [0], [0], [1], [0, 0, 1, 1], [], []>} : vector<8x32xf32>, vector<32x128xf32>, vector<8x128xf32> -> vector<8x128xf32>
    %173 = arith.addf %171, %172 : vector<8x128xf32>
    %174 = arith.negf %173 : vector<8x128xf32>
    %175 = math.exp %174 : vector<8x128xf32>
    %cst_66 = arith.constant 1.000000e+00 : f32
    %176 = vector.broadcast %cst_66 : f32 to vector<8x128xf32>
    %177 = arith.addf %176, %175 : vector<8x128xf32>
    %178 = arith.divf %176, %177 : vector<8x128xf32>
    %179 = vector.extract_strided_slice %173 {offsets = [0, 64], sizes = [8, 32], strides = [1, 1]} : vector<8x128xf32> to vector<8x32xf32>
    %180 = math.tanh %179 : vector<8x32xf32>
    %181 = vector.extract_strided_slice %178 {offsets = [0, 32], sizes = [8, 32], strides = [1, 1]} : vector<8x128xf32> to vector<8x32xf32>
    %182 = arith.mulf %181, %147 : vector<8x32xf32>
    %183 = vector.extract_strided_slice %178 {offsets = [0, 0], sizes = [8, 32], strides = [1, 1]} : vector<8x128xf32> to vector<8x32xf32>
    %184 = arith.mulf %183, %180 : vector<8x32xf32>
    %185 = arith.addf %182, %184 : vector<8x32xf32>
    %186 = vector.extract_strided_slice %178 {offsets = [0, 96], sizes = [8, 32], strides = [1, 1]} : vector<8x128xf32> to vector<8x32xf32>
    %187 = math.tanh %185 : vector<8x32xf32>
    %188 = arith.mulf %186, %187 : vector<8x32xf32>
    %c24_67 = arith.constant 24 : index
    %c0_68 = arith.constant 0 : index
    %189 = vector.load %arg18[%c24_67, %c0_68] : memref<64x128xf32, #tpu.memory_space<vmem>>, vector<8x128xf32>
    %cst_69 = arith.constant dense<0.000000e+00> : vector<8x128xf32>
    %190 = tpu.matmul %168, %14, %cst_69 {dimension_numbers = #tpu.dot_dimension_numbers<[1], [0], [0], [1], [0, 0, 1, 1], [], []>} : vector<8x32xf32>, vector<32x128xf32>, vector<8x128xf32> -> vector<8x128xf32>
    %191 = arith.addf %189, %190 : vector<8x128xf32>
    %192 = arith.negf %191 : vector<8x128xf32>
    %193 = math.exp %192 : vector<8x128xf32>
    %cst_70 = arith.constant 1.000000e+00 : f32
    %194 = vector.broadcast %cst_70 : f32 to vector<8x128xf32>
    %195 = arith.addf %194, %193 : vector<8x128xf32>
    %196 = arith.divf %194, %195 : vector<8x128xf32>
    %197 = vector.extract_strided_slice %191 {offsets = [0, 64], sizes = [8, 32], strides = [1, 1]} : vector<8x128xf32> to vector<8x32xf32>
    %198 = math.tanh %197 : vector<8x32xf32>
    %199 = vector.extract_strided_slice %196 {offsets = [0, 32], sizes = [8, 32], strides = [1, 1]} : vector<8x128xf32> to vector<8x32xf32>
    %200 = arith.mulf %199, %165 : vector<8x32xf32>
    %201 = vector.extract_strided_slice %196 {offsets = [0, 0], sizes = [8, 32], strides = [1, 1]} : vector<8x128xf32> to vector<8x32xf32>
    %202 = arith.mulf %201, %198 : vector<8x32xf32>
    %203 = arith.addf %200, %202 : vector<8x32xf32>
    %204 = vector.extract_strided_slice %196 {offsets = [0, 96], sizes = [8, 32], strides = [1, 1]} : vector<8x128xf32> to vector<8x32xf32>
    %205 = math.tanh %203 : vector<8x32xf32>
    %206 = arith.mulf %204, %205 : vector<8x32xf32>
    %c32_71 = arith.constant 32 : index
    %c0_72 = arith.constant 0 : index
    %207 = vector.load %arg19[%c32_71, %c0_72] : memref<64x32xf32, #tpu.memory_space<vmem>>, vector<8x32xf32>
    tpu.vector_store %arg19[%c32_71, %c0_72], %188 {strides = array<i32>} : memref<64x32xf32, #tpu.memory_space<vmem>>, vector<8x32xf32>,
    %c24_73 = arith.constant 24 : index
    %c0_74 = arith.constant 0 : index
    %208 = vector.load %arg20[%c24_73, %c0_74] : memref<64x32xf32, #tpu.memory_space<vmem>>, vector<8x32xf32>
    tpu.vector_store %arg20[%c24_73, %c0_74], %206 {strides = array<i32>} : memref<64x32xf32, #tpu.memory_space<vmem>>, vector<8x32xf32>,
    %c40_75 = arith.constant 40 : index
    %c0_76 = arith.constant 0 : index
    %209 = vector.load %arg17[%c40_75, %c0_76] : memref<64x128xf32, #tpu.memory_space<vmem>>, vector<8x128xf32>
    %cst_77 = arith.constant dense<0.000000e+00> : vector<8x128xf32>
    %210 = tpu.matmul %188, %13, %cst_77 {dimension_numbers = #tpu.dot_dimension_numbers<[1], [0], [0], [1], [0, 0, 1, 1], [], []>} : vector<8x32xf32>, vector<32x128xf32>, vector<8x128xf32> -> vector<8x128xf32>
    %211 = arith.addf %209, %210 : vector<8x128xf32>
    %212 = arith.negf %211 : vector<8x128xf32>
    %213 = math.exp %212 : vector<8x128xf32>
    %cst_78 = arith.constant 1.000000e+00 : f32
    %214 = vector.broadcast %cst_78 : f32 to vector<8x128xf32>
    %215 = arith.addf %214, %213 : vector<8x128xf32>
    %216 = arith.divf %214, %215 : vector<8x128xf32>
    %217 = vector.extract_strided_slice %211 {offsets = [0, 64], sizes = [8, 32], strides = [1, 1]} : vector<8x128xf32> to vector<8x32xf32>
    %218 = math.tanh %217 : vector<8x32xf32>
    %219 = vector.extract_strided_slice %216 {offsets = [0, 32], sizes = [8, 32], strides = [1, 1]} : vector<8x128xf32> to vector<8x32xf32>
    %220 = arith.mulf %219, %185 : vector<8x32xf32>
    %221 = vector.extract_strided_slice %216 {offsets = [0, 0], sizes = [8, 32], strides = [1, 1]} : vector<8x128xf32> to vector<8x32xf32>
    %222 = arith.mulf %221, %218 : vector<8x32xf32>
    %223 = arith.addf %220, %222 : vector<8x32xf32>
    %224 = vector.extract_strided_slice %216 {offsets = [0, 96], sizes = [8, 32], strides = [1, 1]} : vector<8x128xf32> to vector<8x32xf32>
    %225 = math.tanh %223 : vector<8x32xf32>
    %226 = arith.mulf %224, %225 : vector<8x32xf32>
    %c16_79 = arith.constant 16 : index
    %c0_80 = arith.constant 0 : index
    %227 = vector.load %arg18[%c16_79, %c0_80] : memref<64x128xf32, #tpu.memory_space<vmem>>, vector<8x128xf32>
    %cst_81 = arith.constant dense<0.000000e+00> : vector<8x128xf32>
    %228 = tpu.matmul %206, %14, %cst_81 {dimension_numbers = #tpu.dot_dimension_numbers<[1], [0], [0], [1], [0, 0, 1, 1], [], []>} : vector<8x32xf32>, vector<32x128xf32>, vector<8x128xf32> -> vector<8x128xf32>
    %229 = arith.addf %227, %228 : vector<8x128xf32>
    %230 = arith.negf %229 : vector<8x128xf32>
    %231 = math.exp %230 : vector<8x128xf32>
    %cst_82 = arith.constant 1.000000e+00 : f32
    %232 = vector.broadcast %cst_82 : f32 to vector<8x128xf32>
    %233 = arith.addf %232, %231 : vector<8x128xf32>
    %234 = arith.divf %232, %233 : vector<8x128xf32>
    %235 = vector.extract_strided_slice %229 {offsets = [0, 64], sizes = [8, 32], strides = [1, 1]} : vector<8x128xf32> to vector<8x32xf32>
    %236 = math.tanh %235 : vector<8x32xf32>
    %237 = vector.extract_strided_slice %234 {offsets = [0, 32], sizes = [8, 32], strides = [1, 1]} : vector<8x128xf32> to vector<8x32xf32>
    %238 = arith.mulf %237, %203 : vector<8x32xf32>
    %239 = vector.extract_strided_slice %234 {offsets = [0, 0], sizes = [8, 32], strides = [1, 1]} : vector<8x128xf32> to vector<8x32xf32>
    %240 = arith.mulf %239, %236 : vector<8x32xf32>
    %241 = arith.addf %238, %240 : vector<8x32xf32>
    %242 = vector.extract_strided_slice %234 {offsets = [0, 96], sizes = [8, 32], strides = [1, 1]} : vector<8x128xf32> to vector<8x32xf32>
    %243 = math.tanh %241 : vector<8x32xf32>
    %244 = arith.mulf %242, %243 : vector<8x32xf32>
    %c40_83 = arith.constant 40 : index
    %c0_84 = arith.constant 0 : index
    %245 = vector.load %arg19[%c40_83, %c0_84] : memref<64x32xf32, #tpu.memory_space<vmem>>, vector<8x32xf32>
    tpu.vector_store %arg19[%c40_83, %c0_84], %226 {strides = array<i32>} : memref<64x32xf32, #tpu.memory_space<vmem>>, vector<8x32xf32>,
    %c16_85 = arith.constant 16 : index
    %c0_86 = arith.constant 0 : index
    %246 = vector.load %arg20[%c16_85, %c0_86] : memref<64x32xf32, #tpu.memory_space<vmem>>, vector<8x32xf32>
    tpu.vector_store %arg20[%c16_85, %c0_86], %244 {strides = array<i32>} : memref<64x32xf32, #tpu.memory_space<vmem>>, vector<8x32xf32>,
    %c48_87 = arith.constant 48 : index
    %c0_88 = arith.constant 0 : index
    %247 = vector.load %arg17[%c48_87, %c0_88] : memref<64x128xf32, #tpu.memory_space<vmem>>, vector<8x128xf32>
    %cst_89 = arith.constant dense<0.000000e+00> : vector<8x128xf32>
    %248 = tpu.matmul %226, %13, %cst_89 {dimension_numbers = #tpu.dot_dimension_numbers<[1], [0], [0], [1], [0, 0, 1, 1], [], []>} : vector<8x32xf32>, vector<32x128xf32>, vector<8x128xf32> -> vector<8x128xf32>
    %249 = arith.addf %247, %248 : vector<8x128xf32>
    %250 = arith.negf %249 : vector<8x128xf32>
    %251 = math.exp %250 : vector<8x128xf32>
    %cst_90 = arith.constant 1.000000e+00 : f32
    %252 = vector.broadcast %cst_90 : f32 to vector<8x128xf32>
    %253 = arith.addf %252, %251 : vector<8x128xf32>
    %254 = arith.divf %252, %253 : vector<8x128xf32>
    %255 = vector.extract_strided_slice %249 {offsets = [0, 64], sizes = [8, 32], strides = [1, 1]} : vector<8x128xf32> to vector<8x32xf32>
    %256 = math.tanh %255 : vector<8x32xf32>
    %257 = vector.extract_strided_slice %254 {offsets = [0, 32], sizes = [8, 32], strides = [1, 1]} : vector<8x128xf32> to vector<8x32xf32>
    %258 = arith.mulf %257, %223 : vector<8x32xf32>
    %259 = vector.extract_strided_slice %254 {offsets = [0, 0], sizes = [8, 32], strides = [1, 1]} : vector<8x128xf32> to vector<8x32xf32>
    %260 = arith.mulf %259, %256 : vector<8x32xf32>
    %261 = arith.addf %258, %260 : vector<8x32xf32>
    %262 = vector.extract_strided_slice %254 {offsets = [0, 96], sizes = [8, 32], strides = [1, 1]} : vector<8x128xf32> to vector<8x32xf32>
    %263 = math.tanh %261 : vector<8x32xf32>
    %264 = arith.mulf %262, %263 : vector<8x32xf32>
    %c8_91 = arith.constant 8 : index
    %c0_92 = arith.constant 0 : index
    %265 = vector.load %arg18[%c8_91, %c0_92] : memref<64x128xf32, #tpu.memory_space<vmem>>, vector<8x128xf32>
    %cst_93 = arith.constant dense<0.000000e+00> : vector<8x128xf32>
    %266 = tpu.matmul %244, %14, %cst_93 {dimension_numbers = #tpu.dot_dimension_numbers<[1], [0], [0], [1], [0, 0, 1, 1], [], []>} : vector<8x32xf32>, vector<32x128xf32>, vector<8x128xf32> -> vector<8x128xf32>
    %267 = arith.addf %265, %266 : vector<8x128xf32>
    %268 = arith.negf %267 : vector<8x128xf32>
    %269 = math.exp %268 : vector<8x128xf32>
    %cst_94 = arith.constant 1.000000e+00 : f32
    %270 = vector.broadcast %cst_94 : f32 to vector<8x128xf32>
    %271 = arith.addf %270, %269 : vector<8x128xf32>
    %272 = arith.divf %270, %271 : vector<8x128xf32>
    %273 = vector.extract_strided_slice %267 {offsets = [0, 64], sizes = [8, 32], strides = [1, 1]} : vector<8x128xf32> to vector<8x32xf32>
    %274 = math.tanh %273 : vector<8x32xf32>
    %275 = vector.extract_strided_slice %272 {offsets = [0, 32], sizes = [8, 32], strides = [1, 1]} : vector<8x128xf32> to vector<8x32xf32>
    %276 = arith.mulf %275, %241 : vector<8x32xf32>
    %277 = vector.extract_strided_slice %272 {offsets = [0, 0], sizes = [8, 32], strides = [1, 1]} : vector<8x128xf32> to vector<8x32xf32>
    %278 = arith.mulf %277, %274 : vector<8x32xf32>
    %279 = arith.addf %276, %278 : vector<8x32xf32>
    %280 = vector.extract_strided_slice %272 {offsets = [0, 96], sizes = [8, 32], strides = [1, 1]} : vector<8x128xf32> to vector<8x32xf32>
    %281 = math.tanh %279 : vector<8x32xf32>
    %282 = arith.mulf %280, %281 : vector<8x32xf32>
    %c48_95 = arith.constant 48 : index
    %c0_96 = arith.constant 0 : index
    %283 = vector.load %arg19[%c48_95, %c0_96] : memref<64x32xf32, #tpu.memory_space<vmem>>, vector<8x32xf32>
    tpu.vector_store %arg19[%c48_95, %c0_96], %264 {strides = array<i32>} : memref<64x32xf32, #tpu.memory_space<vmem>>, vector<8x32xf32>,
    %c8_97 = arith.constant 8 : index
    %c0_98 = arith.constant 0 : index
    %284 = vector.load %arg20[%c8_97, %c0_98] : memref<64x32xf32, #tpu.memory_space<vmem>>, vector<8x32xf32>
    tpu.vector_store %arg20[%c8_97, %c0_98], %282 {strides = array<i32>} : memref<64x32xf32, #tpu.memory_space<vmem>>, vector<8x32xf32>,
    %c56_99 = arith.constant 56 : index
    %c0_100 = arith.constant 0 : index
    %285 = vector.load %arg17[%c56_99, %c0_100] : memref<64x128xf32, #tpu.memory_space<vmem>>, vector<8x128xf32>
    %cst_101 = arith.constant dense<0.000000e+00> : vector<8x128xf32>
    %286 = tpu.matmul %264, %13, %cst_101 {dimension_numbers = #tpu.dot_dimension_numbers<[1], [0], [0], [1], [0, 0, 1, 1], [], []>} : vector<8x32xf32>, vector<32x128xf32>, vector<8x128xf32> -> vector<8x128xf32>
    %287 = arith.addf %285, %286 : vector<8x128xf32>
    %288 = arith.negf %287 : vector<8x128xf32>
    %289 = math.exp %288 : vector<8x128xf32>
    %cst_102 = arith.constant 1.000000e+00 : f32
    %290 = vector.broadcast %cst_102 : f32 to vector<8x128xf32>
    %291 = arith.addf %290, %289 : vector<8x128xf32>
    %292 = arith.divf %290, %291 : vector<8x128xf32>
    %293 = vector.extract_strided_slice %287 {offsets = [0, 64], sizes = [8, 32], strides = [1, 1]} : vector<8x128xf32> to vector<8x32xf32>
    %294 = math.tanh %293 : vector<8x32xf32>
    %295 = vector.extract_strided_slice %292 {offsets = [0, 32], sizes = [8, 32], strides = [1, 1]} : vector<8x128xf32> to vector<8x32xf32>
    %296 = arith.mulf %295, %261 : vector<8x32xf32>
    %297 = vector.extract_strided_slice %292 {offsets = [0, 0], sizes = [8, 32], strides = [1, 1]} : vector<8x128xf32> to vector<8x32xf32>
    %298 = arith.mulf %297, %294 : vector<8x32xf32>
    %299 = arith.addf %296, %298 : vector<8x32xf32>
    %300 = vector.extract_strided_slice %292 {offsets = [0, 96], sizes = [8, 32], strides = [1, 1]} : vector<8x128xf32> to vector<8x32xf32>
    %301 = math.tanh %299 : vector<8x32xf32>
    %302 = arith.mulf %300, %301 : vector<8x32xf32>
    %c0_103 = arith.constant 0 : index
    %c0_104 = arith.constant 0 : index
    %303 = vector.load %arg18[%c0_103, %c0_104] : memref<64x128xf32, #tpu.memory_space<vmem>>, vector<8x128xf32>
    %cst_105 = arith.constant dense<0.000000e+00> : vector<8x128xf32>
    %304 = tpu.matmul %282, %14, %cst_105 {dimension_numbers = #tpu.dot_dimension_numbers<[1], [0], [0], [1], [0, 0, 1, 1], [], []>} : vector<8x32xf32>, vector<32x128xf32>, vector<8x128xf32> -> vector<8x128xf32>
    %305 = arith.addf %303, %304 : vector<8x128xf32>
    %306 = arith.negf %305 : vector<8x128xf32>
    %307 = math.exp %306 : vector<8x128xf32>
    %cst_106 = arith.constant 1.000000e+00 : f32
    %308 = vector.broadcast %cst_106 : f32 to vector<8x128xf32>
    %309 = arith.addf %308, %307 : vector<8x128xf32>
    %310 = arith.divf %308, %309 : vector<8x128xf32>
    %311 = vector.extract_strided_slice %305 {offsets = [0, 64], sizes = [8, 32], strides = [1, 1]} : vector<8x128xf32> to vector<8x32xf32>
    %312 = math.tanh %311 : vector<8x32xf32>
    %313 = vector.extract_strided_slice %310 {offsets = [0, 32], sizes = [8, 32], strides = [1, 1]} : vector<8x128xf32> to vector<8x32xf32>
    %314 = arith.mulf %313, %279 : vector<8x32xf32>
    %315 = vector.extract_strided_slice %310 {offsets = [0, 0], sizes = [8, 32], strides = [1, 1]} : vector<8x128xf32> to vector<8x32xf32>
    %316 = arith.mulf %315, %312 : vector<8x32xf32>
    %317 = arith.addf %314, %316 : vector<8x32xf32>
    %318 = vector.extract_strided_slice %310 {offsets = [0, 96], sizes = [8, 32], strides = [1, 1]} : vector<8x128xf32> to vector<8x32xf32>
    %319 = math.tanh %317 : vector<8x32xf32>
    %320 = arith.mulf %318, %319 : vector<8x32xf32>
    %c56_107 = arith.constant 56 : index
    %c0_108 = arith.constant 0 : index
    %321 = vector.load %arg19[%c56_107, %c0_108] : memref<64x32xf32, #tpu.memory_space<vmem>>, vector<8x32xf32>
    tpu.vector_store %arg19[%c56_107, %c0_108], %302 {strides = array<i32>} : memref<64x32xf32, #tpu.memory_space<vmem>>, vector<8x32xf32>,
    %c0_109 = arith.constant 0 : index
    %c0_110 = arith.constant 0 : index
    %322 = vector.load %arg20[%c0_109, %c0_110] : memref<64x32xf32, #tpu.memory_space<vmem>>, vector<8x32xf32>
    tpu.vector_store %arg20[%c0_109, %c0_110], %320 {strides = array<i32>} : memref<64x32xf32, #tpu.memory_space<vmem>>, vector<8x32xf32>,
    %c0_111 = arith.constant 0 : index
    %c0_112 = arith.constant 0 : index
    %323 = vector.load %arg19[%c0_111, %c0_112] : memref<64x32xf32, #tpu.memory_space<vmem>>, vector<64x32xf32>
    %c0_113 = arith.constant 0 : index
    %c0_114 = arith.constant 0 : index
    %324 = vector.load %arg20[%c0_113, %c0_114] : memref<64x32xf32, #tpu.memory_space<vmem>>, vector<64x32xf32>
    %c0_115 = arith.constant 0 : index
    %c0_116 = arith.constant 0 : index
    %325 = vector.load %arg7[%c0_115, %c0_116] : memref<64x128xf32, #tpu.memory_space<vmem>>, vector<64x128xf32>
    %c0_117 = arith.constant 0 : index
    %c0_118 = arith.constant 0 : index
    %326 = vector.load %arg10[%c0_117, %c0_118] : memref<64x128xf32, #tpu.memory_space<vmem>>, vector<64x128xf32>
    %327 = vector.extract_strided_slice %325 {offsets = [0, 0], sizes = [32, 128], strides = [1, 1]} : vector<64x128xf32> to vector<32x128xf32>
    %cst_119 = arith.constant dense<0.000000e+00> : vector<64x128xf32>
    %328 = tpu.matmul %323, %327, %cst_119 {dimension_numbers = #tpu.dot_dimension_numbers<[1], [0], [0], [1], [0, 0, 1, 1], [], []>} : vector<64x32xf32>, vector<32x128xf32>, vector<64x128xf32> -> vector<64x128xf32>
    %329 = vector.extract_strided_slice %325 {offsets = [32, 0], sizes = [32, 128], strides = [1, 1]} : vector<64x128xf32> to vector<32x128xf32>
    %cst_120 = arith.constant dense<0.000000e+00> : vector<64x128xf32>
    %330 = tpu.matmul %324, %329, %cst_120 {dimension_numbers = #tpu.dot_dimension_numbers<[1], [0], [0], [1], [0, 0, 1, 1], [], []>} : vector<64x32xf32>, vector<32x128xf32>, vector<64x128xf32> -> vector<64x128xf32>
    %331 = arith.addf %328, %330 : vector<64x128xf32>
    %332 = vector.extract_strided_slice %326 {offsets = [0, 0], sizes = [32, 128], strides = [1, 1]} : vector<64x128xf32> to vector<32x128xf32>
    %cst_121 = arith.constant dense<0.000000e+00> : vector<64x128xf32>
    %333 = tpu.matmul %323, %332, %cst_121 {dimension_numbers = #tpu.dot_dimension_numbers<[1], [0], [0], [1], [0, 0, 1, 1], [], []>} : vector<64x32xf32>, vector<32x128xf32>, vector<64x128xf32> -> vector<64x128xf32>
    %334 = vector.extract_strided_slice %326 {offsets = [32, 0], sizes = [32, 128], strides = [1, 1]} : vector<64x128xf32> to vector<32x128xf32>
    %cst_122 = arith.constant dense<0.000000e+00> : vector<64x128xf32>
    %335 = tpu.matmul %324, %334, %cst_122 {dimension_numbers = #tpu.dot_dimension_numbers<[1], [0], [0], [1], [0, 0, 1, 1], [], []>} : vector<64x32xf32>, vector<32x128xf32>, vector<64x128xf32> -> vector<64x128xf32>
    %336 = arith.addf %333, %335 : vector<64x128xf32>
    %c0_123 = arith.constant 0 : index
    %c0_124 = arith.constant 0 : index
    %337 = vector.load %arg9[%c0_123, %c0_124] : memref<1x128xf32, #tpu.memory_space<vmem>>, vector<1x128xf32>
    %338 = vector.broadcast %337 : vector<1x128xf32> to vector<64x128xf32>
    %339 = arith.addf %331, %338 : vector<64x128xf32>
    %c0_125 = arith.constant 0 : index
    %c0_126 = arith.constant 0 : index
    %340 = vector.load %arg17[%c0_125, %c0_126] : memref<64x128xf32, #tpu.memory_space<vmem>>, vector<64x128xf32>
    tpu.vector_store %arg17[%c0_125, %c0_126], %339 {strides = array<i32>} : memref<64x128xf32, #tpu.memory_space<vmem>>, vector<64x128xf32>,
    %c0_127 = arith.constant 0 : index
    %c0_128 = arith.constant 0 : index
    %341 = vector.load %arg12[%c0_127, %c0_128] : memref<1x128xf32, #tpu.memory_space<vmem>>, vector<1x128xf32>
    %342 = vector.broadcast %341 : vector<1x128xf32> to vector<64x128xf32>
    %343 = arith.addf %336, %342 : vector<64x128xf32>
    %c0_129 = arith.constant 0 : index
    %c0_130 = arith.constant 0 : index
    %344 = vector.load %arg18[%c0_129, %c0_130] : memref<64x128xf32, #tpu.memory_space<vmem>>, vector<64x128xf32>
    tpu.vector_store %arg18[%c0_129, %c0_130], %343 {strides = array<i32>} : memref<64x128xf32, #tpu.memory_space<vmem>>, vector<64x128xf32>,
    %c0_131 = arith.constant 0 : index
    %c0_132 = arith.constant 0 : index
    %345 = vector.load %arg8[%c0_131, %c0_132] : memref<32x128xf32, #tpu.memory_space<vmem>>, vector<32x128xf32>
    %c0_133 = arith.constant 0 : index
    %c0_134 = arith.constant 0 : index
    %346 = vector.load %arg11[%c0_133, %c0_134] : memref<32x128xf32, #tpu.memory_space<vmem>>, vector<32x128xf32>
    %cst_135 = arith.constant 0.000000e+00 : f32
    %347 = vector.broadcast %cst_135 : f32 to vector<8x32xf32>
    %cst_136 = arith.constant 0.000000e+00 : f32
    %348 = vector.broadcast %cst_136 : f32 to vector<8x32xf32>
    %cst_137 = arith.constant 0.000000e+00 : f32
    %349 = vector.broadcast %cst_137 : f32 to vector<8x32xf32>
    %cst_138 = arith.constant 0.000000e+00 : f32
    %350 = vector.broadcast %cst_138 : f32 to vector<8x32xf32>
    %c0_139 = arith.constant 0 : index
    %c0_140 = arith.constant 0 : index
    %351 = vector.load %arg17[%c0_139, %c0_140] : memref<64x128xf32, #tpu.memory_space<vmem>>, vector<8x128xf32>
    %cst_141 = arith.constant dense<0.000000e+00> : vector<8x128xf32>
    %352 = tpu.matmul %347, %345, %cst_141 {dimension_numbers = #tpu.dot_dimension_numbers<[1], [0], [0], [1], [0, 0, 1, 1], [], []>} : vector<8x32xf32>, vector<32x128xf32>, vector<8x128xf32> -> vector<8x128xf32>
    %353 = arith.addf %351, %352 : vector<8x128xf32>
    %354 = arith.negf %353 : vector<8x128xf32>
    %355 = math.exp %354 : vector<8x128xf32>
    %cst_142 = arith.constant 1.000000e+00 : f32
    %356 = vector.broadcast %cst_142 : f32 to vector<8x128xf32>
    %357 = arith.addf %356, %355 : vector<8x128xf32>
    %358 = arith.divf %356, %357 : vector<8x128xf32>
    %359 = vector.extract_strided_slice %353 {offsets = [0, 64], sizes = [8, 32], strides = [1, 1]} : vector<8x128xf32> to vector<8x32xf32>
    %360 = math.tanh %359 : vector<8x32xf32>
    %361 = vector.extract_strided_slice %358 {offsets = [0, 32], sizes = [8, 32], strides = [1, 1]} : vector<8x128xf32> to vector<8x32xf32>
    %362 = arith.mulf %361, %348 : vector<8x32xf32>
    %363 = vector.extract_strided_slice %358 {offsets = [0, 0], sizes = [8, 32], strides = [1, 1]} : vector<8x128xf32> to vector<8x32xf32>
    %364 = arith.mulf %363, %360 : vector<8x32xf32>
    %365 = arith.addf %362, %364 : vector<8x32xf32>
    %366 = vector.extract_strided_slice %358 {offsets = [0, 96], sizes = [8, 32], strides = [1, 1]} : vector<8x128xf32> to vector<8x32xf32>
    %367 = math.tanh %365 : vector<8x32xf32>
    %368 = arith.mulf %366, %367 : vector<8x32xf32>
    %c56_143 = arith.constant 56 : index
    %c0_144 = arith.constant 0 : index
    %369 = vector.load %arg18[%c56_143, %c0_144] : memref<64x128xf32, #tpu.memory_space<vmem>>, vector<8x128xf32>
    %cst_145 = arith.constant dense<0.000000e+00> : vector<8x128xf32>
    %370 = tpu.matmul %349, %346, %cst_145 {dimension_numbers = #tpu.dot_dimension_numbers<[1], [0], [0], [1], [0, 0, 1, 1], [], []>} : vector<8x32xf32>, vector<32x128xf32>, vector<8x128xf32> -> vector<8x128xf32>
    %371 = arith.addf %369, %370 : vector<8x128xf32>
    %372 = arith.negf %371 : vector<8x128xf32>
    %373 = math.exp %372 : vector<8x128xf32>
    %cst_146 = arith.constant 1.000000e+00 : f32
    %374 = vector.broadcast %cst_146 : f32 to vector<8x128xf32>
    %375 = arith.addf %374, %373 : vector<8x128xf32>
    %376 = arith.divf %374, %375 : vector<8x128xf32>
    %377 = vector.extract_strided_slice %371 {offsets = [0, 64], sizes = [8, 32], strides = [1, 1]} : vector<8x128xf32> to vector<8x32xf32>
    %378 = math.tanh %377 : vector<8x32xf32>
    %379 = vector.extract_strided_slice %376 {offsets = [0, 32], sizes = [8, 32], strides = [1, 1]} : vector<8x128xf32> to vector<8x32xf32>
    %380 = arith.mulf %379, %350 : vector<8x32xf32>
    %381 = vector.extract_strided_slice %376 {offsets = [0, 0], sizes = [8, 32], strides = [1, 1]} : vector<8x128xf32> to vector<8x32xf32>
    %382 = arith.mulf %381, %378 : vector<8x32xf32>
    %383 = arith.addf %380, %382 : vector<8x32xf32>
    %384 = vector.extract_strided_slice %376 {offsets = [0, 96], sizes = [8, 32], strides = [1, 1]} : vector<8x128xf32> to vector<8x32xf32>
    %385 = math.tanh %383 : vector<8x32xf32>
    %386 = arith.mulf %384, %385 : vector<8x32xf32>
    %c8_147 = arith.constant 8 : index
    %c0_148 = arith.constant 0 : index
    %387 = vector.load %arg17[%c8_147, %c0_148] : memref<64x128xf32, #tpu.memory_space<vmem>>, vector<8x128xf32>
    %cst_149 = arith.constant dense<0.000000e+00> : vector<8x128xf32>
    %388 = tpu.matmul %368, %345, %cst_149 {dimension_numbers = #tpu.dot_dimension_numbers<[1], [0], [0], [1], [0, 0, 1, 1], [], []>} : vector<8x32xf32>, vector<32x128xf32>, vector<8x128xf32> -> vector<8x128xf32>
    %389 = arith.addf %387, %388 : vector<8x128xf32>
    %390 = arith.negf %389 : vector<8x128xf32>
    %391 = math.exp %390 : vector<8x128xf32>
    %cst_150 = arith.constant 1.000000e+00 : f32
    %392 = vector.broadcast %cst_150 : f32 to vector<8x128xf32>
    %393 = arith.addf %392, %391 : vector<8x128xf32>
    %394 = arith.divf %392, %393 : vector<8x128xf32>
    %395 = vector.extract_strided_slice %389 {offsets = [0, 64], sizes = [8, 32], strides = [1, 1]} : vector<8x128xf32> to vector<8x32xf32>
    %396 = math.tanh %395 : vector<8x32xf32>
    %397 = vector.extract_strided_slice %394 {offsets = [0, 32], sizes = [8, 32], strides = [1, 1]} : vector<8x128xf32> to vector<8x32xf32>
    %398 = arith.mulf %397, %365 : vector<8x32xf32>
    %399 = vector.extract_strided_slice %394 {offsets = [0, 0], sizes = [8, 32], strides = [1, 1]} : vector<8x128xf32> to vector<8x32xf32>
    %400 = arith.mulf %399, %396 : vector<8x32xf32>
    %401 = arith.addf %398, %400 : vector<8x32xf32>
    %402 = vector.extract_strided_slice %394 {offsets = [0, 96], sizes = [8, 32], strides = [1, 1]} : vector<8x128xf32> to vector<8x32xf32>
    %403 = math.tanh %401 : vector<8x32xf32>
    %404 = arith.mulf %402, %403 : vector<8x32xf32>
    %c48_151 = arith.constant 48 : index
    %c0_152 = arith.constant 0 : index
    %405 = vector.load %arg18[%c48_151, %c0_152] : memref<64x128xf32, #tpu.memory_space<vmem>>, vector<8x128xf32>
    %cst_153 = arith.constant dense<0.000000e+00> : vector<8x128xf32>
    %406 = tpu.matmul %386, %346, %cst_153 {dimension_numbers = #tpu.dot_dimension_numbers<[1], [0], [0], [1], [0, 0, 1, 1], [], []>} : vector<8x32xf32>, vector<32x128xf32>, vector<8x128xf32> -> vector<8x128xf32>
    %407 = arith.addf %405, %406 : vector<8x128xf32>
    %408 = arith.negf %407 : vector<8x128xf32>
    %409 = math.exp %408 : vector<8x128xf32>
    %cst_154 = arith.constant 1.000000e+00 : f32
    %410 = vector.broadcast %cst_154 : f32 to vector<8x128xf32>
    %411 = arith.addf %410, %409 : vector<8x128xf32>
    %412 = arith.divf %410, %411 : vector<8x128xf32>
    %413 = vector.extract_strided_slice %407 {offsets = [0, 64], sizes = [8, 32], strides = [1, 1]} : vector<8x128xf32> to vector<8x32xf32>
    %414 = math.tanh %413 : vector<8x32xf32>
    %415 = vector.extract_strided_slice %412 {offsets = [0, 32], sizes = [8, 32], strides = [1, 1]} : vector<8x128xf32> to vector<8x32xf32>
    %416 = arith.mulf %415, %383 : vector<8x32xf32>
    %417 = vector.extract_strided_slice %412 {offsets = [0, 0], sizes = [8, 32], strides = [1, 1]} : vector<8x128xf32> to vector<8x32xf32>
    %418 = arith.mulf %417, %414 : vector<8x32xf32>
    %419 = arith.addf %416, %418 : vector<8x32xf32>
    %420 = vector.extract_strided_slice %412 {offsets = [0, 96], sizes = [8, 32], strides = [1, 1]} : vector<8x128xf32> to vector<8x32xf32>
    %421 = math.tanh %419 : vector<8x32xf32>
    %422 = arith.mulf %420, %421 : vector<8x32xf32>
    %c16_155 = arith.constant 16 : index
    %c0_156 = arith.constant 0 : index
    %423 = vector.load %arg17[%c16_155, %c0_156] : memref<64x128xf32, #tpu.memory_space<vmem>>, vector<8x128xf32>
    %cst_157 = arith.constant dense<0.000000e+00> : vector<8x128xf32>
    %424 = tpu.matmul %404, %345, %cst_157 {dimension_numbers = #tpu.dot_dimension_numbers<[1], [0], [0], [1], [0, 0, 1, 1], [], []>} : vector<8x32xf32>, vector<32x128xf32>, vector<8x128xf32> -> vector<8x128xf32>
    %425 = arith.addf %423, %424 : vector<8x128xf32>
    %426 = arith.negf %425 : vector<8x128xf32>
    %427 = math.exp %426 : vector<8x128xf32>
    %cst_158 = arith.constant 1.000000e+00 : f32
    %428 = vector.broadcast %cst_158 : f32 to vector<8x128xf32>
    %429 = arith.addf %428, %427 : vector<8x128xf32>
    %430 = arith.divf %428, %429 : vector<8x128xf32>
    %431 = vector.extract_strided_slice %425 {offsets = [0, 64], sizes = [8, 32], strides = [1, 1]} : vector<8x128xf32> to vector<8x32xf32>
    %432 = math.tanh %431 : vector<8x32xf32>
    %433 = vector.extract_strided_slice %430 {offsets = [0, 32], sizes = [8, 32], strides = [1, 1]} : vector<8x128xf32> to vector<8x32xf32>
    %434 = arith.mulf %433, %401 : vector<8x32xf32>
    %435 = vector.extract_strided_slice %430 {offsets = [0, 0], sizes = [8, 32], strides = [1, 1]} : vector<8x128xf32> to vector<8x32xf32>
    %436 = arith.mulf %435, %432 : vector<8x32xf32>
    %437 = arith.addf %434, %436 : vector<8x32xf32>
    %438 = vector.extract_strided_slice %430 {offsets = [0, 96], sizes = [8, 32], strides = [1, 1]} : vector<8x128xf32> to vector<8x32xf32>
    %439 = math.tanh %437 : vector<8x32xf32>
    %440 = arith.mulf %438, %439 : vector<8x32xf32>
    %c40_159 = arith.constant 40 : index
    %c0_160 = arith.constant 0 : index
    %441 = vector.load %arg18[%c40_159, %c0_160] : memref<64x128xf32, #tpu.memory_space<vmem>>, vector<8x128xf32>
    %cst_161 = arith.constant dense<0.000000e+00> : vector<8x128xf32>
    %442 = tpu.matmul %422, %346, %cst_161 {dimension_numbers = #tpu.dot_dimension_numbers<[1], [0], [0], [1], [0, 0, 1, 1], [], []>} : vector<8x32xf32>, vector<32x128xf32>, vector<8x128xf32> -> vector<8x128xf32>
    %443 = arith.addf %441, %442 : vector<8x128xf32>
    %444 = arith.negf %443 : vector<8x128xf32>
    %445 = math.exp %444 : vector<8x128xf32>
    %cst_162 = arith.constant 1.000000e+00 : f32
    %446 = vector.broadcast %cst_162 : f32 to vector<8x128xf32>
    %447 = arith.addf %446, %445 : vector<8x128xf32>
    %448 = arith.divf %446, %447 : vector<8x128xf32>
    %449 = vector.extract_strided_slice %443 {offsets = [0, 64], sizes = [8, 32], strides = [1, 1]} : vector<8x128xf32> to vector<8x32xf32>
    %450 = math.tanh %449 : vector<8x32xf32>
    %451 = vector.extract_strided_slice %448 {offsets = [0, 32], sizes = [8, 32], strides = [1, 1]} : vector<8x128xf32> to vector<8x32xf32>
    %452 = arith.mulf %451, %419 : vector<8x32xf32>
    %453 = vector.extract_strided_slice %448 {offsets = [0, 0], sizes = [8, 32], strides = [1, 1]} : vector<8x128xf32> to vector<8x32xf32>
    %454 = arith.mulf %453, %450 : vector<8x32xf32>
    %455 = arith.addf %452, %454 : vector<8x32xf32>
    %456 = vector.extract_strided_slice %448 {offsets = [0, 96], sizes = [8, 32], strides = [1, 1]} : vector<8x128xf32> to vector<8x32xf32>
    %457 = math.tanh %455 : vector<8x32xf32>
    %458 = arith.mulf %456, %457 : vector<8x32xf32>
    %c24_163 = arith.constant 24 : index
    %c0_164 = arith.constant 0 : index
    %459 = vector.load %arg17[%c24_163, %c0_164] : memref<64x128xf32, #tpu.memory_space<vmem>>, vector<8x128xf32>
    %cst_165 = arith.constant dense<0.000000e+00> : vector<8x128xf32>
    %460 = tpu.matmul %440, %345, %cst_165 {dimension_numbers = #tpu.dot_dimension_numbers<[1], [0], [0], [1], [0, 0, 1, 1], [], []>} : vector<8x32xf32>, vector<32x128xf32>, vector<8x128xf32> -> vector<8x128xf32>
    %461 = arith.addf %459, %460 : vector<8x128xf32>
    %462 = arith.negf %461 : vector<8x128xf32>
    %463 = math.exp %462 : vector<8x128xf32>
    %cst_166 = arith.constant 1.000000e+00 : f32
    %464 = vector.broadcast %cst_166 : f32 to vector<8x128xf32>
    %465 = arith.addf %464, %463 : vector<8x128xf32>
    %466 = arith.divf %464, %465 : vector<8x128xf32>
    %467 = vector.extract_strided_slice %461 {offsets = [0, 64], sizes = [8, 32], strides = [1, 1]} : vector<8x128xf32> to vector<8x32xf32>
    %468 = math.tanh %467 : vector<8x32xf32>
    %469 = vector.extract_strided_slice %466 {offsets = [0, 32], sizes = [8, 32], strides = [1, 1]} : vector<8x128xf32> to vector<8x32xf32>
    %470 = arith.mulf %469, %437 : vector<8x32xf32>
    %471 = vector.extract_strided_slice %466 {offsets = [0, 0], sizes = [8, 32], strides = [1, 1]} : vector<8x128xf32> to vector<8x32xf32>
    %472 = arith.mulf %471, %468 : vector<8x32xf32>
    %473 = arith.addf %470, %472 : vector<8x32xf32>
    %474 = vector.extract_strided_slice %466 {offsets = [0, 96], sizes = [8, 32], strides = [1, 1]} : vector<8x128xf32> to vector<8x32xf32>
    %475 = math.tanh %473 : vector<8x32xf32>
    %476 = arith.mulf %474, %475 : vector<8x32xf32>
    %c32_167 = arith.constant 32 : index
    %c0_168 = arith.constant 0 : index
    %477 = vector.load %arg18[%c32_167, %c0_168] : memref<64x128xf32, #tpu.memory_space<vmem>>, vector<8x128xf32>
    %cst_169 = arith.constant dense<0.000000e+00> : vector<8x128xf32>
    %478 = tpu.matmul %458, %346, %cst_169 {dimension_numbers = #tpu.dot_dimension_numbers<[1], [0], [0], [1], [0, 0, 1, 1], [], []>} : vector<8x32xf32>, vector<32x128xf32>, vector<8x128xf32> -> vector<8x128xf32>
    %479 = arith.addf %477, %478 : vector<8x128xf32>
    %480 = arith.negf %479 : vector<8x128xf32>
    %481 = math.exp %480 : vector<8x128xf32>
    %cst_170 = arith.constant 1.000000e+00 : f32
    %482 = vector.broadcast %cst_170 : f32 to vector<8x128xf32>
    %483 = arith.addf %482, %481 : vector<8x128xf32>
    %484 = arith.divf %482, %483 : vector<8x128xf32>
    %485 = vector.extract_strided_slice %479 {offsets = [0, 64], sizes = [8, 32], strides = [1, 1]} : vector<8x128xf32> to vector<8x32xf32>
    %486 = math.tanh %485 : vector<8x32xf32>
    %487 = vector.extract_strided_slice %484 {offsets = [0, 32], sizes = [8, 32], strides = [1, 1]} : vector<8x128xf32> to vector<8x32xf32>
    %488 = arith.mulf %487, %455 : vector<8x32xf32>
    %489 = vector.extract_strided_slice %484 {offsets = [0, 0], sizes = [8, 32], strides = [1, 1]} : vector<8x128xf32> to vector<8x32xf32>
    %490 = arith.mulf %489, %486 : vector<8x32xf32>
    %491 = arith.addf %488, %490 : vector<8x32xf32>
    %492 = vector.extract_strided_slice %484 {offsets = [0, 96], sizes = [8, 32], strides = [1, 1]} : vector<8x128xf32> to vector<8x32xf32>
    %493 = math.tanh %491 : vector<8x32xf32>
    %494 = arith.mulf %492, %493 : vector<8x32xf32>
    %c32_171 = arith.constant 32 : index
    %c0_172 = arith.constant 0 : index
    %495 = vector.load %arg17[%c32_171, %c0_172] : memref<64x128xf32, #tpu.memory_space<vmem>>, vector<8x128xf32>
    %cst_173 = arith.constant dense<0.000000e+00> : vector<8x128xf32>
    %496 = tpu.matmul %476, %345, %cst_173 {dimension_numbers = #tpu.dot_dimension_numbers<[1], [0], [0], [1], [0, 0, 1, 1], [], []>} : vector<8x32xf32>, vector<32x128xf32>, vector<8x128xf32> -> vector<8x128xf32>
    %497 = arith.addf %495, %496 : vector<8x128xf32>
    %498 = arith.negf %497 : vector<8x128xf32>
    %499 = math.exp %498 : vector<8x128xf32>
    %cst_174 = arith.constant 1.000000e+00 : f32
    %500 = vector.broadcast %cst_174 : f32 to vector<8x128xf32>
    %501 = arith.addf %500, %499 : vector<8x128xf32>
    %502 = arith.divf %500, %501 : vector<8x128xf32>
    %503 = vector.extract_strided_slice %497 {offsets = [0, 64], sizes = [8, 32], strides = [1, 1]} : vector<8x128xf32> to vector<8x32xf32>
    %504 = math.tanh %503 : vector<8x32xf32>
    %505 = vector.extract_strided_slice %502 {offsets = [0, 32], sizes = [8, 32], strides = [1, 1]} : vector<8x128xf32> to vector<8x32xf32>
    %506 = arith.mulf %505, %473 : vector<8x32xf32>
    %507 = vector.extract_strided_slice %502 {offsets = [0, 0], sizes = [8, 32], strides = [1, 1]} : vector<8x128xf32> to vector<8x32xf32>
    %508 = arith.mulf %507, %504 : vector<8x32xf32>
    %509 = arith.addf %506, %508 : vector<8x32xf32>
    %510 = vector.extract_strided_slice %502 {offsets = [0, 96], sizes = [8, 32], strides = [1, 1]} : vector<8x128xf32> to vector<8x32xf32>
    %511 = math.tanh %509 : vector<8x32xf32>
    %512 = arith.mulf %510, %511 : vector<8x32xf32>
    %c24_175 = arith.constant 24 : index
    %c0_176 = arith.constant 0 : index
    %513 = vector.load %arg18[%c24_175, %c0_176] : memref<64x128xf32, #tpu.memory_space<vmem>>, vector<8x128xf32>
    %cst_177 = arith.constant dense<0.000000e+00> : vector<8x128xf32>
    %514 = tpu.matmul %494, %346, %cst_177 {dimension_numbers = #tpu.dot_dimension_numbers<[1], [0], [0], [1], [0, 0, 1, 1], [], []>} : vector<8x32xf32>, vector<32x128xf32>, vector<8x128xf32> -> vector<8x128xf32>
    %515 = arith.addf %513, %514 : vector<8x128xf32>
    %516 = arith.negf %515 : vector<8x128xf32>
    %517 = math.exp %516 : vector<8x128xf32>
    %cst_178 = arith.constant 1.000000e+00 : f32
    %518 = vector.broadcast %cst_178 : f32 to vector<8x128xf32>
    %519 = arith.addf %518, %517 : vector<8x128xf32>
    %520 = arith.divf %518, %519 : vector<8x128xf32>
    %521 = vector.extract_strided_slice %515 {offsets = [0, 64], sizes = [8, 32], strides = [1, 1]} : vector<8x128xf32> to vector<8x32xf32>
    %522 = math.tanh %521 : vector<8x32xf32>
    %523 = vector.extract_strided_slice %520 {offsets = [0, 32], sizes = [8, 32], strides = [1, 1]} : vector<8x128xf32> to vector<8x32xf32>
    %524 = arith.mulf %523, %491 : vector<8x32xf32>
    %525 = vector.extract_strided_slice %520 {offsets = [0, 0], sizes = [8, 32], strides = [1, 1]} : vector<8x128xf32> to vector<8x32xf32>
    %526 = arith.mulf %525, %522 : vector<8x32xf32>
    %527 = arith.addf %524, %526 : vector<8x32xf32>
    %528 = vector.extract_strided_slice %520 {offsets = [0, 96], sizes = [8, 32], strides = [1, 1]} : vector<8x128xf32> to vector<8x32xf32>
    %529 = math.tanh %527 : vector<8x32xf32>
    %530 = arith.mulf %528, %529 : vector<8x32xf32>
    %c40_179 = arith.constant 40 : index
    %c0_180 = arith.constant 0 : index
    %531 = vector.load %arg17[%c40_179, %c0_180] : memref<64x128xf32, #tpu.memory_space<vmem>>, vector<8x128xf32>
    %cst_181 = arith.constant dense<0.000000e+00> : vector<8x128xf32>
    %532 = tpu.matmul %512, %345, %cst_181 {dimension_numbers = #tpu.dot_dimension_numbers<[1], [0], [0], [1], [0, 0, 1, 1], [], []>} : vector<8x32xf32>, vector<32x128xf32>, vector<8x128xf32> -> vector<8x128xf32>
    %533 = arith.addf %531, %532 : vector<8x128xf32>
    %534 = arith.negf %533 : vector<8x128xf32>
    %535 = math.exp %534 : vector<8x128xf32>
    %cst_182 = arith.constant 1.000000e+00 : f32
    %536 = vector.broadcast %cst_182 : f32 to vector<8x128xf32>
    %537 = arith.addf %536, %535 : vector<8x128xf32>
    %538 = arith.divf %536, %537 : vector<8x128xf32>
    %539 = vector.extract_strided_slice %533 {offsets = [0, 64], sizes = [8, 32], strides = [1, 1]} : vector<8x128xf32> to vector<8x32xf32>
    %540 = math.tanh %539 : vector<8x32xf32>
    %541 = vector.extract_strided_slice %538 {offsets = [0, 32], sizes = [8, 32], strides = [1, 1]} : vector<8x128xf32> to vector<8x32xf32>
    %542 = arith.mulf %541, %509 : vector<8x32xf32>
    %543 = vector.extract_strided_slice %538 {offsets = [0, 0], sizes = [8, 32], strides = [1, 1]} : vector<8x128xf32> to vector<8x32xf32>
    %544 = arith.mulf %543, %540 : vector<8x32xf32>
    %545 = arith.addf %542, %544 : vector<8x32xf32>
    %546 = vector.extract_strided_slice %538 {offsets = [0, 96], sizes = [8, 32], strides = [1, 1]} : vector<8x128xf32> to vector<8x32xf32>
    %547 = math.tanh %545 : vector<8x32xf32>
    %548 = arith.mulf %546, %547 : vector<8x32xf32>
    %c16_183 = arith.constant 16 : index
    %c0_184 = arith.constant 0 : index
    %549 = vector.load %arg18[%c16_183, %c0_184] : memref<64x128xf32, #tpu.memory_space<vmem>>, vector<8x128xf32>
    %cst_185 = arith.constant dense<0.000000e+00> : vector<8x128xf32>
    %550 = tpu.matmul %530, %346, %cst_185 {dimension_numbers = #tpu.dot_dimension_numbers<[1], [0], [0], [1], [0, 0, 1, 1], [], []>} : vector<8x32xf32>, vector<32x128xf32>, vector<8x128xf32> -> vector<8x128xf32>
    %551 = arith.addf %549, %550 : vector<8x128xf32>
    %552 = arith.negf %551 : vector<8x128xf32>
    %553 = math.exp %552 : vector<8x128xf32>
    %cst_186 = arith.constant 1.000000e+00 : f32
    %554 = vector.broadcast %cst_186 : f32 to vector<8x128xf32>
    %555 = arith.addf %554, %553 : vector<8x128xf32>
    %556 = arith.divf %554, %555 : vector<8x128xf32>
    %557 = vector.extract_strided_slice %551 {offsets = [0, 64], sizes = [8, 32], strides = [1, 1]} : vector<8x128xf32> to vector<8x32xf32>
    %558 = math.tanh %557 : vector<8x32xf32>
    %559 = vector.extract_strided_slice %556 {offsets = [0, 32], sizes = [8, 32], strides = [1, 1]} : vector<8x128xf32> to vector<8x32xf32>
    %560 = arith.mulf %559, %527 : vector<8x32xf32>
    %561 = vector.extract_strided_slice %556 {offsets = [0, 0], sizes = [8, 32], strides = [1, 1]} : vector<8x128xf32> to vector<8x32xf32>
    %562 = arith.mulf %561, %558 : vector<8x32xf32>
    %563 = arith.addf %560, %562 : vector<8x32xf32>
    %564 = vector.extract_strided_slice %556 {offsets = [0, 96], sizes = [8, 32], strides = [1, 1]} : vector<8x128xf32> to vector<8x32xf32>
    %565 = math.tanh %563 : vector<8x32xf32>
    %566 = arith.mulf %564, %565 : vector<8x32xf32>
    %c48_187 = arith.constant 48 : index
    %c0_188 = arith.constant 0 : index
    %567 = vector.load %arg17[%c48_187, %c0_188] : memref<64x128xf32, #tpu.memory_space<vmem>>, vector<8x128xf32>
    %cst_189 = arith.constant dense<0.000000e+00> : vector<8x128xf32>
    %568 = tpu.matmul %548, %345, %cst_189 {dimension_numbers = #tpu.dot_dimension_numbers<[1], [0], [0], [1], [0, 0, 1, 1], [], []>} : vector<8x32xf32>, vector<32x128xf32>, vector<8x128xf32> -> vector<8x128xf32>
    %569 = arith.addf %567, %568 : vector<8x128xf32>
    %570 = arith.negf %569 : vector<8x128xf32>
    %571 = math.exp %570 : vector<8x128xf32>
    %cst_190 = arith.constant 1.000000e+00 : f32
    %572 = vector.broadcast %cst_190 : f32 to vector<8x128xf32>
    %573 = arith.addf %572, %571 : vector<8x128xf32>
    %574 = arith.divf %572, %573 : vector<8x128xf32>
    %575 = vector.extract_strided_slice %569 {offsets = [0, 64], sizes = [8, 32], strides = [1, 1]} : vector<8x128xf32> to vector<8x32xf32>
    %576 = math.tanh %575 : vector<8x32xf32>
    %577 = vector.extract_strided_slice %574 {offsets = [0, 32], sizes = [8, 32], strides = [1, 1]} : vector<8x128xf32> to vector<8x32xf32>
    %578 = arith.mulf %577, %545 : vector<8x32xf32>
    %579 = vector.extract_strided_slice %574 {offsets = [0, 0], sizes = [8, 32], strides = [1, 1]} : vector<8x128xf32> to vector<8x32xf32>
    %580 = arith.mulf %579, %576 : vector<8x32xf32>
    %581 = arith.addf %578, %580 : vector<8x32xf32>
    %582 = vector.extract_strided_slice %574 {offsets = [0, 96], sizes = [8, 32], strides = [1, 1]} : vector<8x128xf32> to vector<8x32xf32>
    %583 = math.tanh %581 : vector<8x32xf32>
    %584 = arith.mulf %582, %583 : vector<8x32xf32>
    %c8_191 = arith.constant 8 : index
    %c0_192 = arith.constant 0 : index
    %585 = vector.load %arg18[%c8_191, %c0_192] : memref<64x128xf32, #tpu.memory_space<vmem>>, vector<8x128xf32>
    %cst_193 = arith.constant dense<0.000000e+00> : vector<8x128xf32>
    %586 = tpu.matmul %566, %346, %cst_193 {dimension_numbers = #tpu.dot_dimension_numbers<[1], [0], [0], [1], [0, 0, 1, 1], [], []>} : vector<8x32xf32>, vector<32x128xf32>, vector<8x128xf32> -> vector<8x128xf32>
    %587 = arith.addf %585, %586 : vector<8x128xf32>
    %588 = arith.negf %587 : vector<8x128xf32>
    %589 = math.exp %588 : vector<8x128xf32>
    %cst_194 = arith.constant 1.000000e+00 : f32
    %590 = vector.broadcast %cst_194 : f32 to vector<8x128xf32>
    %591 = arith.addf %590, %589 : vector<8x128xf32>
    %592 = arith.divf %590, %591 : vector<8x128xf32>
    %593 = vector.extract_strided_slice %587 {offsets = [0, 64], sizes = [8, 32], strides = [1, 1]} : vector<8x128xf32> to vector<8x32xf32>
    %594 = math.tanh %593 : vector<8x32xf32>
    %595 = vector.extract_strided_slice %592 {offsets = [0, 32], sizes = [8, 32], strides = [1, 1]} : vector<8x128xf32> to vector<8x32xf32>
    %596 = arith.mulf %595, %563 : vector<8x32xf32>
    %597 = vector.extract_strided_slice %592 {offsets = [0, 0], sizes = [8, 32], strides = [1, 1]} : vector<8x128xf32> to vector<8x32xf32>
    %598 = arith.mulf %597, %594 : vector<8x32xf32>
    %599 = arith.addf %596, %598 : vector<8x32xf32>
    %600 = vector.extract_strided_slice %592 {offsets = [0, 96], sizes = [8, 32], strides = [1, 1]} : vector<8x128xf32> to vector<8x32xf32>
    %601 = math.tanh %599 : vector<8x32xf32>
    %602 = arith.mulf %600, %601 : vector<8x32xf32>
    %c56_195 = arith.constant 56 : index
    %c0_196 = arith.constant 0 : index
    %603 = vector.load %arg17[%c56_195, %c0_196] : memref<64x128xf32, #tpu.memory_space<vmem>>, vector<8x128xf32>
    %cst_197 = arith.constant dense<0.000000e+00> : vector<8x128xf32>
    %604 = tpu.matmul %584, %345, %cst_197 {dimension_numbers = #tpu.dot_dimension_numbers<[1], [0], [0], [1], [0, 0, 1, 1], [], []>} : vector<8x32xf32>, vector<32x128xf32>, vector<8x128xf32> -> vector<8x128xf32>
    %605 = arith.addf %603, %604 : vector<8x128xf32>
    %606 = arith.negf %605 : vector<8x128xf32>
    %607 = math.exp %606 : vector<8x128xf32>
    %cst_198 = arith.constant 1.000000e+00 : f32
    %608 = vector.broadcast %cst_198 : f32 to vector<8x128xf32>
    %609 = arith.addf %608, %607 : vector<8x128xf32>
    %610 = arith.divf %608, %609 : vector<8x128xf32>
    %611 = vector.extract_strided_slice %605 {offsets = [0, 64], sizes = [8, 32], strides = [1, 1]} : vector<8x128xf32> to vector<8x32xf32>
    %612 = math.tanh %611 : vector<8x32xf32>
    %613 = vector.extract_strided_slice %610 {offsets = [0, 32], sizes = [8, 32], strides = [1, 1]} : vector<8x128xf32> to vector<8x32xf32>
    %614 = arith.mulf %613, %581 : vector<8x32xf32>
    %615 = vector.extract_strided_slice %610 {offsets = [0, 0], sizes = [8, 32], strides = [1, 1]} : vector<8x128xf32> to vector<8x32xf32>
    %616 = arith.mulf %615, %612 : vector<8x32xf32>
    %617 = arith.addf %614, %616 : vector<8x32xf32>
    %618 = vector.extract_strided_slice %610 {offsets = [0, 96], sizes = [8, 32], strides = [1, 1]} : vector<8x128xf32> to vector<8x32xf32>
    %619 = math.tanh %617 : vector<8x32xf32>
    %620 = arith.mulf %618, %619 : vector<8x32xf32>
    %c0_199 = arith.constant 0 : index
    %c0_200 = arith.constant 0 : index
    %621 = vector.load %arg18[%c0_199, %c0_200] : memref<64x128xf32, #tpu.memory_space<vmem>>, vector<8x128xf32>
    %cst_201 = arith.constant dense<0.000000e+00> : vector<8x128xf32>
    %622 = tpu.matmul %602, %346, %cst_201 {dimension_numbers = #tpu.dot_dimension_numbers<[1], [0], [0], [1], [0, 0, 1, 1], [], []>} : vector<8x32xf32>, vector<32x128xf32>, vector<8x128xf32> -> vector<8x128xf32>
    %623 = arith.addf %621, %622 : vector<8x128xf32>
    %624 = arith.negf %623 : vector<8x128xf32>
    %625 = math.exp %624 : vector<8x128xf32>
    %cst_202 = arith.constant 1.000000e+00 : f32
    %626 = vector.broadcast %cst_202 : f32 to vector<8x128xf32>
    %627 = arith.addf %626, %625 : vector<8x128xf32>
    %628 = arith.divf %626, %627 : vector<8x128xf32>
    %629 = vector.extract_strided_slice %623 {offsets = [0, 64], sizes = [8, 32], strides = [1, 1]} : vector<8x128xf32> to vector<8x32xf32>
    %630 = math.tanh %629 : vector<8x32xf32>
    %631 = vector.extract_strided_slice %628 {offsets = [0, 32], sizes = [8, 32], strides = [1, 1]} : vector<8x128xf32> to vector<8x32xf32>
    %632 = arith.mulf %631, %599 : vector<8x32xf32>
    %633 = vector.extract_strided_slice %628 {offsets = [0, 0], sizes = [8, 32], strides = [1, 1]} : vector<8x128xf32> to vector<8x32xf32>
    %634 = arith.mulf %633, %630 : vector<8x32xf32>
    %635 = arith.addf %632, %634 : vector<8x32xf32>
    %636 = vector.extract_strided_slice %628 {offsets = [0, 96], sizes = [8, 32], strides = [1, 1]} : vector<8x128xf32> to vector<8x32xf32>
    %637 = math.tanh %635 : vector<8x32xf32>
    %638 = arith.mulf %636, %637 : vector<8x32xf32>
    %c0_203 = arith.constant 0 : index
    %c0_204 = arith.constant 0 : index
    %639 = vector.load %arg13[%c0_203, %c0_204] : memref<1x64xf32, #tpu.memory_space<vmem>>, vector<1x64xf32>
    %640 = vector.extract_strided_slice %639 {offsets = [0, 0], sizes = [1, 32], strides = [1, 1]} : vector<1x64xf32> to vector<1x32xf32>
    %641 = vector.extract_strided_slice %639 {offsets = [0, 32], sizes = [1, 32], strides = [1, 1]} : vector<1x64xf32> to vector<1x32xf32>
    %642 = math.tanh %368 : vector<8x32xf32>
    %643 = vector.broadcast %640 : vector<1x32xf32> to vector<8x32xf32>
    %644 = arith.mulf %642, %643 : vector<8x32xf32>
    %645 = math.tanh %638 : vector<8x32xf32>
    %646 = vector.broadcast %641 : vector<1x32xf32> to vector<8x32xf32>
    %647 = arith.mulf %645, %646 : vector<8x32xf32>
    %648 = arith.addf %644, %647 : vector<8x32xf32>
    %cst_205 = arith.constant dense<0.000000e+00> : vector<8xf32>
    %649 = vector.multi_reduction <add>, %648, %cst_205 [1] : vector<8x32xf32> to vector<8xf32>
    %650 = vector.shape_cast %649 : vector<8xf32> to vector<8x1xf32>
    %651 = math.tanh %404 : vector<8x32xf32>
    %652 = vector.broadcast %640 : vector<1x32xf32> to vector<8x32xf32>
    %653 = arith.mulf %651, %652 : vector<8x32xf32>
    %654 = math.tanh %602 : vector<8x32xf32>
    %655 = vector.broadcast %641 : vector<1x32xf32> to vector<8x32xf32>
    %656 = arith.mulf %654, %655 : vector<8x32xf32>
    %657 = arith.addf %653, %656 : vector<8x32xf32>
    %cst_206 = arith.constant dense<0.000000e+00> : vector<8xf32>
    %658 = vector.multi_reduction <add>, %657, %cst_206 [1] : vector<8x32xf32> to vector<8xf32>
    %659 = vector.shape_cast %658 : vector<8xf32> to vector<8x1xf32>
    %660 = math.tanh %440 : vector<8x32xf32>
    %661 = vector.broadcast %640 : vector<1x32xf32> to vector<8x32xf32>
    %662 = arith.mulf %660, %661 : vector<8x32xf32>
    %663 = math.tanh %566 : vector<8x32xf32>
    %664 = vector.broadcast %641 : vector<1x32xf32> to vector<8x32xf32>
    %665 = arith.mulf %663, %664 : vector<8x32xf32>
    %666 = arith.addf %662, %665 : vector<8x32xf32>
    %cst_207 = arith.constant dense<0.000000e+00> : vector<8xf32>
    %667 = vector.multi_reduction <add>, %666, %cst_207 [1] : vector<8x32xf32> to vector<8xf32>
    %668 = vector.shape_cast %667 : vector<8xf32> to vector<8x1xf32>
    %669 = math.tanh %476 : vector<8x32xf32>
    %670 = vector.broadcast %640 : vector<1x32xf32> to vector<8x32xf32>
    %671 = arith.mulf %669, %670 : vector<8x32xf32>
    %672 = math.tanh %530 : vector<8x32xf32>
    %673 = vector.broadcast %641 : vector<1x32xf32> to vector<8x32xf32>
    %674 = arith.mulf %672, %673 : vector<8x32xf32>
    %675 = arith.addf %671, %674 : vector<8x32xf32>
    %cst_208 = arith.constant dense<0.000000e+00> : vector<8xf32>
    %676 = vector.multi_reduction <add>, %675, %cst_208 [1] : vector<8x32xf32> to vector<8xf32>
    %677 = vector.shape_cast %676 : vector<8xf32> to vector<8x1xf32>
    %678 = math.tanh %512 : vector<8x32xf32>
    %679 = vector.broadcast %640 : vector<1x32xf32> to vector<8x32xf32>
    %680 = arith.mulf %678, %679 : vector<8x32xf32>
    %681 = math.tanh %494 : vector<8x32xf32>
    %682 = vector.broadcast %641 : vector<1x32xf32> to vector<8x32xf32>
    %683 = arith.mulf %681, %682 : vector<8x32xf32>
    %684 = arith.addf %680, %683 : vector<8x32xf32>
    %cst_209 = arith.constant dense<0.000000e+00> : vector<8xf32>
    %685 = vector.multi_reduction <add>, %684, %cst_209 [1] : vector<8x32xf32> to vector<8xf32>
    %686 = vector.shape_cast %685 : vector<8xf32> to vector<8x1xf32>
    %687 = math.tanh %548 : vector<8x32xf32>
    %688 = vector.broadcast %640 : vector<1x32xf32> to vector<8x32xf32>
    %689 = arith.mulf %687, %688 : vector<8x32xf32>
    %690 = math.tanh %458 : vector<8x32xf32>
    %691 = vector.broadcast %641 : vector<1x32xf32> to vector<8x32xf32>
    %692 = arith.mulf %690, %691 : vector<8x32xf32>
    %693 = arith.addf %689, %692 : vector<8x32xf32>
    %cst_210 = arith.constant dense<0.000000e+00> : vector<8xf32>
    %694 = vector.multi_reduction <add>, %693, %cst_210 [1] : vector<8x32xf32> to vector<8xf32>
    %695 = vector.shape_cast %694 : vector<8xf32> to vector<8x1xf32>
    %696 = math.tanh %584 : vector<8x32xf32>
    %697 = vector.broadcast %640 : vector<1x32xf32> to vector<8x32xf32>
    %698 = arith.mulf %696, %697 : vector<8x32xf32>
    %699 = math.tanh %422 : vector<8x32xf32>
    %700 = vector.broadcast %641 : vector<1x32xf32> to vector<8x32xf32>
    %701 = arith.mulf %699, %700 : vector<8x32xf32>
    %702 = arith.addf %698, %701 : vector<8x32xf32>
    %cst_211 = arith.constant dense<0.000000e+00> : vector<8xf32>
    %703 = vector.multi_reduction <add>, %702, %cst_211 [1] : vector<8x32xf32> to vector<8xf32>
    %704 = vector.shape_cast %703 : vector<8xf32> to vector<8x1xf32>
    %705 = math.tanh %620 : vector<8x32xf32>
    %706 = vector.broadcast %640 : vector<1x32xf32> to vector<8x32xf32>
    %707 = arith.mulf %705, %706 : vector<8x32xf32>
    %708 = math.tanh %386 : vector<8x32xf32>
    %709 = vector.broadcast %641 : vector<1x32xf32> to vector<8x32xf32>
    %710 = arith.mulf %708, %709 : vector<8x32xf32>
    %711 = arith.addf %707, %710 : vector<8x32xf32>
    %cst_212 = arith.constant dense<0.000000e+00> : vector<8xf32>
    %712 = vector.multi_reduction <add>, %711, %cst_212 [1] : vector<8x32xf32> to vector<8xf32>
    %713 = vector.shape_cast %712 : vector<8xf32> to vector<8x1xf32>
    %714 = arith.maximumf %650, %659 : vector<8x1xf32>
    %715 = arith.maximumf %714, %668 : vector<8x1xf32>
    %716 = arith.maximumf %715, %677 : vector<8x1xf32>
    %717 = arith.maximumf %716, %686 : vector<8x1xf32>
    %718 = arith.maximumf %717, %695 : vector<8x1xf32>
    %719 = arith.maximumf %718, %704 : vector<8x1xf32>
    %720 = arith.maximumf %719, %713 : vector<8x1xf32>
    %721 = arith.subf %650, %720 : vector<8x1xf32>
    %722 = math.exp %721 : vector<8x1xf32>
    %723 = arith.subf %659, %720 : vector<8x1xf32>
    %724 = math.exp %723 : vector<8x1xf32>
    %725 = arith.subf %668, %720 : vector<8x1xf32>
    %726 = math.exp %725 : vector<8x1xf32>
    %727 = arith.subf %677, %720 : vector<8x1xf32>
    %728 = math.exp %727 : vector<8x1xf32>
    %729 = arith.subf %686, %720 : vector<8x1xf32>
    %730 = math.exp %729 : vector<8x1xf32>
    %731 = arith.subf %695, %720 : vector<8x1xf32>
    %732 = math.exp %731 : vector<8x1xf32>
    %733 = arith.subf %704, %720 : vector<8x1xf32>
    %734 = math.exp %733 : vector<8x1xf32>
    %735 = arith.subf %713, %720 : vector<8x1xf32>
    %736 = math.exp %735 : vector<8x1xf32>
    %737 = arith.addf %722, %724 : vector<8x1xf32>
    %738 = arith.addf %737, %726 : vector<8x1xf32>
    %739 = arith.addf %738, %728 : vector<8x1xf32>
    %740 = arith.addf %739, %730 : vector<8x1xf32>
    %741 = arith.addf %740, %732 : vector<8x1xf32>
    %742 = arith.addf %741, %734 : vector<8x1xf32>
    %743 = arith.addf %742, %736 : vector<8x1xf32>
    %744 = tpu.reciprocal %743 {approx = true} : vector<8x1xf32> -> vector<8x1xf32>
    %cst_213 = arith.constant 0.000000e+00 : f32
    %745 = vector.broadcast %cst_213 : f32 to vector<8x32xf32>
    %cst_214 = arith.constant 0.000000e+00 : f32
    %746 = vector.broadcast %cst_214 : f32 to vector<8x32xf32>
    %747 = arith.mulf %722, %744 : vector<8x1xf32>
    %748 = vector.broadcast %747 : vector<8x1xf32> to vector<8x32xf32>
    %749 = arith.mulf %748, %368 : vector<8x32xf32>
    %750 = arith.addf %745, %749 : vector<8x32xf32>
    %751 = vector.broadcast %747 : vector<8x1xf32> to vector<8x32xf32>
    %752 = arith.mulf %751, %638 : vector<8x32xf32>
    %753 = arith.addf %746, %752 : vector<8x32xf32>
    %754 = arith.mulf %724, %744 : vector<8x1xf32>
    %755 = vector.broadcast %754 : vector<8x1xf32> to vector<8x32xf32>
    %756 = arith.mulf %755, %404 : vector<8x32xf32>
    %757 = arith.addf %750, %756 : vector<8x32xf32>
    %758 = vector.broadcast %754 : vector<8x1xf32> to vector<8x32xf32>
    %759 = arith.mulf %758, %602 : vector<8x32xf32>
    %760 = arith.addf %753, %759 : vector<8x32xf32>
    %761 = arith.mulf %726, %744 : vector<8x1xf32>
    %762 = vector.broadcast %761 : vector<8x1xf32> to vector<8x32xf32>
    %763 = arith.mulf %762, %440 : vector<8x32xf32>
    %764 = arith.addf %757, %763 : vector<8x32xf32>
    %765 = vector.broadcast %761 : vector<8x1xf32> to vector<8x32xf32>
    %766 = arith.mulf %765, %566 : vector<8x32xf32>
    %767 = arith.addf %760, %766 : vector<8x32xf32>
    %768 = arith.mulf %728, %744 : vector<8x1xf32>
    %769 = vector.broadcast %768 : vector<8x1xf32> to vector<8x32xf32>
    %770 = arith.mulf %769, %476 : vector<8x32xf32>
    %771 = arith.addf %764, %770 : vector<8x32xf32>
    %772 = vector.broadcast %768 : vector<8x1xf32> to vector<8x32xf32>
    %773 = arith.mulf %772, %530 : vector<8x32xf32>
    %774 = arith.addf %767, %773 : vector<8x32xf32>
    %775 = arith.mulf %730, %744 : vector<8x1xf32>
    %776 = vector.broadcast %775 : vector<8x1xf32> to vector<8x32xf32>
    %777 = arith.mulf %776, %512 : vector<8x32xf32>
    %778 = arith.addf %771, %777 : vector<8x32xf32>
    %779 = vector.broadcast %775 : vector<8x1xf32> to vector<8x32xf32>
    %780 = arith.mulf %779, %494 : vector<8x32xf32>
    %781 = arith.addf %774, %780 : vector<8x32xf32>
    %782 = arith.mulf %732, %744 : vector<8x1xf32>
    %783 = vector.broadcast %782 : vector<8x1xf32> to vector<8x32xf32>
    %784 = arith.mulf %783, %548 : vector<8x32xf32>
    %785 = arith.addf %778, %784 : vector<8x32xf32>
    %786 = vector.broadcast %782 : vector<8x1xf32> to vector<8x32xf32>
    %787 = arith.mulf %786, %458 : vector<8x32xf32>
    %788 = arith.addf %781, %787 : vector<8x32xf32>
    %789 = arith.mulf %734, %744 : vector<8x1xf32>
    %790 = vector.broadcast %789 : vector<8x1xf32> to vector<8x32xf32>
    %791 = arith.mulf %790, %584 : vector<8x32xf32>
    %792 = arith.addf %785, %791 : vector<8x32xf32>
    %793 = vector.broadcast %789 : vector<8x1xf32> to vector<8x32xf32>
    %794 = arith.mulf %793, %422 : vector<8x32xf32>
    %795 = arith.addf %788, %794 : vector<8x32xf32>
    %796 = arith.mulf %736, %744 : vector<8x1xf32>
    %797 = vector.broadcast %796 : vector<8x1xf32> to vector<8x32xf32>
    %798 = arith.mulf %797, %620 : vector<8x32xf32>
    %799 = arith.addf %792, %798 : vector<8x32xf32>
    %800 = vector.broadcast %796 : vector<8x1xf32> to vector<8x32xf32>
    %801 = arith.mulf %800, %386 : vector<8x32xf32>
    %802 = arith.addf %795, %801 : vector<8x32xf32>
    %cst_215 = arith.constant 0.000000e+00 : f32
    %803 = vector.broadcast %cst_215 : f32 to vector<8x32xf32>
    %804 = arith.maximumf %799, %803 : vector<8x32xf32>
    %cst_216 = arith.constant 0.000000e+00 : f32
    %805 = vector.broadcast %cst_216 : f32 to vector<8x32xf32>
    %806 = arith.maximumf %802, %805 : vector<8x32xf32>
    %c0_217 = arith.constant 0 : index
    %c0_218 = arith.constant 0 : index
    %807 = vector.load %arg14[%c0_217, %c0_218] : memref<64x4xf32, #tpu.memory_space<vmem>>, vector<64x4xf32>
    %808 = vector.extract_strided_slice %807 {offsets = [0, 0], sizes = [32, 4], strides = [1, 1]} : vector<64x4xf32> to vector<32x4xf32>
    %cst_219 = arith.constant dense<0.000000e+00> : vector<8x4xf32>
    %809 = tpu.matmul %804, %808, %cst_219 {dimension_numbers = #tpu.dot_dimension_numbers<[1], [0], [0], [1], [0, 0, 1, 1], [], []>} : vector<8x32xf32>, vector<32x4xf32>, vector<8x4xf32> -> vector<8x4xf32>
    %810 = vector.extract_strided_slice %807 {offsets = [32, 0], sizes = [32, 4], strides = [1, 1]} : vector<64x4xf32> to vector<32x4xf32>
    %cst_220 = arith.constant dense<0.000000e+00> : vector<8x4xf32>
    %811 = tpu.matmul %806, %810, %cst_220 {dimension_numbers = #tpu.dot_dimension_numbers<[1], [0], [0], [1], [0, 0, 1, 1], [], []>} : vector<8x32xf32>, vector<32x4xf32>, vector<8x4xf32> -> vector<8x4xf32>
    %812 = arith.addf %809, %811 : vector<8x4xf32>
    %c0_221 = arith.constant 0 : index
    %c0_222 = arith.constant 0 : index
    %813 = vector.load %arg15[%c0_221, %c0_222] : memref<1x4xf32, #tpu.memory_space<vmem>>, vector<1x4xf32>
    %814 = vector.broadcast %813 : vector<1x4xf32> to vector<8x4xf32>
    %815 = arith.addf %812, %814 : vector<8x4xf32>
    %c0_223 = arith.constant 0 : index
    %c0_224 = arith.constant 0 : index
    %816 = vector.load %arg16[%c0_223, %c0_224] : memref<8x4xf32, #tpu.memory_space<vmem>>, vector<8x4xf32>
    tpu.vector_store %arg16[%c0_223, %c0_224], %815 {strides = array<i32>} : memref<8x4xf32, #tpu.memory_space<vmem>>, vector<8x4xf32>,
    return
  }
}

</mosaic_0001>

<llo_original>
// kernel: tpu_custom_call.1
$region0: #{tpu_custom_call.1}
  #allocation0 [shape = 'u32[]', space=smem, size = 0x4, offset = 0x4, fixed_abs, tag = 'smem constant byte address 0x4 - core index']
  #allocation1 [shape = 'u32[144,128]{1,0:T(1,128)}', space=vmem, size = 0x12000, scoped, tag = 'internal scratch']
  #allocation2 [shape = 'f32[64,128]{1,0:T(8,128)}', space=vmem, size = 0x8000, scoped, tag = 'scratch operand']
  #allocation3 [shape = 'f32[64,128]{1,0:T(8,128)}', space=vmem, size = 0x8000, scoped, tag = 'scratch operand']
  #allocation4 [shape = 'f32[64,32]{1,0:T(8,128)}', space=vmem, size = 0x8000, scoped, tag = 'scratch operand']
  #allocation5 [shape = 'f32[64,32]{1,0:T(8,128)}', space=vmem, size = 0x8000, scoped, tag = 'scratch operand']
  %s0 = inlined_call_operand.vmem [shape: f32[64,32], index: 0, kind: input, shape index: {}]
  %s1 = inlined_call_operand.vmem [shape: f32[32,128], index: 1, kind: input, shape index: {}]
  %s2 = inlined_call_operand.hbm [shape: f32[32,128], index: 2, kind: input, shape index: {}]
  %s3 = inlined_call_operand.vmem [shape: f32[1,128], index: 3, kind: input, shape index: {}]
  %s4 = inlined_call_operand.hbm [shape: f32[32,128], index: 4, kind: input, shape index: {}]
  %s5 = inlined_call_operand.hbm [shape: f32[32,128], index: 5, kind: input, shape index: {}]
  %s6 = inlined_call_operand.vmem [shape: f32[1,128], index: 6, kind: input, shape index: {}]
  %s7 = inlined_call_operand.vmem [shape: f32[64,128], index: 7, kind: input, shape index: {}]
  %s8 = inlined_call_operand.vmem [shape: f32[32,128], index: 8, kind: input, shape index: {}]
  %s9 = inlined_call_operand.hbm [shape: f32[1,128], index: 9, kind: input, shape index: {}]
  %s10 = inlined_call_operand.vmem [shape: f32[64,128], index: 10, kind: input, shape index: {}]
  %s11 = inlined_call_operand.hbm [shape: f32[32,128], index: 11, kind: input, shape index: {}]
  %s12 = inlined_call_operand.vmem [shape: f32[1,128], index: 12, kind: input, shape index: {}]
  %s13 = inlined_call_operand.vmem [shape: f32[1,64], index: 13, kind: input, shape index: {}]
  %s14 = inlined_call_operand.vmem [shape: f32[64,4], index: 14, kind: input, shape index: {}]
  %s15 = inlined_call_operand.vmem [shape: f32[1,4], index: 15, kind: input, shape index: {}]
  %s16 = inlined_call_operand.vmem [shape: f32[8,4], index: 16, kind: output, shape index: {}]
  %s17 = sld [smem:[#allocation0]]
  $region94: #{tpu_custom_call.1} parent=0
    _
  %s19 = ssub.s32 1, %s17
  %s20 = scalar_select 0, %s19, %s17
  $region1: #{tpu_custom_call.1} parent=0
    #allocation6 [shape = 'u8[16384]{0}', space=vmem, size = 0x4000, scoped, tag = 'input window, operand 2, single buffered']
    #allocation7 [shape = 's32[1]{0}', space=sflag, size = 0x4, scoped, tag = 'scoped memory for tpu_custom_call.1']
    #allocation8 [shape = 'u8[16384]{0}', space=vmem, size = 0x4000, scoped, tag = 'input window, operand 4, single buffered']
    #allocation9 [shape = 's32[1]{0}', space=sflag, size = 0x4, scoped, tag = 'scoped memory for tpu_custom_call.1']
    #allocation10 [shape = 'u8[16384]{0}', space=vmem, size = 0x4000, scoped, tag = 'input window, operand 5, single buffered']
    #allocation11 [shape = 'u8[512]{0}', space=vmem, size = 0x400, scoped, tag = 'input window, operand 9, single buffered']
    #allocation12 [shape = 's32[1]{0}', space=sflag, size = 0x4, scoped, tag = 'scoped memory for tpu_custom_call.1']
    #allocation13 [shape = 'u8[16384]{0}', space=vmem, size = 0x4000, scoped, tag = 'input window, operand 11, single buffered']
    %21 = vsyncpa [#allocation7], 0
    %22 = vsyncpa [#allocation9], 0
    %23 = vsyncpa [#allocation12], 0
    // Predicated region
    $region2: #{tpu_custom_call.1} parent=1 // pred_check
      _
    $region3: #{tpu_custom_call.1} parent=1 // pred_check_branch
      %25 = sbr.rel (0) target = $region5
    $region4: #{tpu_custom_call.1} parent=1 // pred_region
      _
    $region5: #{tpu_custom_call.1} parent=1 // pred_fallthru
      _
    // Predicated region
    $region6: #{tpu_custom_call.1} parent=1 // pred_check
      _
    $region7: #{tpu_custom_call.1} parent=1 // pred_check_branch
      %27 = sbr.rel (0) target = $region9
    $region8: #{tpu_custom_call.1} parent=1 // pred_region
      _
    $region9: #{tpu_custom_call.1} parent=1 // pred_fallthru
      _
    // Predicated region
    $region10: #{tpu_custom_call.1} parent=1 // pred_check
      _
    $region11: #{tpu_custom_call.1} parent=1 // pred_check_branch
      %29 = sbr.rel (0) target = $region13
    $region12: #{tpu_custom_call.1} parent=1 // pred_region
      %s31 = ssub.s32 512, 512
      %32 = vsyncadd [#allocation7], %s31
      %s33 = sshll.u32 [#allocation6], 4
      %s34 = int_to_ptr.vmem [resolvable:$true] %s33
      %39 = dma.hbm_to_vmem [thread:$0]  %s2, 512, %s34, [#allocation7], 128, 128, 8
    $region13: #{tpu_custom_call.1} parent=1 // pred_fallthru
      _
    // Predicated region
    $region14: #{tpu_custom_call.1} parent=1 // pred_check
      _
    $region15: #{tpu_custom_call.1} parent=1 // pred_check_branch
      %41 = sbr.rel (0) target = $region17
    $region16: #{tpu_custom_call.1} parent=1 // pred_region
      _
    $region17: #{tpu_custom_call.1} parent=1 // pred_fallthru
      _
    // Predicated region
    $region18: #{tpu_custom_call.1} parent=1 // pred_check
      _
    $region19: #{tpu_custom_call.1} parent=1 // pred_check_branch
      %43 = sbr.rel (0) target = $region21
    $region20: #{tpu_custom_call.1} parent=1 // pred_region
      %s45 = ssub.s32 512, 512
      %46 = vsyncadd [#allocation9], %s45
      %s47 = sshll.u32 [#allocation8], 4
      %s48 = int_to_ptr.vmem [resolvable:$true] %s47
      %53 = dma.hbm_to_vmem [thread:$0]  %s4, 512, %s48, [#allocation9], 128, 128, 8
    $region21: #{tpu_custom_call.1} parent=1 // pred_fallthru
      _
    // Predicated region
    $region22: #{tpu_custom_call.1} parent=1 // pred_check
      _
    $region23: #{tpu_custom_call.1} parent=1 // pred_check_branch
      %55 = sbr.rel (0) target = $region25
    $region24: #{tpu_custom_call.1} parent=1 // pred_region
      %s57 = ssub.s32 512, 512
      %58 = vsyncadd [#allocation9], %s57
      %s59 = sshll.u32 [#allocation10], 4
      %s60 = int_to_ptr.vmem [resolvable:$true] %s59
      %65 = dma.hbm_to_vmem [thread:$0]  %s5, 512, %s60, [#allocation9], 128, 128, 8
    $region25: #{tpu_custom_call.1} parent=1 // pred_fallthru
      _
    // Predicated region
    $region26: #{tpu_custom_call.1} parent=1 // pred_check
      _
    $region27: #{tpu_custom_call.1} parent=1 // pred_check_branch
      %67 = sbr.rel (0) target = $region29
    $region28: #{tpu_custom_call.1} parent=1 // pred_region
      _
    $region29: #{tpu_custom_call.1} parent=1 // pred_fallthru
      _
    // Predicated region
    $region30: #{tpu_custom_call.1} parent=1 // pred_check
      _
    $region31: #{tpu_custom_call.1} parent=1 // pred_check_branch
      %69 = sbr.rel (0) target = $region33
    $region32: #{tpu_custom_call.1} parent=1 // pred_region
      _
    $region33: #{tpu_custom_call.1} parent=1 // pred_fallthru
      _
    // Predicated region
    $region34: #{tpu_custom_call.1} parent=1 // pred_check
      _
    $region35: #{tpu_custom_call.1} parent=1 // pred_check_branch
      %71 = sbr.rel (0) target = $region37
    $region36: #{tpu_custom_call.1} parent=1 // pred_region
      _
    $region37: #{tpu_custom_call.1} parent=1 // pred_fallthru
      _
    // Predicated region
    $region38: #{tpu_custom_call.1} parent=1 // pred_check
      _
    $region39: #{tpu_custom_call.1} parent=1 // pred_check_branch
      %73 = sbr.rel (0) target = $region41
    $region40: #{tpu_custom_call.1} parent=1 // pred_region
      %s75 = ssub.s32 16, 16
      %76 = vsyncadd [#allocation12], %s75
      %s78 = sshll.u32 [#allocation11], 4
      %s79 = int_to_ptr.vmem [resolvable:$true] %s78
      %81 = dma.hbm_to_vmem [thread:$0]  %s9, 16, %s79, [#allocation12]
    $region41: #{tpu_custom_call.1} parent=1 // pred_fallthru
      _
    // Predicated region
    $region42: #{tpu_custom_call.1} parent=1 // pred_check
      _
    $region43: #{tpu_custom_call.1} parent=1 // pred_check_branch
      %83 = sbr.rel (0) target = $region45
    $region44: #{tpu_custom_call.1} parent=1 // pred_region
      _
    $region45: #{tpu_custom_call.1} parent=1 // pred_fallthru
      _
    // Predicated region
    $region46: #{tpu_custom_call.1} parent=1 // pred_check
      _
    $region47: #{tpu_custom_call.1} parent=1 // pred_check_branch
      %85 = sbr.rel (0) target = $region49
    $region48: #{tpu_custom_call.1} parent=1 // pred_region
      %s87 = ssub.s32 512, 512
      %88 = vsyncadd [#allocation12], %s87
      %s89 = sshll.u32 [#allocation13], 4
      %s90 = int_to_ptr.vmem [resolvable:$true] %s89
      %95 = dma.hbm_to_vmem [thread:$0]  %s11, 512, %s90, [#allocation12], 128, 128, 8
    $region49: #{tpu_custom_call.1} parent=1 // pred_fallthru
      _
    // Predicated region
    $region50: #{tpu_custom_call.1} parent=1 // pred_check
      _
    $region51: #{tpu_custom_call.1} parent=1 // pred_check_branch
      %97 = sbr.rel (0) target = $region53
    $region52: #{tpu_custom_call.1} parent=1 // pred_region
      _
    $region53: #{tpu_custom_call.1} parent=1 // pred_fallthru
      _
    // Predicated region
    $region54: #{tpu_custom_call.1} parent=1 // pred_check
      _
    $region55: #{tpu_custom_call.1} parent=1 // pred_check_branch
      %99 = sbr.rel (0) target = $region57
    $region56: #{tpu_custom_call.1} parent=1 // pred_region
      _
    $region57: #{tpu_custom_call.1} parent=1 // pred_fallthru
      _
    // Predicated region
    $region58: #{tpu_custom_call.1} parent=1 // pred_check
      _
    $region59: #{tpu_custom_call.1} parent=1 // pred_check_branch
      %101 = sbr.rel (0) target = $region61
    $region60: #{tpu_custom_call.1} parent=1 // pred_region
      _
    $region61: #{tpu_custom_call.1} parent=1 // pred_fallthru
      _
    // Predicated region
    $region62: #{tpu_custom_call.1} parent=1 // pred_check
      _
    $region63: #{tpu_custom_call.1} parent=1 // pred_check_branch
      %103 = sbr.rel (0) target = $region65
    $region64: #{tpu_custom_call.1} parent=1 // pred_region
      _
    $region65: #{tpu_custom_call.1} parent=1 // pred_fallthru
      _
    // Predicated region
    $region66: #{tpu_custom_call.1} parent=1 // pred_check
      _
    $region67: #{tpu_custom_call.1} parent=1 // pred_check_branch
      %105 = sbr.rel (0) target = $region69
    $region68: #{tpu_custom_call.1} parent=1 // pred_region
      %106 = dma.done [#allocation7], 512
    $region69: #{tpu_custom_call.1} parent=1 // pred_fallthru
      _
    // Predicated region
    $region70: #{tpu_custom_call.1} parent=1 // pred_check
      _
    $region71: #{tpu_custom_call.1} parent=1 // pred_check_branch
      %108 = sbr.rel (0) target = $region73
    $region72: #{tpu_custom_call.1} parent=1 // pred_region
      %109 = dma.done [#allocation9], 512
    $region73: #{tpu_custom_call.1} parent=1 // pred_fallthru
      _
    // Predicated region
    $region74: #{tpu_custom_call.1} parent=1 // pred_check
      _
    $region75: #{tpu_custom_call.1} parent=1 // pred_check_branch
      %111 = sbr.rel (0) target = $region77
    $region76: #{tpu_custom_call.1} parent=1 // pred_region
      %112 = dma.done [#allocation9], 512
    $region77: #{tpu_custom_call.1} parent=1 // pred_fallthru
      _
    // Predicated region
    $region78: #{tpu_custom_call.1} parent=1 // pred_check
      _
    $region79: #{tpu_custom_call.1} parent=1 // pred_check_branch
      %114 = sbr.rel (0) target = $region81
    $region80: #{tpu_custom_call.1} parent=1 // pred_region
      %115 = dma.done [#allocation12], 16
    $region81: #{tpu_custom_call.1} parent=1 // pred_fallthru
      _
    // Predicated region
    $region82: #{tpu_custom_call.1} parent=1 // pred_check
      _
    $region83: #{tpu_custom_call.1} parent=1 // pred_check_branch
      %117 = sbr.rel (0) target = $region85
    $region84: #{tpu_custom_call.1} parent=1 // pred_region
      %118 = dma.done [#allocation12], 512
    $region85: #{tpu_custom_call.1} parent=1 // pred_fallthru
      _
    %v119 = vld [vmem:[%s0] sm:$0xff]
    %v120 = vld [vmem:[%s0 + $0x8] sm:$0xff]
    %v121 = vld [vmem:[%s0 + $0x10] sm:$0xff]
    %v122 = vld [vmem:[%s0 + $0x18] sm:$0xff]
    %v123 = vld [vmem:[%s0 + $0x20] sm:$0xff]
    %v124 = vld [vmem:[%s0 + $0x28] sm:$0xff]
    %v125 = vld [vmem:[%s0 + $0x30] sm:$0xff]
    %v126 = vld [vmem:[%s0 + $0x38] sm:$0xff]
    %v127 = vld [vmem:[%s1] sm:$0xff]
    %v128 = vld [vmem:[%s1 + $0x8] sm:$0xff]
    %v129 = vld [vmem:[%s1 + $0x10] sm:$0xff]
    %v130 = vld [vmem:[%s1 + $0x18] sm:$0xff]
    %v131 = vld [vmem:[#allocation8] sm:$0xff]
    %v132 = vld [vmem:[#allocation8 + $0x8] sm:$0xff]
    %v133 = vld [vmem:[#allocation8 + $0x10] sm:$0xff]
    %v134 = vld [vmem:[#allocation8 + $0x18] sm:$0xff]
    %v135 = vld [vmem:[%s3] sm:$0x1]
    %v137 = vlaneseq
    %v138 = vshrl.u32 %v137, 7
    %v139 = vsub.s32 0, %v138
    %v140 = vrot.slane %v135, %v139
    %vm142 = vcmask 261120
    %v144 = vsel %vm142, %v119, 0
    %v147 = vsel %vm142, %v120, 0
    %v150 = vsel %vm142, %v121, 0
    %v153 = vsel %vm142, %v122, 0
    %v156 = vsel %vm142, %v123, 0
    %v159 = vsel %vm142, %v124, 0
    %v162 = vsel %vm142, %v125, 0
    %v165 = vsel %vm142, %v126, 0
    %167 = vmatprep.subr.mxu0 0.0
    %168 = vmatpush1.msra.mxu0 %v127
    %169 = vmatprep.subr.mxu0 0.0
    %170 = vmatpush1.msra.mxu0 %v128
    %171 = vmatprep.subr.mxu0 0.0
    %172 = vmatpush1.msra.mxu0 %v129
    %173 = vmatprep.subr.mxu0 0.0
    %174 = vmatpush1.msra.mxu0 %v130
    %175 = vmatprep.subr.mxu0 0.0
    %176 = vmatpush1.msra.mxu0 0.0
    %177 = vmatprep.subr.mxu0 0.0
    %178 = vmatpush1.msra.mxu0 0.0
    %179 = vmatprep.subr.mxu0 0.0
    %180 = vmatpush1.msra.mxu0 0.0
    %181 = vmatprep.subr.mxu0 0.0
    %182 = vmatpush1.msra.mxu0 0.0
    %183 = vmatprep.subr.mxu0 0.0
    %184 = vmatpush1.msra.mxu0 0.0
    %185 = vmatprep.subr.mxu0 0.0
    %186 = vmatpush1.msra.mxu0 0.0
    %187 = vmatprep.subr.mxu0 0.0
    %188 = vmatpush1.msra.mxu0 0.0
    %189 = vmatprep.subr.mxu0 0.0
    %190 = vmatpush1.msra.mxu0 0.0
    %191 = vmatprep.subr.mxu0 0.0
    %192 = vmatpush1.msra.mxu0 0.0
    %193 = vmatprep.subr.mxu0 0.0
    %194 = vmatpush1.msra.mxu0 0.0
    %195 = vmatprep.subr.mxu0 0.0
    %196 = vmatpush1.msra.mxu0 0.0
    %197 = vmatprep.subr.mxu0 0.0
    %198 = vmatpush1.msra.mxu0 0.0
    %199 = vmatprep.subr.mxu0 0.0
    %200 = vmatpush1.msra.mxu0 0.0
    %201 = vmatprep.subr.mxu0 0.0
    %202 = vmatpush1.msra.mxu0 0.0
    %203 = vmatprep.subr.mxu0 0.0
    %204 = vmatpush1.msra.mxu0 0.0
    %205 = vmatprep.subr.mxu0 0.0
    %206 = vmatpush1.msra.mxu0 0.0
    %207 = vmatprep.subr.mxu0 0.0
    %208 = vmatpush1.msra.mxu0 0.0
    %209 = vmatprep.subr.mxu0 0.0
    %210 = vmatpush1.msra.mxu0 0.0
    %211 = vmatprep.subr.mxu0 0.0
    %212 = vmatpush1.msra.mxu0 0.0
    %213 = vmatprep.subr.mxu0 0.0
    %214 = vmatpush1.msra.mxu0 0.0
    %215 = vmatprep.subr.mxu0 0.0
    %216 = vmatpush1.msra.mxu0 0.0
    %217 = vmatprep.subr.mxu0 0.0
    %218 = vmatpush1.msra.mxu0 0.0
    %219 = vmatprep.subr.mxu0 0.0
    %220 = vmatpush1.msra.mxu0 0.0
    %221 = vmatprep.subr.mxu0 0.0
    %222 = vmatpush1.msra.mxu0 0.0
    %223 = vmatprep.subr.mxu0 0.0
    %224 = vmatpush1.msra.mxu0 0.0
    %225 = vmatprep.subr.mxu0 0.0
    %226 = vmatpush1.msra.mxu0 0.0
    %227 = vmatprep.subr.mxu0 0.0
    %228 = vmatpush1.msra.mxu0 0.0
    %229 = vmatprep.subr.mxu0 0.0
    %230 = vmatpush1.msra.mxu0 0.0
    %231 = vmatprep.mubr.f32.mxu0 0.0
    %232 = vmatmul.mubr.f32.gmra.mrb[0].mxu0 %v144
    %v233 = vpop.f32.mrb[0].mxu0
    %v234 = vadd.f32 %v140, %v233
    %v235 = vpop.f32.mrb[0].mxu0
    %236 = vmatprep.mubr.f32.mxu0 0.0
    %237 = vmatmul.mubr.f32.gmra.mrb[0].mxu0 %v147
    %v238 = vpop.f32.mrb[0].mxu0
    %v239 = vadd.f32 %v140, %v238
    %v240 = vpop.f32.mrb[0].mxu0
    %241 = vmatprep.mubr.f32.mxu0 0.0
    %242 = vmatmul.mubr.f32.gmra.mrb[0].mxu0 %v150
    %v243 = vpop.f32.mrb[0].mxu0
    %v244 = vadd.f32 %v140, %v243
    %v245 = vpop.f32.mrb[0].mxu0
    %246 = vmatprep.mubr.f32.mxu0 0.0
    %247 = vmatmul.mubr.f32.gmra.mrb[0].mxu0 %v153
    %v248 = vpop.f32.mrb[0].mxu0
    %v249 = vadd.f32 %v140, %v248
    %v250 = vpop.f32.mrb[0].mxu0
    %251 = vmatprep.mubr.f32.mxu0 0.0
    %252 = vmatmul.mubr.f32.gmra.mrb[0].mxu0 %v156
    %v253 = vpop.f32.mrb[0].mxu0
    %v254 = vadd.f32 %v140, %v253
    %v255 = vpop.f32.mrb[0].mxu0
    %256 = vmatprep.mubr.f32.mxu0 0.0
    %257 = vmatmul.mubr.f32.gmra.mrb[0].mxu0 %v159
    %v258 = vpop.f32.mrb[0].mxu0
    %v259 = vadd.f32 %v140, %v258
    %v260 = vpop.f32.mrb[0].mxu0
    %261 = vmatprep.mubr.f32.mxu0 0.0
    %262 = vmatmul.mubr.f32.gmra.mrb[0].mxu0 %v162
    %v263 = vpop.f32.mrb[0].mxu0
    %v264 = vadd.f32 %v140, %v263
    %v265 = vpop.f32.mrb[0].mxu0
    %266 = vmatprep.mubr.f32.mxu0 0.0
    %267 = vmatmul.mubr.f32.gmra.mrb[0].mxu0 %v165
    %v268 = vpop.f32.mrb[0].mxu0
    %v269 = vadd.f32 %v140, %v268
    %v270 = vpop.f32.mrb[0].mxu0
    %271 = vdwg.mxu0
    %272 = vst [vmem:[#allocation2] sm:$0xff] %v234
    %273 = vst [vmem:[#allocation2 + $0x8] sm:$0xff] %v239
    %274 = vst [vmem:[#allocation2 + $0x10] sm:$0xff] %v244
    %275 = vst [vmem:[#allocation2 + $0x18] sm:$0xff] %v249
    %276 = vst [vmem:[#allocation2 + $0x20] sm:$0xff] %v254
    %277 = vst [vmem:[#allocation2 + $0x28] sm:$0xff] %v259
    %278 = vst [vmem:[#allocation2 + $0x30] sm:$0xff] %v264
    %279 = vst [vmem:[#allocation2 + $0x38] sm:$0xff] %v269
    %v280 = vld [vmem:[%s6] sm:$0x1]
    %v282 = vlaneseq
    %v283 = vshrl.u32 %v282, 7
    %v284 = vsub.s32 0, %v283
    %v285 = vrot.slane %v280, %v284
    %287 = vmatprep.subr.mxu0 0.0
    %288 = vmatpush1.msra.mxu0 %v131
    %289 = vmatprep.subr.mxu0 0.0
    %290 = vmatpush1.msra.mxu0 %v132
    %291 = vmatprep.subr.mxu0 0.0
    %292 = vmatpush1.msra.mxu0 %v133
    %293 = vmatprep.subr.mxu0 0.0
    %294 = vmatpush1.msra.mxu0 %v134
    %295 = vmatprep.subr.mxu0 0.0
    %296 = vmatpush1.msra.mxu0 0.0
    %297 = vmatprep.subr.mxu0 0.0
    %298 = vmatpush1.msra.mxu0 0.0
    %299 = vmatprep.subr.mxu0 0.0
    %300 = vmatpush1.msra.mxu0 0.0
    %301 = vmatprep.subr.mxu0 0.0
    %302 = vmatpush1.msra.mxu0 0.0
    %303 = vmatprep.subr.mxu0 0.0
    %304 = vmatpush1.msra.mxu0 0.0
    %305 = vmatprep.subr.mxu0 0.0
    %306 = vmatpush1.msra.mxu0 0.0
    %307 = vmatprep.subr.mxu0 0.0
    %308 = vmatpush1.msra.mxu0 0.0
    %309 = vmatprep.subr.mxu0 0.0
    %310 = vmatpush1.msra.mxu0 0.0
    %311 = vmatprep.subr.mxu0 0.0
    %312 = vmatpush1.msra.mxu0 0.0
    %313 = vmatprep.subr.mxu0 0.0
    %314 = vmatpush1.msra.mxu0 0.0
    %315 = vmatprep.subr.mxu0 0.0
    %316 = vmatpush1.msra.mxu0 0.0
    %317 = vmatprep.subr.mxu0 0.0
    %318 = vmatpush1.msra.mxu0 0.0
    %319 = vmatprep.subr.mxu0 0.0
    %320 = vmatpush1.msra.mxu0 0.0
    %321 = vmatprep.subr.mxu0 0.0
    %322 = vmatpush1.msra.mxu0 0.0
    %323 = vmatprep.subr.mxu0 0.0
    %324 = vmatpush1.msra.mxu0 0.0
    %325 = vmatprep.subr.mxu0 0.0
    %326 = vmatpush1.msra.mxu0 0.0
    %327 = vmatprep.subr.mxu0 0.0
    %328 = vmatpush1.msra.mxu0 0.0
    %329 = vmatprep.subr.mxu0 0.0
    %330 = vmatpush1.msra.mxu0 0.0
    %331 = vmatprep.subr.mxu0 0.0
    %332 = vmatpush1.msra.mxu0 0.0
    %333 = vmatprep.subr.mxu0 0.0
    %334 = vmatpush1.msra.mxu0 0.0
    %335 = vmatprep.subr.mxu0 0.0
    %336 = vmatpush1.msra.mxu0 0.0
    %337 = vmatprep.subr.mxu0 0.0
    %338 = vmatpush1.msra.mxu0 0.0
    %339 = vmatprep.subr.mxu0 0.0
    %340 = vmatpush1.msra.mxu0 0.0
    %341 = vmatprep.subr.mxu0 0.0
    %342 = vmatpush1.msra.mxu0 0.0
    %343 = vmatprep.subr.mxu0 0.0
    %344 = vmatpush1.msra.mxu0 0.0
    %345 = vmatprep.subr.mxu0 0.0
    %346 = vmatpush1.msra.mxu0 0.0
    %347 = vmatprep.subr.mxu0 0.0
    %348 = vmatpush1.msra.mxu0 0.0
    %349 = vmatprep.subr.mxu0 0.0
    %350 = vmatpush1.msra.mxu0 0.0
    %351 = vmatprep.mubr.f32.mxu0 0.0
    %352 = vmatmul.mubr.f32.gmra.mrb[0].mxu0 %v144
    %v353 = vpop.f32.mrb[0].mxu0
    %v354 = vadd.f32 %v285, %v353
    %v355 = vpop.f32.mrb[0].mxu0
    %356 = vmatprep.mubr.f32.mxu0 0.0
    %357 = vmatmul.mubr.f32.gmra.mrb[0].mxu0 %v147
    %v358 = vpop.f32.mrb[0].mxu0
    %v359 = vadd.f32 %v285, %v358
    %v360 = vpop.f32.mrb[0].mxu0
    %361 = vmatprep.mubr.f32.mxu0 0.0
    %362 = vmatmul.mubr.f32.gmra.mrb[0].mxu0 %v150
    %v363 = vpop.f32.mrb[0].mxu0
    %v364 = vadd.f32 %v285, %v363
    %v365 = vpop.f32.mrb[0].mxu0
    %366 = vmatprep.mubr.f32.mxu0 0.0
    %367 = vmatmul.mubr.f32.gmra.mrb[0].mxu0 %v153
    %v368 = vpop.f32.mrb[0].mxu0
    %v369 = vadd.f32 %v285, %v368
    %v370 = vpop.f32.mrb[0].mxu0
    %371 = vmatprep.mubr.f32.mxu0 0.0
    %372 = vmatmul.mubr.f32.gmra.mrb[0].mxu0 %v156
    %v373 = vpop.f32.mrb[0].mxu0
    %v374 = vadd.f32 %v285, %v373
    %v375 = vpop.f32.mrb[0].mxu0
    %376 = vmatprep.mubr.f32.mxu0 0.0
    %377 = vmatmul.mubr.f32.gmra.mrb[0].mxu0 %v159
    %v378 = vpop.f32.mrb[0].mxu0
    %v379 = vadd.f32 %v285, %v378
    %v380 = vpop.f32.mrb[0].mxu0
    %381 = vmatprep.mubr.f32.mxu0 0.0
    %382 = vmatmul.mubr.f32.gmra.mrb[0].mxu0 %v162
    %v383 = vpop.f32.mrb[0].mxu0
    %v384 = vadd.f32 %v285, %v383
    %v385 = vpop.f32.mrb[0].mxu0
    %386 = vmatprep.mubr.f32.mxu0 0.0
    %387 = vmatmul.mubr.f32.gmra.mrb[0].mxu0 %v165
    %v388 = vpop.f32.mrb[0].mxu0
    %v389 = vadd.f32 %v285, %v388
    %v390 = vpop.f32.mrb[0].mxu0
    %391 = vdwg.mxu0
    %392 = vst [vmem:[#allocation3] sm:$0xff] %v354
    %393 = vst [vmem:[#allocation3 + $0x8] sm:$0xff] %v359
    %394 = vst [vmem:[#allocation3 + $0x10] sm:$0xff] %v364
    %395 = vst [vmem:[#allocation3 + $0x18] sm:$0xff] %v369
    %396 = vst [vmem:[#allocation3 + $0x20] sm:$0xff] %v374
    %397 = vst [vmem:[#allocation3 + $0x28] sm:$0xff] %v379
    %398 = vst [vmem:[#allocation3 + $0x30] sm:$0xff] %v384
    %399 = vst [vmem:[#allocation3 + $0x38] sm:$0xff] %v389
    %v400 = vld [vmem:[#allocation6] sm:$0xff]
    %v401 = vld [vmem:[#allocation6 + $0x8] sm:$0xff]
    %v402 = vld [vmem:[#allocation6 + $0x10] sm:$0xff]
    %v403 = vld [vmem:[#allocation6 + $0x18] sm:$0xff]
    %v404 = vld [vmem:[#allocation10] sm:$0xff]
    %v405 = vld [vmem:[#allocation10 + $0x8] sm:$0xff]
    %v406 = vld [vmem:[#allocation10 + $0x10] sm:$0xff]
    %v407 = vld [vmem:[#allocation10 + $0x18] sm:$0xff]
    %v408 = vld [vmem:[#allocation2] sm:$0xff]
    %v410 = vsel %vm142, 0.0, 0
    %412 = vmatprep.subr.mxu0 0.0
    %413 = vmatpush1.msra.mxu0 %v400
    %414 = vmatprep.subr.mxu0 0.0
    %415 = vmatpush1.msra.mxu0 %v401
    %416 = vmatprep.subr.mxu0 0.0
    %417 = vmatpush1.msra.mxu0 %v402
    %418 = vmatprep.subr.mxu0 0.0
    %419 = vmatpush1.msra.mxu0 %v403
    %420 = vmatprep.subr.mxu0 0.0
    %421 = vmatpush1.msra.mxu0 0.0
    %422 = vmatprep.subr.mxu0 0.0
    %423 = vmatpush1.msra.mxu0 0.0
    %424 = vmatprep.subr.mxu0 0.0
    %425 = vmatpush1.msra.mxu0 0.0
    %426 = vmatprep.subr.mxu0 0.0
    %427 = vmatpush1.msra.mxu0 0.0
    %428 = vmatprep.subr.mxu0 0.0
    %429 = vmatpush1.msra.mxu0 0.0
    %430 = vmatprep.subr.mxu0 0.0
    %431 = vmatpush1.msra.mxu0 0.0
    %432 = vmatprep.subr.mxu0 0.0
    %433 = vmatpush1.msra.mxu0 0.0
    %434 = vmatprep.subr.mxu0 0.0
    %435 = vmatpush1.msra.mxu0 0.0
    %436 = vmatprep.subr.mxu0 0.0
    %437 = vmatpush1.msra.mxu0 0.0
    %438 = vmatprep.subr.mxu0 0.0
    %439 = vmatpush1.msra.mxu0 0.0
    %440 = vmatprep.subr.mxu0 0.0
    %441 = vmatpush1.msra.mxu0 0.0
    %442 = vmatprep.subr.mxu0 0.0
    %443 = vmatpush1.msra.mxu0 0.0
    %444 = vmatprep.subr.mxu0 0.0
    %445 = vmatpush1.msra.mxu0 0.0
    %446 = vmatprep.subr.mxu0 0.0
    %447 = vmatpush1.msra.mxu0 0.0
    %448 = vmatprep.subr.mxu0 0.0
    %449 = vmatpush1.msra.mxu0 0.0
    %450 = vmatprep.subr.mxu0 0.0
    %451 = vmatpush1.msra.mxu0 0.0
    %452 = vmatprep.subr.mxu0 0.0
    %453 = vmatpush1.msra.mxu0 0.0
    %454 = vmatprep.subr.mxu0 0.0
    %455 = vmatpush1.msra.mxu0 0.0
    %456 = vmatprep.subr.mxu0 0.0
    %457 = vmatpush1.msra.mxu0 0.0
    %458 = vmatprep.subr.mxu0 0.0
    %459 = vmatpush1.msra.mxu0 0.0
    %460 = vmatprep.subr.mxu0 0.0
    %461 = vmatpush1.msra.mxu0 0.0
    %462 = vmatprep.subr.mxu0 0.0
    %463 = vmatpush1.msra.mxu0 0.0
    %464 = vmatprep.subr.mxu0 0.0
    %465 = vmatpush1.msra.mxu0 0.0
    %466 = vmatprep.subr.mxu0 0.0
    %467 = vmatpush1.msra.mxu0 0.0
    %468 = vmatprep.subr.mxu0 0.0
    %469 = vmatpush1.msra.mxu0 0.0
    %470 = vmatprep.subr.mxu0 0.0
    %471 = vmatpush1.msra.mxu0 0.0
    %472 = vmatprep.subr.mxu0 0.0
    %473 = vmatpush1.msra.mxu0 0.0
    %474 = vmatprep.subr.mxu0 0.0
    %475 = vmatpush1.msra.mxu0 0.0
    %476 = vmatprep.mubr.f32.mxu0 0.0
    %477 = vmatmul.mubr.f32.gmra.mrb[0].mxu0 %v410
    %v478 = vpop.f32.mrb[0].mxu0
    %v479 = vadd.f32 0.0, %v478
    %v480 = vpop.f32.mrb[0].mxu0
    %481 = vdwg.mxu0
    %v482 = vadd.f32 %v408, %v479
    %v483 = vxor.u32 %v482, 2147483648
    %v484 = vmul.f32 %v483, 1.442695
    %v485 = vpow.pop %v484
    %v486 = vadd.f32 %v485, 1.0
    %v487 = vrcp.pop %v486
    %v488 = vmul.f32 1.0, %v487
    %v489 = vtanh.pop %v482
    %v490 = vmul.f32 %v488, 0.0
    %492 = vrot.lane.b32.xlu0 %v489, 64
    %v493 = vpop.permute.xlu0 %492
    %v495 = vmul.f32 %v488, %v493
    %497 = vrot.lane.b32.xlu0 %v495, 32
    %v498 = vpop.permute.xlu0 %497
    %v500 = vadd.f32 %v490, %v498
    %v501 = vtanh.pop %v500
    %503 = vrot.lane.b32.xlu0 %v501, 64
    %v504 = vpop.permute.xlu0 %503
    %v506 = vmul.f32 %v488, %v504
    %v507 = vld [vmem:[#allocation3 + $0x38] sm:$0xff]
    %508 = vmatprep.subr.mxu0 0.0
    %509 = vmatpush1.msra.mxu0 %v404
    %510 = vmatprep.subr.mxu0 0.0
    %511 = vmatpush1.msra.mxu0 %v405
    %512 = vmatprep.subr.mxu0 0.0
    %513 = vmatpush1.msra.mxu0 %v406
    %514 = vmatprep.subr.mxu0 0.0
    %515 = vmatpush1.msra.mxu0 %v407
    %516 = vmatprep.subr.mxu0 0.0
    %517 = vmatpush1.msra.mxu0 0.0
    %518 = vmatprep.subr.mxu0 0.0
    %519 = vmatpush1.msra.mxu0 0.0
    %520 = vmatprep.subr.mxu0 0.0
    %521 = vmatpush1.msra.mxu0 0.0
    %522 = vmatprep.subr.mxu0 0.0
    %523 = vmatpush1.msra.mxu0 0.0
    %524 = vmatprep.subr.mxu0 0.0
    %525 = vmatpush1.msra.mxu0 0.0
    %526 = vmatprep.subr.mxu0 0.0
    %527 = vmatpush1.msra.mxu0 0.0
    %528 = vmatprep.subr.mxu0 0.0
    %529 = vmatpush1.msra.mxu0 0.0
    %530 = vmatprep.subr.mxu0 0.0
    %531 = vmatpush1.msra.mxu0 0.0
    %532 = vmatprep.subr.mxu0 0.0
    %533 = vmatpush1.msra.mxu0 0.0
    %534 = vmatprep.subr.mxu0 0.0
    %535 = vmatpush1.msra.mxu0 0.0
    %536 = vmatprep.subr.mxu0 0.0
    %537 = vmatpush1.msra.mxu0 0.0
    %538 = vmatprep.subr.mxu0 0.0
    %539 = vmatpush1.msra.mxu0 0.0
    %540 = vmatprep.subr.mxu0 0.0
    %541 = vmatpush1.msra.mxu0 0.0
    %542 = vmatprep.subr.mxu0 0.0
    %543 = vmatpush1.msra.mxu0 0.0
    %544 = vmatprep.subr.mxu0 0.0
    %545 = vmatpush1.msra.mxu0 0.0
    %546 = vmatprep.subr.mxu0 0.0
    %547 = vmatpush1.msra.mxu0 0.0
    %548 = vmatprep.subr.mxu0 0.0
    %549 = vmatpush1.msra.mxu0 0.0
    %550 = vmatprep.subr.mxu0 0.0
    %551 = vmatpush1.msra.mxu0 0.0
    %552 = vmatprep.subr.mxu0 0.0
    %553 = vmatpush1.msra.mxu0 0.0
    %554 = vmatprep.subr.mxu0 0.0
    %555 = vmatpush1.msra.mxu0 0.0
    %556 = vmatprep.subr.mxu0 0.0
    %557 = vmatpush1.msra.mxu0 0.0
    %558 = vmatprep.subr.mxu0 0.0
    %559 = vmatpush1.msra.mxu0 0.0
    %560 = vmatprep.subr.mxu0 0.0
    %561 = vmatpush1.msra.mxu0 0.0
    %562 = vmatprep.subr.mxu0 0.0
    %563 = vmatpush1.msra.mxu0 0.0
    %564 = vmatprep.subr.mxu0 0.0
    %565 = vmatpush1.msra.mxu0 0.0
    %566 = vmatprep.subr.mxu0 0.0
    %567 = vmatpush1.msra.mxu0 0.0
    %568 = vmatprep.subr.mxu0 0.0
    %569 = vmatpush1.msra.mxu0 0.0
    %570 = vmatprep.subr.mxu0 0.0
    %571 = vmatpush1.msra.mxu0 0.0
    %572 = vmatprep.mubr.f32.mxu0 0.0
    %573 = vmatmul.mubr.f32.gmra.mrb[0].mxu0 %v410
    %v574 = vpop.f32.mrb[0].mxu0
    %v575 = vadd.f32 0.0, %v574
    %v576 = vpop.f32.mrb[0].mxu0
    %577 = vdwg.mxu0
    %v578 = vadd.f32 %v507, %v575
    %v579 = vxor.u32 %v578, 2147483648
    %v580 = vmul.f32 %v579, 1.442695
    %v581 = vpow.pop %v580
    %v582 = vadd.f32 %v581, 1.0
    %v583 = vrcp.pop %v582
    %v584 = vmul.f32 1.0, %v583
    %v585 = vtanh.pop %v578
    %v586 = vmul.f32 %v584, 0.0
    %588 = vrot.lane.b32.xlu0 %v585, 64
    %v589 = vpop.permute.xlu0 %588
    %v591 = vmul.f32 %v584, %v589
    %593 = vrot.lane.b32.xlu0 %v591, 32
    %v594 = vpop.permute.xlu0 %593
    %v596 = vadd.f32 %v586, %v594
    %v597 = vtanh.pop %v596
    %599 = vrot.lane.b32.xlu0 %v597, 64
    %v600 = vpop.permute.xlu0 %599
    %v602 = vmul.f32 %v584, %v600
    %604 = vrot.lane.b32.xlu0 %v506, 32
    %v605 = vpop.permute.xlu0 %604
    %607 = vst.msk [vmem:[#allocation4] sm:$0xff] %vm142, %v605
    %609 = vrot.lane.b32.xlu0 %v602, 32
    %v610 = vpop.permute.xlu0 %609
    %612 = vst.msk [vmem:[#allocation5 + $0x38] sm:$0xff] %vm142, %v610
    %v613 = vld [vmem:[#allocation2 + $0x8] sm:$0xff]
    %v614 = vsel %vm142, %v605, 0
    %616 = vmatprep.subr.mxu0 0.0
    %617 = vmatpush1.msra.mxu0 %v400
    %618 = vmatprep.subr.mxu0 0.0
    %619 = vmatpush1.msra.mxu0 %v401
    %620 = vmatprep.subr.mxu0 0.0
    %621 = vmatpush1.msra.mxu0 %v402
    %622 = vmatprep.subr.mxu0 0.0
    %623 = vmatpush1.msra.mxu0 %v403
    %624 = vmatprep.subr.mxu0 0.0
    %625 = vmatpush1.msra.mxu0 0.0
    %626 = vmatprep.subr.mxu0 0.0
    %627 = vmatpush1.msra.mxu0 0.0
    %628 = vmatprep.subr.mxu0 0.0
    %629 = vmatpush1.msra.mxu0 0.0
    %630 = vmatprep.subr.mxu0 0.0
    %631 = vmatpush1.msra.mxu0 0.0
    %632 = vmatprep.subr.mxu0 0.0
    %633 = vmatpush1.msra.mxu0 0.0
    %634 = vmatprep.subr.mxu0 0.0
    %635 = vmatpush1.msra.mxu0 0.0
    %636 = vmatprep.subr.mxu0 0.0
    %637 = vmatpush1.msra.mxu0 0.0
    %638 = vmatprep.subr.mxu0 0.0
    %639 = vmatpush1.msra.mxu0 0.0
    %640 = vmatprep.subr.mxu0 0.0
    %641 = vmatpush1.msra.mxu0 0.0
    %642 = vmatprep.subr.mxu0 0.0
    %643 = vmatpush1.msra.mxu0 0.0
    %644 = vmatprep.subr.mxu0 0.0
    %645 = vmatpush1.msra.mxu0 0.0
    %646 = vmatprep.subr.mxu0 0.0
    %647 = vmatpush1.msra.mxu0 0.0
    %648 = vmatprep.subr.mxu0 0.0
    %649 = vmatpush1.msra.mxu0 0.0
    %650 = vmatprep.subr.mxu0 0.0
    %651 = vmatpush1.msra.mxu0 0.0
    %652 = vmatprep.subr.mxu0 0.0
    %653 = vmatpush1.msra.mxu0 0.0
    %654 = vmatprep.subr.mxu0 0.0
    %655 = vmatpush1.msra.mxu0 0.0
    %656 = vmatprep.subr.mxu0 0.0
    %657 = vmatpush1.msra.mxu0 0.0
    %658 = vmatprep.subr.mxu0 0.0
    %659 = vmatpush1.msra.mxu0 0.0
    %660 = vmatprep.subr.mxu0 0.0
    %661 = vmatpush1.msra.mxu0 0.0
    %662 = vmatprep.subr.mxu0 0.0
    %663 = vmatpush1.msra.mxu0 0.0
    %664 = vmatprep.subr.mxu0 0.0
    %665 = vmatpush1.msra.mxu0 0.0
    %666 = vmatprep.subr.mxu0 0.0
    %667 = vmatpush1.msra.mxu0 0.0
    %668 = vmatprep.subr.mxu0 0.0
    %669 = vmatpush1.msra.mxu0 0.0
    %670 = vmatprep.subr.mxu0 0.0
    %671 = vmatpush1.msra.mxu0 0.0
    %672 = vmatprep.subr.mxu0 0.0
    %673 = vmatpush1.msra.mxu0 0.0
    %674 = vmatprep.subr.mxu0 0.0
    %675 = vmatpush1.msra.mxu0 0.0
    %676 = vmatprep.subr.mxu0 0.0
    %677 = vmatpush1.msra.mxu0 0.0
    %678 = vmatprep.subr.mxu0 0.0
    %679 = vmatpush1.msra.mxu0 0.0
    %680 = vmatprep.mubr.f32.mxu0 0.0
    %681 = vmatmul.mubr.f32.gmra.mrb[0].mxu0 %v614
    %v682 = vpop.f32.mrb[0].mxu0
    %v683 = vadd.f32 0.0, %v682
    %v684 = vpop.f32.mrb[0].mxu0
    %685 = vdwg.mxu0
    %v686 = vadd.f32 %v613, %v683
    %v687 = vxor.u32 %v686, 2147483648
    %v688 = vmul.f32 %v687, 1.442695
    %v689 = vpow.pop %v688
    %v690 = vadd.f32 %v689, 1.0
    %v691 = vrcp.pop %v690
    %v692 = vmul.f32 1.0, %v691
    %v693 = vtanh.pop %v686
    %v694 = vmul.f32 %v692, %v500
    %696 = vrot.lane.b32.xlu0 %v693, 64
    %v697 = vpop.permute.xlu0 %696
    %v699 = vmul.f32 %v692, %v697
    %701 = vrot.lane.b32.xlu0 %v699, 32
    %v702 = vpop.permute.xlu0 %701
    %v704 = vadd.f32 %v694, %v702
    %v705 = vtanh.pop %v704
    %707 = vrot.lane.b32.xlu0 %v705, 64
    %v708 = vpop.permute.xlu0 %707
    %v710 = vmul.f32 %v692, %v708
    %v711 = vld [vmem:[#allocation3 + $0x30] sm:$0xff]
    %v712 = vsel %vm142, %v610, 0
    %714 = vmatprep.subr.mxu0 0.0
    %715 = vmatpush1.msra.mxu0 %v404
    %716 = vmatprep.subr.mxu0 0.0
    %717 = vmatpush1.msra.mxu0 %v405
    %718 = vmatprep.subr.mxu0 0.0
    %719 = vmatpush1.msra.mxu0 %v406
    %720 = vmatprep.subr.mxu0 0.0
    %721 = vmatpush1.msra.mxu0 %v407
    %722 = vmatprep.subr.mxu0 0.0
    %723 = vmatpush1.msra.mxu0 0.0
    %724 = vmatprep.subr.mxu0 0.0
    %725 = vmatpush1.msra.mxu0 0.0
    %726 = vmatprep.subr.mxu0 0.0
    %727 = vmatpush1.msra.mxu0 0.0
    %728 = vmatprep.subr.mxu0 0.0
    %729 = vmatpush1.msra.mxu0 0.0
    %730 = vmatprep.subr.mxu0 0.0
    %731 = vmatpush1.msra.mxu0 0.0
    %732 = vmatprep.subr.mxu0 0.0
    %733 = vmatpush1.msra.mxu0 0.0
    %734 = vmatprep.subr.mxu0 0.0
    %735 = vmatpush1.msra.mxu0 0.0
    %736 = vmatprep.subr.mxu0 0.0
    %737 = vmatpush1.msra.mxu0 0.0
    %738 = vmatprep.subr.mxu0 0.0
    %739 = vmatpush1.msra.mxu0 0.0
    %740 = vmatprep.subr.mxu0 0.0
    %741 = vmatpush1.msra.mxu0 0.0
    %742 = vmatprep.subr.mxu0 0.0
    %743 = vmatpush1.msra.mxu0 0.0
    %744 = vmatprep.subr.mxu0 0.0
    %745 = vmatpush1.msra.mxu0 0.0
    %746 = vmatprep.subr.mxu0 0.0
    %747 = vmatpush1.msra.mxu0 0.0
    %748 = vmatprep.subr.mxu0 0.0
    %749 = vmatpush1.msra.mxu0 0.0
    %750 = vmatprep.subr.mxu0 0.0
    %751 = vmatpush1.msra.mxu0 0.0
    %752 = vmatprep.subr.mxu0 0.0
    %753 = vmatpush1.msra.mxu0 0.0
    %754 = vmatprep.subr.mxu0 0.0
    %755 = vmatpush1.msra.mxu0 0.0
    %756 = vmatprep.subr.mxu0 0.0
    %757 = vmatpush1.msra.mxu0 0.0
    %758 = vmatprep.subr.mxu0 0.0
    %759 = vmatpush1.msra.mxu0 0.0
    %760 = vmatprep.subr.mxu0 0.0
    %761 = vmatpush1.msra.mxu0 0.0
    %762 = vmatprep.subr.mxu0 0.0
    %763 = vmatpush1.msra.mxu0 0.0
    %764 = vmatprep.subr.mxu0 0.0
    %765 = vmatpush1.msra.mxu0 0.0
    %766 = vmatprep.subr.mxu0 0.0
    %767 = vmatpush1.msra.mxu0 0.0
    %768 = vmatprep.subr.mxu0 0.0
    %769 = vmatpush1.msra.mxu0 0.0
    %770 = vmatprep.subr.mxu0 0.0
    %771 = vmatpush1.msra.mxu0 0.0
    %772 = vmatprep.subr.mxu0 0.0
    %773 = vmatpush1.msra.mxu0 0.0
    %774 = vmatprep.subr.mxu0 0.0
    %775 = vmatpush1.msra.mxu0 0.0
    %776 = vmatprep.subr.mxu0 0.0
    %777 = vmatpush1.msra.mxu0 0.0
    %778 = vmatprep.mubr.f32.mxu0 0.0
    %779 = vmatmul.mubr.f32.gmra.mrb[0].mxu0 %v712
    %v780 = vpop.f32.mrb[0].mxu0
    %v781 = vadd.f32 0.0, %v780
    %v782 = vpop.f32.mrb[0].mxu0
    %783 = vdwg.mxu0
    %v784 = vadd.f32 %v711, %v781
    %v785 = vxor.u32 %v784, 2147483648
    %v786 = vmul.f32 %v785, 1.442695
    %v787 = vpow.pop %v786
    %v788 = vadd.f32 %v787, 1.0
    %v789 = vrcp.pop %v788
    %v790 = vmul.f32 1.0, %v789
    %v791 = vtanh.pop %v784
    %v792 = vmul.f32 %v790, %v596
    %794 = vrot.lane.b32.xlu0 %v791, 64
    %v795 = vpop.permute.xlu0 %794
    %v797 = vmul.f32 %v790, %v795
    %799 = vrot.lane.b32.xlu0 %v797, 32
    %v800 = vpop.permute.xlu0 %799
    %v802 = vadd.f32 %v792, %v800
    %v803 = vtanh.pop %v802
    %805 = vrot.lane.b32.xlu0 %v803, 64
    %v806 = vpop.permute.xlu0 %805
    %v808 = vmul.f32 %v790, %v806
    %810 = vrot.lane.b32.xlu0 %v710, 32
    %v811 = vpop.permute.xlu0 %810
    %813 = vst.msk [vmem:[#allocation4 + $0x8] sm:$0xff] %vm142, %v811
    %815 = vrot.lane.b32.xlu0 %v808, 32
    %v816 = vpop.permute.xlu0 %815
    %818 = vst.msk [vmem:[#allocation5 + $0x30] sm:$0xff] %vm142, %v816
    %v819 = vld [vmem:[#allocation2 + $0x10] sm:$0xff]
    %v820 = vsel %vm142, %v811, 0
    %822 = vmatprep.subr.mxu0 0.0
    %823 = vmatpush1.msra.mxu0 %v400
    %824 = vmatprep.subr.mxu0 0.0
    %825 = vmatpush1.msra.mxu0 %v401
    %826 = vmatprep.subr.mxu0 0.0
    %827 = vmatpush1.msra.mxu0 %v402
    %828 = vmatprep.subr.mxu0 0.0
    %829 = vmatpush1.msra.mxu0 %v403
    %830 = vmatprep.subr.mxu0 0.0
    %831 = vmatpush1.msra.mxu0 0.0
    %832 = vmatprep.subr.mxu0 0.0
    %833 = vmatpush1.msra.mxu0 0.0
    %834 = vmatprep.subr.mxu0 0.0
    %835 = vmatpush1.msra.mxu0 0.0
    %836 = vmatprep.subr.mxu0 0.0
    %837 = vmatpush1.msra.mxu0 0.0
    %838 = vmatprep.subr.mxu0 0.0
    %839 = vmatpush1.msra.mxu0 0.0
    %840 = vmatprep.subr.mxu0 0.0
    %841 = vmatpush1.msra.mxu0 0.0
    %842 = vmatprep.subr.mxu0 0.0
    %843 = vmatpush1.msra.mxu0 0.0
    %844 = vmatprep.subr.mxu0 0.0
    %845 = vmatpush1.msra.mxu0 0.0
    %846 = vmatprep.subr.mxu0 0.0
    %847 = vmatpush1.msra.mxu0 0.0
    %848 = vmatprep.subr.mxu0 0.0
    %849 = vmatpush1.msra.mxu0 0.0
    %850 = vmatprep.subr.mxu0 0.0
    %851 = vmatpush1.msra.mxu0 0.0
    %852 = vmatprep.subr.mxu0 0.0
    %853 = vmatpush1.msra.mxu0 0.0
    %854 = vmatprep.subr.mxu0 0.0
    %855 = vmatpush1.msra.mxu0 0.0
    %856 = vmatprep.subr.mxu0 0.0
    %857 = vmatpush1.msra.mxu0 0.0
    %858 = vmatprep.subr.mxu0 0.0
    %859 = vmatpush1.msra.mxu0 0.0
    %860 = vmatprep.subr.mxu0 0.0
    %861 = vmatpush1.msra.mxu0 0.0
    %862 = vmatprep.subr.mxu0 0.0
    %863 = vmatpush1.msra.mxu0 0.0
    %864 = vmatprep.subr.mxu0 0.0
    %865 = vmatpush1.msra.mxu0 0.0
    %866 = vmatprep.subr.mxu0 0.0
    %867 = vmatpush1.msra.mxu0 0.0
    %868 = vmatprep.subr.mxu0 0.0
    %869 = vmatpush1.msra.mxu0 0.0
    %870 = vmatprep.subr.mxu0 0.0
    %871 = vmatpush1.msra.mxu0 0.0
    %872 = vmatprep.subr.mxu0 0.0
    %873 = vmatpush1.msra.mxu0 0.0
    %874 = vmatprep.subr.mxu0 0.0
    %875 = vmatpush1.msra.mxu0 0.0
    %876 = vmatprep.subr.mxu0 0.0
    %877 = vmatpush1.msra.mxu0 0.0
    %878 = vmatprep.subr.mxu0 0.0
    %879 = vmatpush1.msra.mxu0 0.0
    %880 = vmatprep.subr.mxu0 0.0
    %881 = vmatpush1.msra.mxu0 0.0
    %882 = vmatprep.subr.mxu0 0.0
    %883 = vmatpush1.msra.mxu0 0.0
    %884 = vmatprep.subr.mxu0 0.0
    %885 = vmatpush1.msra.mxu0 0.0
    %886 = vmatprep.mubr.f32.mxu0 0.0
    %887 = vmatmul.mubr.f32.gmra.mrb[0].mxu0 %v820
    %v888 = vpop.f32.mrb[0].mxu0
    %v889 = vadd.f32 0.0, %v888
    %v890 = vpop.f32.mrb[0].mxu0
    %891 = vdwg.mxu0
    %v892 = vadd.f32 %v819, %v889
    %v893 = vxor.u32 %v892, 2147483648
    %v894 = vmul.f32 %v893, 1.442695
    %v895 = vpow.pop %v894
    %v896 = vadd.f32 %v895, 1.0
    %v897 = vrcp.pop %v896
    %v898 = vmul.f32 1.0, %v897
    %v899 = vtanh.pop %v892
    %v900 = vmul.f32 %v898, %v704
    %902 = vrot.lane.b32.xlu0 %v899, 64
    %v903 = vpop.permute.xlu0 %902
    %v905 = vmul.f32 %v898, %v903
    %907 = vrot.lane.b32.xlu0 %v905, 32
    %v908 = vpop.permute.xlu0 %907
    %v910 = vadd.f32 %v900, %v908
    %v911 = vtanh.pop %v910
    %913 = vrot.lane.b32.xlu0 %v911, 64
    %v914 = vpop.permute.xlu0 %913
    %v916 = vmul.f32 %v898, %v914
    %v917 = vld [vmem:[#allocation3 + $0x28] sm:$0xff]
    %v918 = vsel %vm142, %v816, 0
    %920 = vmatprep.subr.mxu0 0.0
    %921 = vmatpush1.msra.mxu0 %v404
    %922 = vmatprep.subr.mxu0 0.0
    %923 = vmatpush1.msra.mxu0 %v405
    %924 = vmatprep.subr.mxu0 0.0
    %925 = vmatpush1.msra.mxu0 %v406
    %926 = vmatprep.subr.mxu0 0.0
    %927 = vmatpush1.msra.mxu0 %v407
    %928 = vmatprep.subr.mxu0 0.0
    %929 = vmatpush1.msra.mxu0 0.0
    %930 = vmatprep.subr.mxu0 0.0
    %931 = vmatpush1.msra.mxu0 0.0
    %932 = vmatprep.subr.mxu0 0.0
    %933 = vmatpush1.msra.mxu0 0.0
    %934 = vmatprep.subr.mxu0 0.0
    %935 = vmatpush1.msra.mxu0 0.0
    %936 = vmatprep.subr.mxu0 0.0
    %937 = vmatpush1.msra.mxu0 0.0
    %938 = vmatprep.subr.mxu0 0.0
    %939 = vmatpush1.msra.mxu0 0.0
    %940 = vmatprep.subr.mxu0 0.0
    %941 = vmatpush1.msra.mxu0 0.0
    %942 = vmatprep.subr.mxu0 0.0
    %943 = vmatpush1.msra.mxu0 0.0
    %944 = vmatprep.subr.mxu0 0.0
    %945 = vmatpush1.msra.mxu0 0.0
    %946 = vmatprep.subr.mxu0 0.0
    %947 = vmatpush1.msra.mxu0 0.0
    %948 = vmatprep.subr.mxu0 0.0
    %949 = vmatpush1.msra.mxu0 0.0
    %950 = vmatprep.subr.mxu0 0.0
    %951 = vmatpush1.msra.mxu0 0.0
    %952 = vmatprep.subr.mxu0 0.0
    %953 = vmatpush1.msra.mxu0 0.0
    %954 = vmatprep.subr.mxu0 0.0
    %955 = vmatpush1.msra.mxu0 0.0
    %956 = vmatprep.subr.mxu0 0.0
    %957 = vmatpush1.msra.mxu0 0.0
    %958 = vmatprep.subr.mxu0 0.0
    %959 = vmatpush1.msra.mxu0 0.0
    %960 = vmatprep.subr.mxu0 0.0
    %961 = vmatpush1.msra.mxu0 0.0
    %962 = vmatprep.subr.mxu0 0.0
    %963 = vmatpush1.msra.mxu0 0.0
    %964 = vmatprep.subr.mxu0 0.0
    %965 = vmatpush1.msra.mxu0 0.0
    %966 = vmatprep.subr.mxu0 0.0
    %967 = vmatpush1.msra.mxu0 0.0
    %968 = vmatprep.subr.mxu0 0.0
    %969 = vmatpush1.msra.mxu0 0.0
    %970 = vmatprep.subr.mxu0 0.0
    %971 = vmatpush1.msra.mxu0 0.0
    %972 = vmatprep.subr.mxu0 0.0
    %973 = vmatpush1.msra.mxu0 0.0
    %974 = vmatprep.subr.mxu0 0.0
    %975 = vmatpush1.msra.mxu0 0.0
    %976 = vmatprep.subr.mxu0 0.0
    %977 = vmatpush1.msra.mxu0 0.0
    %978 = vmatprep.subr.mxu0 0.0
    %979 = vmatpush1.msra.mxu0 0.0
    %980 = vmatprep.subr.mxu0 0.0
    %981 = vmatpush1.msra.mxu0 0.0
    %982 = vmatprep.subr.mxu0 0.0
    %983 = vmatpush1.msra.mxu0 0.0
    %984 = vmatprep.mubr.f32.mxu0 0.0
    %985 = vmatmul.mubr.f32.gmra.mrb[0].mxu0 %v918
    %v986 = vpop.f32.mrb[0].mxu0
    %v987 = vadd.f32 0.0, %v986
    %v988 = vpop.f32.mrb[0].mxu0
    %989 = vdwg.mxu0
    %v990 = vadd.f32 %v917, %v987
    %v991 = vxor.u32 %v990, 2147483648
    %v992 = vmul.f32 %v991, 1.442695
    %v993 = vpow.pop %v992
    %v994 = vadd.f32 %v993, 1.0
    %v995 = vrcp.pop %v994
    %v996 = vmul.f32 1.0, %v995
    %v997 = vtanh.pop %v990
    %v998 = vmul.f32 %v996, %v802
    %1000 = vrot.lane.b32.xlu0 %v997, 64
    %v1001 = vpop.permute.xlu0 %1000
    %v1003 = vmul.f32 %v996, %v1001
    %1005 = vrot.lane.b32.xlu0 %v1003, 32
    %v1006 = vpop.permute.xlu0 %1005
    %v1008 = vadd.f32 %v998, %v1006
    %v1009 = vtanh.pop %v1008
    %1011 = vrot.lane.b32.xlu0 %v1009, 64
    %v1012 = vpop.permute.xlu0 %1011
    %v1014 = vmul.f32 %v996, %v1012
    %1016 = vrot.lane.b32.xlu0 %v916, 32
    %v1017 = vpop.permute.xlu0 %1016
    %1019 = vst.msk [vmem:[#allocation4 + $0x10] sm:$0xff] %vm142, %v1017
    %1021 = vrot.lane.b32.xlu0 %v1014, 32
    %v1022 = vpop.permute.xlu0 %1021
    %1024 = vst.msk [vmem:[#allocation5 + $0x28] sm:$0xff] %vm142, %v1022
    %v1025 = vld [vmem:[#allocation2 + $0x18] sm:$0xff]
    %v1026 = vsel %vm142, %v1017, 0
    %1028 = vmatprep.subr.mxu0 0.0
    %1029 = vmatpush1.msra.mxu0 %v400
    %1030 = vmatprep.subr.mxu0 0.0
    %1031 = vmatpush1.msra.mxu0 %v401
    %1032 = vmatprep.subr.mxu0 0.0
    %1033 = vmatpush1.msra.mxu0 %v402
    %1034 = vmatprep.subr.mxu0 0.0
    %1035 = vmatpush1.msra.mxu0 %v403
    %1036 = vmatprep.subr.mxu0 0.0
    %1037 = vmatpush1.msra.mxu0 0.0
    %1038 = vmatprep.subr.mxu0 0.0
    %1039 = vmatpush1.msra.mxu0 0.0
    %1040 = vmatprep.subr.mxu0 0.0
    %1041 = vmatpush1.msra.mxu0 0.0
    %1042 = vmatprep.subr.mxu0 0.0
    %1043 = vmatpush1.msra.mxu0 0.0
    %1044 = vmatprep.subr.mxu0 0.0
    %1045 = vmatpush1.msra.mxu0 0.0
    %1046 = vmatprep.subr.mxu0 0.0
    %1047 = vmatpush1.msra.mxu0 0.0
    %1048 = vmatprep.subr.mxu0 0.0
    %1049 = vmatpush1.msra.mxu0 0.0
    %1050 = vmatprep.subr.mxu0 0.0
    %1051 = vmatpush1.msra.mxu0 0.0
    %1052 = vmatprep.subr.mxu0 0.0
    %1053 = vmatpush1.msra.mxu0 0.0
    %1054 = vmatprep.subr.mxu0 0.0
    %1055 = vmatpush1.msra.mxu0 0.0
    %1056 = vmatprep.subr.mxu0 0.0
    %1057 = vmatpush1.msra.mxu0 0.0
    %1058 = vmatprep.subr.mxu0 0.0
    %1059 = vmatpush1.msra.mxu0 0.0
    %1060 = vmatprep.subr.mxu0 0.0
    %1061 = vmatpush1.msra.mxu0 0.0
    %1062 = vmatprep.subr.mxu0 0.0
    %1063 = vmatpush1.msra.mxu0 0.0
    %1064 = vmatprep.subr.mxu0 0.0
    %1065 = vmatpush1.msra.mxu0 0.0
    %1066 = vmatprep.subr.mxu0 0.0
    %1067 = vmatpush1.msra.mxu0 0.0
    %1068 = vmatprep.subr.mxu0 0.0
    %1069 = vmatpush1.msra.mxu0 0.0
    %1070 = vmatprep.subr.mxu0 0.0
    %1071 = vmatpush1.msra.mxu0 0.0
    %1072 = vmatprep.subr.mxu0 0.0
    %1073 = vmatpush1.msra.mxu0 0.0
    %1074 = vmatprep.subr.mxu0 0.0
    %1075 = vmatpush1.msra.mxu0 0.0
    %1076 = vmatprep.subr.mxu0 0.0
    %1077 = vmatpush1.msra.mxu0 0.0
    %1078 = vmatprep.subr.mxu0 0.0
    %1079 = vmatpush1.msra.mxu0 0.0
    %1080 = vmatprep.subr.mxu0 0.0
    %1081 = vmatpush1.msra.mxu0 0.0
    %1082 = vmatprep.subr.mxu0 0.0
    %1083 = vmatpush1.msra.mxu0 0.0
    %1084 = vmatprep.subr.mxu0 0.0
    %1085 = vmatpush1.msra.mxu0 0.0
    %1086 = vmatprep.subr.mxu0 0.0
    %1087 = vmatpush1.msra.mxu0 0.0
    %1088 = vmatprep.subr.mxu0 0.0
    %1089 = vmatpush1.msra.mxu0 0.0
    %1090 = vmatprep.subr.mxu0 0.0
    %1091 = vmatpush1.msra.mxu0 0.0
    %1092 = vmatprep.mubr.f32.mxu0 0.0
    %1093 = vmatmul.mubr.f32.gmra.mrb[0].mxu0 %v1026
    %v1094 = vpop.f32.mrb[0].mxu0
    %v1095 = vadd.f32 0.0, %v1094
    %v1096 = vpop.f32.mrb[0].mxu0
    %1097 = vdwg.mxu0
    %v1098 = vadd.f32 %v1025, %v1095
    %v1099 = vxor.u32 %v1098, 2147483648
    %v1100 = vmul.f32 %v1099, 1.442695
    %v1101 = vpow.pop %v1100
    %v1102 = vadd.f32 %v1101, 1.0
    %v1103 = vrcp.pop %v1102
    %v1104 = vmul.f32 1.0, %v1103
    %v1105 = vtanh.pop %v1098
    %v1106 = vmul.f32 %v1104, %v910
    %1108 = vrot.lane.b32.xlu0 %v1105, 64
    %v1109 = vpop.permute.xlu0 %1108
    %v1111 = vmul.f32 %v1104, %v1109
    %1113 = vrot.lane.b32.xlu0 %v1111, 32
    %v1114 = vpop.permute.xlu0 %1113
    %v1116 = vadd.f32 %v1106, %v1114
    %v1117 = vtanh.pop %v1116
    %1119 = vrot.lane.b32.xlu0 %v1117, 64
    %v1120 = vpop.permute.xlu0 %1119
    %v1122 = vmul.f32 %v1104, %v1120
    %v1123 = vld [vmem:[#allocation3 + $0x20] sm:$0xff]
    %v1124 = vsel %vm142, %v1022, 0
    %1126 = vmatprep.subr.mxu0 0.0
    %1127 = vmatpush1.msra.mxu0 %v404
    %1128 = vmatprep.subr.mxu0 0.0
    %1129 = vmatpush1.msra.mxu0 %v405
    %1130 = vmatprep.subr.mxu0 0.0
    %1131 = vmatpush1.msra.mxu0 %v406
    %1132 = vmatprep.subr.mxu0 0.0
    %1133 = vmatpush1.msra.mxu0 %v407
    %1134 = vmatprep.subr.mxu0 0.0
    %1135 = vmatpush1.msra.mxu0 0.0
    %1136 = vmatprep.subr.mxu0 0.0
    %1137 = vmatpush1.msra.mxu0 0.0
    %1138 = vmatprep.subr.mxu0 0.0
    %1139 = vmatpush1.msra.mxu0 0.0
    %1140 = vmatprep.subr.mxu0 0.0
    %1141 = vmatpush1.msra.mxu0 0.0
    %1142 = vmatprep.subr.mxu0 0.0
    %1143 = vmatpush1.msra.mxu0 0.0
    %1144 = vmatprep.subr.mxu0 0.0
    %1145 = vmatpush1.msra.mxu0 0.0
    %1146 = vmatprep.subr.mxu0 0.0
    %1147 = vmatpush1.msra.mxu0 0.0
    %1148 = vmatprep.subr.mxu0 0.0
    %1149 = vmatpush1.msra.mxu0 0.0
    %1150 = vmatprep.subr.mxu0 0.0
    %1151 = vmatpush1.msra.mxu0 0.0
    %1152 = vmatprep.subr.mxu0 0.0
    %1153 = vmatpush1.msra.mxu0 0.0
    %1154 = vmatprep.subr.mxu0 0.0
    %1155 = vmatpush1.msra.mxu0 0.0
    %1156 = vmatprep.subr.mxu0 0.0
    %1157 = vmatpush1.msra.mxu0 0.0
    %1158 = vmatprep.subr.mxu0 0.0
    %1159 = vmatpush1.msra.mxu0 0.0
    %1160 = vmatprep.subr.mxu0 0.0
    %1161 = vmatpush1.msra.mxu0 0.0
    %1162 = vmatprep.subr.mxu0 0.0
    %1163 = vmatpush1.msra.mxu0 0.0
    %1164 = vmatprep.subr.mxu0 0.0
    %1165 = vmatpush1.msra.mxu0 0.0
    %1166 = vmatprep.subr.mxu0 0.0
    %1167 = vmatpush1.msra.mxu0 0.0
    %1168 = vmatprep.subr.mxu0 0.0
    %1169 = vmatpush1.msra.mxu0 0.0
    %1170 = vmatprep.subr.mxu0 0.0
    %1171 = vmatpush1.msra.mxu0 0.0
    %1172 = vmatprep.subr.mxu0 0.0
    %1173 = vmatpush1.msra.mxu0 0.0
    %1174 = vmatprep.subr.mxu0 0.0
    %1175 = vmatpush1.msra.mxu0 0.0
    %1176 = vmatprep.subr.mxu0 0.0
    %1177 = vmatpush1.msra.mxu0 0.0
    %1178 = vmatprep.subr.mxu0 0.0
    %1179 = vmatpush1.msra.mxu0 0.0
    %1180 = vmatprep.subr.mxu0 0.0
    %1181 = vmatpush1.msra.mxu0 0.0
    %1182 = vmatprep.subr.mxu0 0.0
    %1183 = vmatpush1.msra.mxu0 0.0
    %1184 = vmatprep.subr.mxu0 0.0
    %1185 = vmatpush1.msra.mxu0 0.0
    %1186 = vmatprep.subr.mxu0 0.0
    %1187 = vmatpush1.msra.mxu0 0.0
    %1188 = vmatprep.subr.mxu0 0.0
    %1189 = vmatpush1.msra.mxu0 0.0
    %1190 = vmatprep.mubr.f32.mxu0 0.0
    %1191 = vmatmul.mubr.f32.gmra.mrb[0].mxu0 %v1124
    %v1192 = vpop.f32.mrb[0].mxu0
    %v1193 = vadd.f32 0.0, %v1192
    %v1194 = vpop.f32.mrb[0].mxu0
    %1195 = vdwg.mxu0
    %v1196 = vadd.f32 %v1123, %v1193
    %v1197 = vxor.u32 %v1196, 2147483648
    %v1198 = vmul.f32 %v1197, 1.442695
    %v1199 = vpow.pop %v1198
    %v1200 = vadd.f32 %v1199, 1.0
    %v1201 = vrcp.pop %v1200
    %v1202 = vmul.f32 1.0, %v1201
    %v1203 = vtanh.pop %v1196
    %v1204 = vmul.f32 %v1202, %v1008
    %1206 = vrot.lane.b32.xlu0 %v1203, 64
    %v1207 = vpop.permute.xlu0 %1206
    %v1209 = vmul.f32 %v1202, %v1207
    %1211 = vrot.lane.b32.xlu0 %v1209, 32
    %v1212 = vpop.permute.xlu0 %1211
    %v1214 = vadd.f32 %v1204, %v1212
    %v1215 = vtanh.pop %v1214
    %1217 = vrot.lane.b32.xlu0 %v1215, 64
    %v1218 = vpop.permute.xlu0 %1217
    %v1220 = vmul.f32 %v1202, %v1218
    %1222 = vrot.lane.b32.xlu0 %v1122, 32
    %v1223 = vpop.permute.xlu0 %1222
    %1225 = vst.msk [vmem:[#allocation4 + $0x18] sm:$0xff] %vm142, %v1223
    %1227 = vrot.lane.b32.xlu0 %v1220, 32
    %v1228 = vpop.permute.xlu0 %1227
    %1230 = vst.msk [vmem:[#allocation5 + $0x20] sm:$0xff] %vm142, %v1228
    %v1231 = vld [vmem:[#allocation2 + $0x20] sm:$0xff]
    %v1232 = vsel %vm142, %v1223, 0
    %1234 = vmatprep.subr.mxu0 0.0
    %1235 = vmatpush1.msra.mxu0 %v400
    %1236 = vmatprep.subr.mxu0 0.0
    %1237 = vmatpush1.msra.mxu0 %v401
    %1238 = vmatprep.subr.mxu0 0.0
    %1239 = vmatpush1.msra.mxu0 %v402
    %1240 = vmatprep.subr.mxu0 0.0
    %1241 = vmatpush1.msra.mxu0 %v403
    %1242 = vmatprep.subr.mxu0 0.0
    %1243 = vmatpush1.msra.mxu0 0.0
    %1244 = vmatprep.subr.mxu0 0.0
    %1245 = vmatpush1.msra.mxu0 0.0
    %1246 = vmatprep.subr.mxu0 0.0
    %1247 = vmatpush1.msra.mxu0 0.0
    %1248 = vmatprep.subr.mxu0 0.0
    %1249 = vmatpush1.msra.mxu0 0.0
    %1250 = vmatprep.subr.mxu0 0.0
    %1251 = vmatpush1.msra.mxu0 0.0
    %1252 = vmatprep.subr.mxu0 0.0
    %1253 = vmatpush1.msra.mxu0 0.0
    %1254 = vmatprep.subr.mxu0 0.0
    %1255 = vmatpush1.msra.mxu0 0.0
    %1256 = vmatprep.subr.mxu0 0.0
    %1257 = vmatpush1.msra.mxu0 0.0
    %1258 = vmatprep.subr.mxu0 0.0
    %1259 = vmatpush1.msra.mxu0 0.0
    %1260 = vmatprep.subr.mxu0 0.0
    %1261 = vmatpush1.msra.mxu0 0.0
    %1262 = vmatprep.subr.mxu0 0.0
    %1263 = vmatpush1.msra.mxu0 0.0
    %1264 = vmatprep.subr.mxu0 0.0
    %1265 = vmatpush1.msra.mxu0 0.0
    %1266 = vmatprep.subr.mxu0 0.0
    %1267 = vmatpush1.msra.mxu0 0.0
    %1268 = vmatprep.subr.mxu0 0.0
    %1269 = vmatpush1.msra.mxu0 0.0
    %1270 = vmatprep.subr.mxu0 0.0
    %1271 = vmatpush1.msra.mxu0 0.0
    %1272 = vmatprep.subr.mxu0 0.0
    %1273 = vmatpush1.msra.mxu0 0.0
    %1274 = vmatprep.subr.mxu0 0.0
    %1275 = vmatpush1.msra.mxu0 0.0
    %1276 = vmatprep.subr.mxu0 0.0
    %1277 = vmatpush1.msra.mxu0 0.0
    %1278 = vmatprep.subr.mxu0 0.0
    %1279 = vmatpush1.msra.mxu0 0.0
    %1280 = vmatprep.subr.mxu0 0.0
    %1281 = vmatpush1.msra.mxu0 0.0
    %1282 = vmatprep.subr.mxu0 0.0
    %1283 = vmatpush1.msra.mxu0 0.0
    %1284 = vmatprep.subr.mxu0 0.0
    %1285 = vmatpush1.msra.mxu0 0.0
    %1286 = vmatprep.subr.mxu0 0.0
    %1287 = vmatpush1.msra.mxu0 0.0
    %1288 = vmatprep.subr.mxu0 0.0
    %1289 = vmatpush1.msra.mxu0 0.0
    %1290 = vmatprep.subr.mxu0 0.0
    %1291 = vmatpush1.msra.mxu0 0.0
    %1292 = vmatprep.subr.mxu0 0.0
    %1293 = vmatpush1.msra.mxu0 0.0
    %1294 = vmatprep.subr.mxu0 0.0
    %1295 = vmatpush1.msra.mxu0 0.0
    %1296 = vmatprep.subr.mxu0 0.0
    %1297 = vmatpush1.msra.mxu0 0.0
    %1298 = vmatprep.mubr.f32.mxu0 0.0
    %1299 = vmatmul.mubr.f32.gmra.mrb[0].mxu0 %v1232
    %v1300 = vpop.f32.mrb[0].mxu0
    %v1301 = vadd.f32 0.0, %v1300
    %v1302 = vpop.f32.mrb[0].mxu0
    %1303 = vdwg.mxu0
    %v1304 = vadd.f32 %v1231, %v1301
    %v1305 = vxor.u32 %v1304, 2147483648
    %v1306 = vmul.f32 %v1305, 1.442695
    %v1307 = vpow.pop %v1306
    %v1308 = vadd.f32 %v1307, 1.0
    %v1309 = vrcp.pop %v1308
    %v1310 = vmul.f32 1.0, %v1309
    %v1311 = vtanh.pop %v1304
    %v1312 = vmul.f32 %v1310, %v1116
    %1314 = vrot.lane.b32.xlu0 %v1311, 64
    %v1315 = vpop.permute.xlu0 %1314
    %v1317 = vmul.f32 %v1310, %v1315
    %1319 = vrot.lane.b32.xlu0 %v1317, 32
    %v1320 = vpop.permute.xlu0 %1319
    %v1322 = vadd.f32 %v1312, %v1320
    %v1323 = vtanh.pop %v1322
    %1325 = vrot.lane.b32.xlu0 %v1323, 64
    %v1326 = vpop.permute.xlu0 %1325
    %v1328 = vmul.f32 %v1310, %v1326
    %v1329 = vld [vmem:[#allocation3 + $0x18] sm:$0xff]
    %v1330 = vsel %vm142, %v1228, 0
    %1332 = vmatprep.subr.mxu0 0.0
    %1333 = vmatpush1.msra.mxu0 %v404
    %1334 = vmatprep.subr.mxu0 0.0
    %1335 = vmatpush1.msra.mxu0 %v405
    %1336 = vmatprep.subr.mxu0 0.0
    %1337 = vmatpush1.msra.mxu0 %v406
    %1338 = vmatprep.subr.mxu0 0.0
    %1339 = vmatpush1.msra.mxu0 %v407
    %1340 = vmatprep.subr.mxu0 0.0
    %1341 = vmatpush1.msra.mxu0 0.0
    %1342 = vmatprep.subr.mxu0 0.0
    %1343 = vmatpush1.msra.mxu0 0.0
    %1344 = vmatprep.subr.mxu0 0.0
    %1345 = vmatpush1.msra.mxu0 0.0
    %1346 = vmatprep.subr.mxu0 0.0
    %1347 = vmatpush1.msra.mxu0 0.0
    %1348 = vmatprep.subr.mxu0 0.0
    %1349 = vmatpush1.msra.mxu0 0.0
    %1350 = vmatprep.subr.mxu0 0.0
    %1351 = vmatpush1.msra.mxu0 0.0
    %1352 = vmatprep.subr.mxu0 0.0
    %1353 = vmatpush1.msra.mxu0 0.0
    %1354 = vmatprep.subr.mxu0 0.0
    %1355 = vmatpush1.msra.mxu0 0.0
    %1356 = vmatprep.subr.mxu0 0.0
    %1357 = vmatpush1.msra.mxu0 0.0
    %1358 = vmatprep.subr.mxu0 0.0
    %1359 = vmatpush1.msra.mxu0 0.0
    %1360 = vmatprep.subr.mxu0 0.0
    %1361 = vmatpush1.msra.mxu0 0.0
    %1362 = vmatprep.subr.mxu0 0.0
    %1363 = vmatpush1.msra.mxu0 0.0
    %1364 = vmatprep.subr.mxu0 0.0
    %1365 = vmatpush1.msra.mxu0 0.0
    %1366 = vmatprep.subr.mxu0 0.0
    %1367 = vmatpush1.msra.mxu0 0.0
    %1368 = vmatprep.subr.mxu0 0.0
    %1369 = vmatpush1.msra.mxu0 0.0
    %1370 = vmatprep.subr.mxu0 0.0
    %1371 = vmatpush1.msra.mxu0 0.0
    %1372 = vmatprep.subr.mxu0 0.0
    %1373 = vmatpush1.msra.mxu0 0.0
    %1374 = vmatprep.subr.mxu0 0.0
    %1375 = vmatpush1.msra.mxu0 0.0
    %1376 = vmatprep.subr.mxu0 0.0
    %1377 = vmatpush1.msra.mxu0 0.0
    %1378 = vmatprep.subr.mxu0 0.0
    %1379 = vmatpush1.msra.mxu0 0.0
    %1380 = vmatprep.subr.mxu0 0.0
    %1381 = vmatpush1.msra.mxu0 0.0
    %1382 = vmatprep.subr.mxu0 0.0
    %1383 = vmatpush1.msra.mxu0 0.0
    %1384 = vmatprep.subr.mxu0 0.0
    %1385 = vmatpush1.msra.mxu0 0.0
    %1386 = vmatprep.subr.mxu0 0.0
    %1387 = vmatpush1.msra.mxu0 0.0
    %1388 = vmatprep.subr.mxu0 0.0
    %1389 = vmatpush1.msra.mxu0 0.0
    %1390 = vmatprep.subr.mxu0 0.0
    %1391 = vmatpush1.msra.mxu0 0.0
    %1392 = vmatprep.subr.mxu0 0.0
    %1393 = vmatpush1.msra.mxu0 0.0
    %1394 = vmatprep.subr.mxu0 0.0
    %1395 = vmatpush1.msra.mxu0 0.0
    %1396 = vmatprep.mubr.f32.mxu0 0.0
    %1397 = vmatmul.mubr.f32.gmra.mrb[0].mxu0 %v1330
    %v1398 = vpop.f32.mrb[0].mxu0
    %v1399 = vadd.f32 0.0, %v1398
    %v1400 = vpop.f32.mrb[0].mxu0
    %1401 = vdwg.mxu0
    %v1402 = vadd.f32 %v1329, %v1399
    %v1403 = vxor.u32 %v1402, 2147483648
    %v1404 = vmul.f32 %v1403, 1.442695
    %v1405 = vpow.pop %v1404
    %v1406 = vadd.f32 %v1405, 1.0
    %v1407 = vrcp.pop %v1406
    %v1408 = vmul.f32 1.0, %v1407
    %v1409 = vtanh.pop %v1402
    %v1410 = vmul.f32 %v1408, %v1214
    %1412 = vrot.lane.b32.xlu0 %v1409, 64
    %v1413 = vpop.permute.xlu0 %1412
    %v1415 = vmul.f32 %v1408, %v1413
    %1417 = vrot.lane.b32.xlu0 %v1415, 32
    %v1418 = vpop.permute.xlu0 %1417
    %v1420 = vadd.f32 %v1410, %v1418
    %v1421 = vtanh.pop %v1420
    %1423 = vrot.lane.b32.xlu0 %v1421, 64
    %v1424 = vpop.permute.xlu0 %1423
    %v1426 = vmul.f32 %v1408, %v1424
    %1428 = vrot.lane.b32.xlu0 %v1328, 32
    %v1429 = vpop.permute.xlu0 %1428
    %1431 = vst.msk [vmem:[#allocation4 + $0x20] sm:$0xff] %vm142, %v1429
    %1433 = vrot.lane.b32.xlu0 %v1426, 32
    %v1434 = vpop.permute.xlu0 %1433
    %1436 = vst.msk [vmem:[#allocation5 + $0x18] sm:$0xff] %vm142, %v1434
    %v1437 = vld [vmem:[#allocation2 + $0x28] sm:$0xff]
    %v1438 = vsel %vm142, %v1429, 0
    %1440 = vmatprep.subr.mxu0 0.0
    %1441 = vmatpush1.msra.mxu0 %v400
    %1442 = vmatprep.subr.mxu0 0.0
    %1443 = vmatpush1.msra.mxu0 %v401
    %1444 = vmatprep.subr.mxu0 0.0
    %1445 = vmatpush1.msra.mxu0 %v402
    %1446 = vmatprep.subr.mxu0 0.0
    %1447 = vmatpush1.msra.mxu0 %v403
    %1448 = vmatprep.subr.mxu0 0.0
    %1449 = vmatpush1.msra.mxu0 0.0
    %1450 = vmatprep.subr.mxu0 0.0
    %1451 = vmatpush1.msra.mxu0 0.0
    %1452 = vmatprep.subr.mxu0 0.0
    %1453 = vmatpush1.msra.mxu0 0.0
    %1454 = vmatprep.subr.mxu0 0.0
    %1455 = vmatpush1.msra.mxu0 0.0
    %1456 = vmatprep.subr.mxu0 0.0
    %1457 = vmatpush1.msra.mxu0 0.0
    %1458 = vmatprep.subr.mxu0 0.0
    %1459 = vmatpush1.msra.mxu0 0.0
    %1460 = vmatprep.subr.mxu0 0.0
    %1461 = vmatpush1.msra.mxu0 0.0
    %1462 = vmatprep.subr.mxu0 0.0
    %1463 = vmatpush1.msra.mxu0 0.0
    %1464 = vmatprep.subr.mxu0 0.0
    %1465 = vmatpush1.msra.mxu0 0.0
    %1466 = vmatprep.subr.mxu0 0.0
    %1467 = vmatpush1.msra.mxu0 0.0
    %1468 = vmatprep.subr.mxu0 0.0
    %1469 = vmatpush1.msra.mxu0 0.0
    %1470 = vmatprep.subr.mxu0 0.0
    %1471 = vmatpush1.msra.mxu0 0.0
    %1472 = vmatprep.subr.mxu0 0.0
    %1473 = vmatpush1.msra.mxu0 0.0
    %1474 = vmatprep.subr.mxu0 0.0
    %1475 = vmatpush1.msra.mxu0 0.0
    %1476 = vmatprep.subr.mxu0 0.0
    %1477 = vmatpush1.msra.mxu0 0.0
    %1478 = vmatprep.subr.mxu0 0.0
    %1479 = vmatpush1.msra.mxu0 0.0
    %1480 = vmatprep.subr.mxu0 0.0
    %1481 = vmatpush1.msra.mxu0 0.0
    %1482 = vmatprep.subr.mxu0 0.0
    %1483 = vmatpush1.msra.mxu0 0.0
    %1484 = vmatprep.subr.mxu0 0.0
    %1485 = vmatpush1.msra.mxu0 0.0
    %1486 = vmatprep.subr.mxu0 0.0
    %1487 = vmatpush1.msra.mxu0 0.0
    %1488 = vmatprep.subr.mxu0 0.0
    %1489 = vmatpush1.msra.mxu0 0.0
    %1490 = vmatprep.subr.mxu0 0.0
    %1491 = vmatpush1.msra.mxu0 0.0
    %1492 = vmatprep.subr.mxu0 0.0
    %1493 = vmatpush1.msra.mxu0 0.0
    %1494 = vmatprep.subr.mxu0 0.0
    %1495 = vmatpush1.msra.mxu0 0.0
    %1496 = vmatprep.subr.mxu0 0.0
    %1497 = vmatpush1.msra.mxu0 0.0
    %1498 = vmatprep.subr.mxu0 0.0
    %1499 = vmatpush1.msra.mxu0 0.0
    %1500 = vmatprep.subr.mxu0 0.0
    %1501 = vmatpush1.msra.mxu0 0.0
    %1502 = vmatprep.subr.mxu0 0.0
    %1503 = vmatpush1.msra.mxu0 0.0
    %1504 = vmatprep.mubr.f32.mxu0 0.0
    %1505 = vmatmul.mubr.f32.gmra.mrb[0].mxu0 %v1438
    %v1506 = vpop.f32.mrb[0].mxu0
    %v1507 = vadd.f32 0.0, %v1506
    %v1508 = vpop.f32.mrb[0].mxu0
    %1509 = vdwg.mxu0
    %v1510 = vadd.f32 %v1437, %v1507
    %v1511 = vxor.u32 %v1510, 2147483648
    %v1512 = vmul.f32 %v1511, 1.442695
    %v1513 = vpow.pop %v1512
    %v1514 = vadd.f32 %v1513, 1.0
    %v1515 = vrcp.pop %v1514
    %v1516 = vmul.f32 1.0, %v1515
    %v1517 = vtanh.pop %v1510
    %v1518 = vmul.f32 %v1516, %v1322
    %1520 = vrot.lane.b32.xlu0 %v1517, 64
    %v1521 = vpop.permute.xlu0 %1520
    %v1523 = vmul.f32 %v1516, %v1521
    %1525 = vrot.lane.b32.xlu0 %v1523, 32
    %v1526 = vpop.permute.xlu0 %1525
    %v1528 = vadd.f32 %v1518, %v1526
    %v1529 = vtanh.pop %v1528
    %1531 = vrot.lane.b32.xlu0 %v1529, 64
    %v1532 = vpop.permute.xlu0 %1531
    %v1534 = vmul.f32 %v1516, %v1532
    %v1535 = vld [vmem:[#allocation3 + $0x10] sm:$0xff]
    %v1536 = vsel %vm142, %v1434, 0
    %1538 = vmatprep.subr.mxu0 0.0
    %1539 = vmatpush1.msra.mxu0 %v404
    %1540 = vmatprep.subr.mxu0 0.0
    %1541 = vmatpush1.msra.mxu0 %v405
    %1542 = vmatprep.subr.mxu0 0.0
    %1543 = vmatpush1.msra.mxu0 %v406
    %1544 = vmatprep.subr.mxu0 0.0
    %1545 = vmatpush1.msra.mxu0 %v407
    %1546 = vmatprep.subr.mxu0 0.0
    %1547 = vmatpush1.msra.mxu0 0.0
    %1548 = vmatprep.subr.mxu0 0.0
    %1549 = vmatpush1.msra.mxu0 0.0
    %1550 = vmatprep.subr.mxu0 0.0
    %1551 = vmatpush1.msra.mxu0 0.0
    %1552 = vmatprep.subr.mxu0 0.0
    %1553 = vmatpush1.msra.mxu0 0.0
    %1554 = vmatprep.subr.mxu0 0.0
    %1555 = vmatpush1.msra.mxu0 0.0
    %1556 = vmatprep.subr.mxu0 0.0
    %1557 = vmatpush1.msra.mxu0 0.0
    %1558 = vmatprep.subr.mxu0 0.0
    %1559 = vmatpush1.msra.mxu0 0.0
    %1560 = vmatprep.subr.mxu0 0.0
    %1561 = vmatpush1.msra.mxu0 0.0
    %1562 = vmatprep.subr.mxu0 0.0
    %1563 = vmatpush1.msra.mxu0 0.0
    %1564 = vmatprep.subr.mxu0 0.0
    %1565 = vmatpush1.msra.mxu0 0.0
    %1566 = vmatprep.subr.mxu0 0.0
    %1567 = vmatpush1.msra.mxu0 0.0
    %1568 = vmatprep.subr.mxu0 0.0
    %1569 = vmatpush1.msra.mxu0 0.0
    %1570 = vmatprep.subr.mxu0 0.0
    %1571 = vmatpush1.msra.mxu0 0.0
    %1572 = vmatprep.subr.mxu0 0.0
    %1573 = vmatpush1.msra.mxu0 0.0
    %1574 = vmatprep.subr.mxu0 0.0
    %1575 = vmatpush1.msra.mxu0 0.0
    %1576 = vmatprep.subr.mxu0 0.0
    %1577 = vmatpush1.msra.mxu0 0.0
    %1578 = vmatprep.subr.mxu0 0.0
    %1579 = vmatpush1.msra.mxu0 0.0
    %1580 = vmatprep.subr.mxu0 0.0
    %1581 = vmatpush1.msra.mxu0 0.0
    %1582 = vmatprep.subr.mxu0 0.0
    %1583 = vmatpush1.msra.mxu0 0.0
    %1584 = vmatprep.subr.mxu0 0.0
    %1585 = vmatpush1.msra.mxu0 0.0
    %1586 = vmatprep.subr.mxu0 0.0
    %1587 = vmatpush1.msra.mxu0 0.0
    %1588 = vmatprep.subr.mxu0 0.0
    %1589 = vmatpush1.msra.mxu0 0.0
    %1590 = vmatprep.subr.mxu0 0.0
    %1591 = vmatpush1.msra.mxu0 0.0
    %1592 = vmatprep.subr.mxu0 0.0
    %1593 = vmatpush1.msra.mxu0 0.0
    %1594 = vmatprep.subr.mxu0 0.0
    %1595 = vmatpush1.msra.mxu0 0.0
    %1596 = vmatprep.subr.mxu0 0.0
    %1597 = vmatpush1.msra.mxu0 0.0
    %1598 = vmatprep.subr.mxu0 0.0
    %1599 = vmatpush1.msra.mxu0 0.0
    %1600 = vmatprep.subr.mxu0 0.0
    %1601 = vmatpush1.msra.mxu0 0.0
    %1602 = vmatprep.mubr.f32.mxu0 0.0
    %1603 = vmatmul.mubr.f32.gmra.mrb[0].mxu0 %v1536
    %v1604 = vpop.f32.mrb[0].mxu0
    %v1605 = vadd.f32 0.0, %v1604
    %v1606 = vpop.f32.mrb[0].mxu0
    %1607 = vdwg.mxu0
    %v1608 = vadd.f32 %v1535, %v1605
    %v1609 = vxor.u32 %v1608, 2147483648
    %v1610 = vmul.f32 %v1609, 1.442695
    %v1611 = vpow.pop %v1610
    %v1612 = vadd.f32 %v1611, 1.0
    %v1613 = vrcp.pop %v1612
    %v1614 = vmul.f32 1.0, %v1613
    %v1615 = vtanh.pop %v1608
    %v1616 = vmul.f32 %v1614, %v1420
    %1618 = vrot.lane.b32.xlu0 %v1615, 64
    %v1619 = vpop.permute.xlu0 %1618
    %v1621 = vmul.f32 %v1614, %v1619
    %1623 = vrot.lane.b32.xlu0 %v1621, 32
    %v1624 = vpop.permute.xlu0 %1623
    %v1626 = vadd.f32 %v1616, %v1624
    %v1627 = vtanh.pop %v1626
    %1629 = vrot.lane.b32.xlu0 %v1627, 64
    %v1630 = vpop.permute.xlu0 %1629
    %v1632 = vmul.f32 %v1614, %v1630
    %1634 = vrot.lane.b32.xlu0 %v1534, 32
    %v1635 = vpop.permute.xlu0 %1634
    %1637 = vst.msk [vmem:[#allocation4 + $0x28] sm:$0xff] %vm142, %v1635
    %1639 = vrot.lane.b32.xlu0 %v1632, 32
    %v1640 = vpop.permute.xlu0 %1639
    %1642 = vst.msk [vmem:[#allocation5 + $0x10] sm:$0xff] %vm142, %v1640
    %v1643 = vld [vmem:[#allocation2 + $0x30] sm:$0xff]
    %v1644 = vsel %vm142, %v1635, 0
    %1646 = vmatprep.subr.mxu0 0.0
    %1647 = vmatpush1.msra.mxu0 %v400
    %1648 = vmatprep.subr.mxu0 0.0
    %1649 = vmatpush1.msra.mxu0 %v401
    %1650 = vmatprep.subr.mxu0 0.0
    %1651 = vmatpush1.msra.mxu0 %v402
    %1652 = vmatprep.subr.mxu0 0.0
    %1653 = vmatpush1.msra.mxu0 %v403
    %1654 = vmatprep.subr.mxu0 0.0
    %1655 = vmatpush1.msra.mxu0 0.0
    %1656 = vmatprep.subr.mxu0 0.0
    %1657 = vmatpush1.msra.mxu0 0.0
    %1658 = vmatprep.subr.mxu0 0.0
    %1659 = vmatpush1.msra.mxu0 0.0
    %1660 = vmatprep.subr.mxu0 0.0
    %1661 = vmatpush1.msra.mxu0 0.0
    %1662 = vmatprep.subr.mxu0 0.0
    %1663 = vmatpush1.msra.mxu0 0.0
    %1664 = vmatprep.subr.mxu0 0.0
    %1665 = vmatpush1.msra.mxu0 0.0
    %1666 = vmatprep.subr.mxu0 0.0
    %1667 = vmatpush1.msra.mxu0 0.0
    %1668 = vmatprep.subr.mxu0 0.0
    %1669 = vmatpush1.msra.mxu0 0.0
    %1670 = vmatprep.subr.mxu0 0.0
    %1671 = vmatpush1.msra.mxu0 0.0
    %1672 = vmatprep.subr.mxu0 0.0
    %1673 = vmatpush1.msra.mxu0 0.0
    %1674 = vmatprep.subr.mxu0 0.0
    %1675 = vmatpush1.msra.mxu0 0.0
    %1676 = vmatprep.subr.mxu0 0.0
    %1677 = vmatpush1.msra.mxu0 0.0
    %1678 = vmatprep.subr.mxu0 0.0
    %1679 = vmatpush1.msra.mxu0 0.0
    %1680 = vmatprep.subr.mxu0 0.0
    %1681 = vmatpush1.msra.mxu0 0.0
    %1682 = vmatprep.subr.mxu0 0.0
    %1683 = vmatpush1.msra.mxu0 0.0
    %1684 = vmatprep.subr.mxu0 0.0
    %1685 = vmatpush1.msra.mxu0 0.0
    %1686 = vmatprep.subr.mxu0 0.0
    %1687 = vmatpush1.msra.mxu0 0.0
    %1688 = vmatprep.subr.mxu0 0.0
    %1689 = vmatpush1.msra.mxu0 0.0
    %1690 = vmatprep.subr.mxu0 0.0
    %1691 = vmatpush1.msra.mxu0 0.0
    %1692 = vmatprep.subr.mxu0 0.0
    %1693 = vmatpush1.msra.mxu0 0.0
    %1694 = vmatprep.subr.mxu0 0.0
    %1695 = vmatpush1.msra.mxu0 0.0
    %1696 = vmatprep.subr.mxu0 0.0
    %1697 = vmatpush1.msra.mxu0 0.0
    %1698 = vmatprep.subr.mxu0 0.0
    %1699 = vmatpush1.msra.mxu0 0.0
    %1700 = vmatprep.subr.mxu0 0.0
    %1701 = vmatpush1.msra.mxu0 0.0
    %1702 = vmatprep.subr.mxu0 0.0
    %1703 = vmatpush1.msra.mxu0 0.0
    %1704 = vmatprep.subr.mxu0 0.0
    %1705 = vmatpush1.msra.mxu0 0.0
    %1706 = vmatprep.subr.mxu0 0.0
    %1707 = vmatpush1.msra.mxu0 0.0
    %1708 = vmatprep.subr.mxu0 0.0
    %1709 = vmatpush1.msra.mxu0 0.0
    %1710 = vmatprep.mubr.f32.mxu0 0.0
    %1711 = vmatmul.mubr.f32.gmra.mrb[0].mxu0 %v1644
    %v1712 = vpop.f32.mrb[0].mxu0
    %v1713 = vadd.f32 0.0, %v1712
    %v1714 = vpop.f32.mrb[0].mxu0
    %1715 = vdwg.mxu0
    %v1716 = vadd.f32 %v1643, %v1713
    %v1717 = vxor.u32 %v1716, 2147483648
    %v1718 = vmul.f32 %v1717, 1.442695
    %v1719 = vpow.pop %v1718
    %v1720 = vadd.f32 %v1719, 1.0
    %v1721 = vrcp.pop %v1720
    %v1722 = vmul.f32 1.0, %v1721
    %v1723 = vtanh.pop %v1716
    %v1724 = vmul.f32 %v1722, %v1528
    %1726 = vrot.lane.b32.xlu0 %v1723, 64
    %v1727 = vpop.permute.xlu0 %1726
    %v1729 = vmul.f32 %v1722, %v1727
    %1731 = vrot.lane.b32.xlu0 %v1729, 32
    %v1732 = vpop.permute.xlu0 %1731
    %v1734 = vadd.f32 %v1724, %v1732
    %v1735 = vtanh.pop %v1734
    %1737 = vrot.lane.b32.xlu0 %v1735, 64
    %v1738 = vpop.permute.xlu0 %1737
    %v1740 = vmul.f32 %v1722, %v1738
    %v1741 = vld [vmem:[#allocation3 + $0x8] sm:$0xff]
    %v1742 = vsel %vm142, %v1640, 0
    %1744 = vmatprep.subr.mxu0 0.0
    %1745 = vmatpush1.msra.mxu0 %v404
    %1746 = vmatprep.subr.mxu0 0.0
    %1747 = vmatpush1.msra.mxu0 %v405
    %1748 = vmatprep.subr.mxu0 0.0
    %1749 = vmatpush1.msra.mxu0 %v406
    %1750 = vmatprep.subr.mxu0 0.0
    %1751 = vmatpush1.msra.mxu0 %v407
    %1752 = vmatprep.subr.mxu0 0.0
    %1753 = vmatpush1.msra.mxu0 0.0
    %1754 = vmatprep.subr.mxu0 0.0
    %1755 = vmatpush1.msra.mxu0 0.0
    %1756 = vmatprep.subr.mxu0 0.0
    %1757 = vmatpush1.msra.mxu0 0.0
    %1758 = vmatprep.subr.mxu0 0.0
    %1759 = vmatpush1.msra.mxu0 0.0
    %1760 = vmatprep.subr.mxu0 0.0
    %1761 = vmatpush1.msra.mxu0 0.0
    %1762 = vmatprep.subr.mxu0 0.0
    %1763 = vmatpush1.msra.mxu0 0.0
    %1764 = vmatprep.subr.mxu0 0.0
    %1765 = vmatpush1.msra.mxu0 0.0
    %1766 = vmatprep.subr.mxu0 0.0
    %1767 = vmatpush1.msra.mxu0 0.0
    %1768 = vmatprep.subr.mxu0 0.0
    %1769 = vmatpush1.msra.mxu0 0.0
    %1770 = vmatprep.subr.mxu0 0.0
    %1771 = vmatpush1.msra.mxu0 0.0
    %1772 = vmatprep.subr.mxu0 0.0
    %1773 = vmatpush1.msra.mxu0 0.0
    %1774 = vmatprep.subr.mxu0 0.0
    %1775 = vmatpush1.msra.mxu0 0.0
    %1776 = vmatprep.subr.mxu0 0.0
    %1777 = vmatpush1.msra.mxu0 0.0
    %1778 = vmatprep.subr.mxu0 0.0
    %1779 = vmatpush1.msra.mxu0 0.0
    %1780 = vmatprep.subr.mxu0 0.0
    %1781 = vmatpush1.msra.mxu0 0.0
    %1782 = vmatprep.subr.mxu0 0.0
    %1783 = vmatpush1.msra.mxu0 0.0
    %1784 = vmatprep.subr.mxu0 0.0
    %1785 = vmatpush1.msra.mxu0 0.0
    %1786 = vmatprep.subr.mxu0 0.0
    %1787 = vmatpush1.msra.mxu0 0.0
    %1788 = vmatprep.subr.mxu0 0.0
    %1789 = vmatpush1.msra.mxu0 0.0
    %1790 = vmatprep.subr.mxu0 0.0
    %1791 = vmatpush1.msra.mxu0 0.0
    %1792 = vmatprep.subr.mxu0 0.0
    %1793 = vmatpush1.msra.mxu0 0.0
    %1794 = vmatprep.subr.mxu0 0.0
    %1795 = vmatpush1.msra.mxu0 0.0
    %1796 = vmatprep.subr.mxu0 0.0
    %1797 = vmatpush1.msra.mxu0 0.0
    %1798 = vmatprep.subr.mxu0 0.0
    %1799 = vmatpush1.msra.mxu0 0.0
    %1800 = vmatprep.subr.mxu0 0.0
    %1801 = vmatpush1.msra.mxu0 0.0
    %1802 = vmatprep.subr.mxu0 0.0
    %1803 = vmatpush1.msra.mxu0 0.0
    %1804 = vmatprep.subr.mxu0 0.0
    %1805 = vmatpush1.msra.mxu0 0.0
    %1806 = vmatprep.subr.mxu0 0.0
    %1807 = vmatpush1.msra.mxu0 0.0
    %1808 = vmatprep.mubr.f32.mxu0 0.0
    %1809 = vmatmul.mubr.f32.gmra.mrb[0].mxu0 %v1742
    %v1810 = vpop.f32.mrb[0].mxu0
    %v1811 = vadd.f32 0.0, %v1810
    %v1812 = vpop.f32.mrb[0].mxu0
    %1813 = vdwg.mxu0
    %v1814 = vadd.f32 %v1741, %v1811
    %v1815 = vxor.u32 %v1814, 2147483648
    %v1816 = vmul.f32 %v1815, 1.442695
    %v1817 = vpow.pop %v1816
    %v1818 = vadd.f32 %v1817, 1.0
    %v1819 = vrcp.pop %v1818
    %v1820 = vmul.f32 1.0, %v1819
    %v1821 = vtanh.pop %v1814
    %v1822 = vmul.f32 %v1820, %v1626
    %1824 = vrot.lane.b32.xlu0 %v1821, 64
    %v1825 = vpop.permute.xlu0 %1824
    %v1827 = vmul.f32 %v1820, %v1825
    %1829 = vrot.lane.b32.xlu0 %v1827, 32
    %v1830 = vpop.permute.xlu0 %1829
    %v1832 = vadd.f32 %v1822, %v1830
    %v1833 = vtanh.pop %v1832
    %1835 = vrot.lane.b32.xlu0 %v1833, 64
    %v1836 = vpop.permute.xlu0 %1835
    %v1838 = vmul.f32 %v1820, %v1836
    %1840 = vrot.lane.b32.xlu0 %v1740, 32
    %v1841 = vpop.permute.xlu0 %1840
    %1843 = vst.msk [vmem:[#allocation4 + $0x30] sm:$0xff] %vm142, %v1841
    %1845 = vrot.lane.b32.xlu0 %v1838, 32
    %v1846 = vpop.permute.xlu0 %1845
    %1848 = vst.msk [vmem:[#allocation5 + $0x8] sm:$0xff] %vm142, %v1846
    %v1849 = vld [vmem:[#allocation2 + $0x38] sm:$0xff]
    %v1850 = vsel %vm142, %v1841, 0
    %1852 = vmatprep.subr.mxu0 0.0
    %1853 = vmatpush1.msra.mxu0 %v400
    %1854 = vmatprep.subr.mxu0 0.0
    %1855 = vmatpush1.msra.mxu0 %v401
    %1856 = vmatprep.subr.mxu0 0.0
    %1857 = vmatpush1.msra.mxu0 %v402
    %1858 = vmatprep.subr.mxu0 0.0
    %1859 = vmatpush1.msra.mxu0 %v403
    %1860 = vmatprep.subr.mxu0 0.0
    %1861 = vmatpush1.msra.mxu0 0.0
    %1862 = vmatprep.subr.mxu0 0.0
    %1863 = vmatpush1.msra.mxu0 0.0
    %1864 = vmatprep.subr.mxu0 0.0
    %1865 = vmatpush1.msra.mxu0 0.0
    %1866 = vmatprep.subr.mxu0 0.0
    %1867 = vmatpush1.msra.mxu0 0.0
    %1868 = vmatprep.subr.mxu0 0.0
    %1869 = vmatpush1.msra.mxu0 0.0
    %1870 = vmatprep.subr.mxu0 0.0
    %1871 = vmatpush1.msra.mxu0 0.0
    %1872 = vmatprep.subr.mxu0 0.0
    %1873 = vmatpush1.msra.mxu0 0.0
    %1874 = vmatprep.subr.mxu0 0.0
    %1875 = vmatpush1.msra.mxu0 0.0
    %1876 = vmatprep.subr.mxu0 0.0
    %1877 = vmatpush1.msra.mxu0 0.0
    %1878 = vmatprep.subr.mxu0 0.0
    %1879 = vmatpush1.msra.mxu0 0.0
    %1880 = vmatprep.subr.mxu0 0.0
    %1881 = vmatpush1.msra.mxu0 0.0
    %1882 = vmatprep.subr.mxu0 0.0
    %1883 = vmatpush1.msra.mxu0 0.0
    %1884 = vmatprep.subr.mxu0 0.0
    %1885 = vmatpush1.msra.mxu0 0.0
    %1886 = vmatprep.subr.mxu0 0.0
    %1887 = vmatpush1.msra.mxu0 0.0
    %1888 = vmatprep.subr.mxu0 0.0
    %1889 = vmatpush1.msra.mxu0 0.0
    %1890 = vmatprep.subr.mxu0 0.0
    %1891 = vmatpush1.msra.mxu0 0.0
    %1892 = vmatprep.subr.mxu0 0.0
    %1893 = vmatpush1.msra.mxu0 0.0
    %1894 = vmatprep.subr.mxu0 0.0
    %1895 = vmatpush1.msra.mxu0 0.0
    %1896 = vmatprep.subr.mxu0 0.0
    %1897 = vmatpush1.msra.mxu0 0.0
    %1898 = vmatprep.subr.mxu0 0.0
    %1899 = vmatpush1.msra.mxu0 0.0
    %1900 = vmatprep.subr.mxu0 0.0
    %1901 = vmatpush1.msra.mxu0 0.0
    %1902 = vmatprep.subr.mxu0 0.0
    %1903 = vmatpush1.msra.mxu0 0.0
    %1904 = vmatprep.subr.mxu0 0.0
    %1905 = vmatpush1.msra.mxu0 0.0
    %1906 = vmatprep.subr.mxu0 0.0
    %1907 = vmatpush1.msra.mxu0 0.0
    %1908 = vmatprep.subr.mxu0 0.0
    %1909 = vmatpush1.msra.mxu0 0.0
    %1910 = vmatprep.subr.mxu0 0.0
    %1911 = vmatpush1.msra.mxu0 0.0
    %1912 = vmatprep.subr.mxu0 0.0
    %1913 = vmatpush1.msra.mxu0 0.0
    %1914 = vmatprep.subr.mxu0 0.0
    %1915 = vmatpush1.msra.mxu0 0.0
    %1916 = vmatprep.mubr.f32.mxu0 0.0
    %1917 = vmatmul.mubr.f32.gmra.mrb[0].mxu0 %v1850
    %v1918 = vpop.f32.mrb[0].mxu0
    %v1919 = vadd.f32 0.0, %v1918
    %v1920 = vpop.f32.mrb[0].mxu0
    %1921 = vdwg.mxu0
    %v1922 = vadd.f32 %v1849, %v1919
    %v1923 = vxor.u32 %v1922, 2147483648
    %v1924 = vmul.f32 %v1923, 1.442695
    %v1925 = vpow.pop %v1924
    %v1926 = vadd.f32 %v1925, 1.0
    %v1927 = vrcp.pop %v1926
    %v1928 = vmul.f32 1.0, %v1927
    %v1929 = vtanh.pop %v1922
    %v1930 = vmul.f32 %v1928, %v1734
    %1932 = vrot.lane.b32.xlu0 %v1929, 64
    %v1933 = vpop.permute.xlu0 %1932
    %v1935 = vmul.f32 %v1928, %v1933
    %1937 = vrot.lane.b32.xlu0 %v1935, 32
    %v1938 = vpop.permute.xlu0 %1937
    %v1940 = vadd.f32 %v1930, %v1938
    %v1941 = vtanh.pop %v1940
    %1943 = vrot.lane.b32.xlu0 %v1941, 64
    %v1944 = vpop.permute.xlu0 %1943
    %v1946 = vmul.f32 %v1928, %v1944
    %v1947 = vld [vmem:[#allocation3] sm:$0xff]
    %v1948 = vsel %vm142, %v1846, 0
    %1950 = vmatprep.subr.mxu0 0.0
    %1951 = vmatpush1.msra.mxu0 %v404
    %1952 = vmatprep.subr.mxu0 0.0
    %1953 = vmatpush1.msra.mxu0 %v405
    %1954 = vmatprep.subr.mxu0 0.0
    %1955 = vmatpush1.msra.mxu0 %v406
    %1956 = vmatprep.subr.mxu0 0.0
    %1957 = vmatpush1.msra.mxu0 %v407
    %1958 = vmatprep.subr.mxu0 0.0
    %1959 = vmatpush1.msra.mxu0 0.0
    %1960 = vmatprep.subr.mxu0 0.0
    %1961 = vmatpush1.msra.mxu0 0.0
    %1962 = vmatprep.subr.mxu0 0.0
    %1963 = vmatpush1.msra.mxu0 0.0
    %1964 = vmatprep.subr.mxu0 0.0
    %1965 = vmatpush1.msra.mxu0 0.0
    %1966 = vmatprep.subr.mxu0 0.0
    %1967 = vmatpush1.msra.mxu0 0.0
    %1968 = vmatprep.subr.mxu0 0.0
    %1969 = vmatpush1.msra.mxu0 0.0
    %1970 = vmatprep.subr.mxu0 0.0
    %1971 = vmatpush1.msra.mxu0 0.0
    %1972 = vmatprep.subr.mxu0 0.0
    %1973 = vmatpush1.msra.mxu0 0.0
    %1974 = vmatprep.subr.mxu0 0.0
    %1975 = vmatpush1.msra.mxu0 0.0
    %1976 = vmatprep.subr.mxu0 0.0
    %1977 = vmatpush1.msra.mxu0 0.0
    %1978 = vmatprep.subr.mxu0 0.0
    %1979 = vmatpush1.msra.mxu0 0.0
    %1980 = vmatprep.subr.mxu0 0.0
    %1981 = vmatpush1.msra.mxu0 0.0
    %1982 = vmatprep.subr.mxu0 0.0
    %1983 = vmatpush1.msra.mxu0 0.0
    %1984 = vmatprep.subr.mxu0 0.0
    %1985 = vmatpush1.msra.mxu0 0.0
    %1986 = vmatprep.subr.mxu0 0.0
    %1987 = vmatpush1.msra.mxu0 0.0
    %1988 = vmatprep.subr.mxu0 0.0
    %1989 = vmatpush1.msra.mxu0 0.0
    %1990 = vmatprep.subr.mxu0 0.0
    %1991 = vmatpush1.msra.mxu0 0.0
    %1992 = vmatprep.subr.mxu0 0.0
    %1993 = vmatpush1.msra.mxu0 0.0
    %1994 = vmatprep.subr.mxu0 0.0
    %1995 = vmatpush1.msra.mxu0 0.0
    %1996 = vmatprep.subr.mxu0 0.0
    %1997 = vmatpush1.msra.mxu0 0.0
    %1998 = vmatprep.subr.mxu0 0.0
    %1999 = vmatpush1.msra.mxu0 0.0
    %2000 = vmatprep.subr.mxu0 0.0
    %2001 = vmatpush1.msra.mxu0 0.0
    %2002 = vmatprep.subr.mxu0 0.0
    %2003 = vmatpush1.msra.mxu0 0.0
    %2004 = vmatprep.subr.mxu0 0.0
    %2005 = vmatpush1.msra.mxu0 0.0
    %2006 = vmatprep.subr.mxu0 0.0
    %2007 = vmatpush1.msra.mxu0 0.0
    %2008 = vmatprep.subr.mxu0 0.0
    %2009 = vmatpush1.msra.mxu0 0.0
    %2010 = vmatprep.subr.mxu0 0.0
    %2011 = vmatpush1.msra.mxu0 0.0
    %2012 = vmatprep.subr.mxu0 0.0
    %2013 = vmatpush1.msra.mxu0 0.0
    %2014 = vmatprep.mubr.f32.mxu0 0.0
    %2015 = vmatmul.mubr.f32.gmra.mrb[0].mxu0 %v1948
    %v2016 = vpop.f32.mrb[0].mxu0
    %v2017 = vadd.f32 0.0, %v2016
    %v2018 = vpop.f32.mrb[0].mxu0
    %2019 = vdwg.mxu0
    %v2020 = vadd.f32 %v1947, %v2017
    %v2021 = vxor.u32 %v2020, 2147483648
    %v2022 = vmul.f32 %v2021, 1.442695
    %v2023 = vpow.pop %v2022
    %v2024 = vadd.f32 %v2023, 1.0
    %v2025 = vrcp.pop %v2024
    %v2026 = vmul.f32 1.0, %v2025
    %v2027 = vtanh.pop %v2020
    %v2028 = vmul.f32 %v2026, %v1832
    %2030 = vrot.lane.b32.xlu0 %v2027, 64
    %v2031 = vpop.permute.xlu0 %2030
    %v2033 = vmul.f32 %v2026, %v2031
    %2035 = vrot.lane.b32.xlu0 %v2033, 32
    %v2036 = vpop.permute.xlu0 %2035
    %v2038 = vadd.f32 %v2028, %v2036
    %v2039 = vtanh.pop %v2038
    %2041 = vrot.lane.b32.xlu0 %v2039, 64
    %v2042 = vpop.permute.xlu0 %2041
    %v2044 = vmul.f32 %v2026, %v2042
    %2046 = vrot.lane.b32.xlu0 %v1946, 32
    %v2047 = vpop.permute.xlu0 %2046
    %2049 = vst.msk [vmem:[#allocation4 + $0x38] sm:$0xff] %vm142, %v2047
    %2051 = vrot.lane.b32.xlu0 %v2044, 32
    %v2052 = vpop.permute.xlu0 %2051
    %2054 = vst.msk [vmem:[#allocation5] sm:$0xff] %vm142, %v2052
    %v2055 = vld [vmem:[#allocation4] sm:$0xff]
    %v2056 = vld [vmem:[#allocation4 + $0x8] sm:$0xff]
    %v2057 = vld [vmem:[#allocation4 + $0x10] sm:$0xff]
    %v2058 = vld [vmem:[#allocation4 + $0x18] sm:$0xff]
    %v2059 = vld [vmem:[#allocation4 + $0x20] sm:$0xff]
    %v2060 = vld [vmem:[#allocation4 + $0x28] sm:$0xff]
    %v2061 = vld [vmem:[#allocation4 + $0x30] sm:$0xff]
    %v2062 = vld [vmem:[#allocation4 + $0x38] sm:$0xff]
    %v2063 = vld [vmem:[#allocation5] sm:$0xff]
    %v2064 = vld [vmem:[#allocation5 + $0x8] sm:$0xff]
    %v2065 = vld [vmem:[#allocation5 + $0x10] sm:$0xff]
    %v2066 = vld [vmem:[#allocation5 + $0x18] sm:$0xff]
    %v2067 = vld [vmem:[#allocation5 + $0x20] sm:$0xff]
    %v2068 = vld [vmem:[#allocation5 + $0x28] sm:$0xff]
    %v2069 = vld [vmem:[#allocation5 + $0x30] sm:$0xff]
    %v2070 = vld [vmem:[#allocation5 + $0x38] sm:$0xff]
    %v2071 = vld [vmem:[%s7] sm:$0xff]
    %v2072 = vld [vmem:[%s7 + $0x8] sm:$0xff]
    %v2073 = vld [vmem:[%s7 + $0x10] sm:$0xff]
    %v2074 = vld [vmem:[%s7 + $0x18] sm:$0xff]
    %v2075 = vld [vmem:[%s7 + $0x20] sm:$0xff]
    %v2076 = vld [vmem:[%s7 + $0x28] sm:$0xff]
    %v2077 = vld [vmem:[%s7 + $0x30] sm:$0xff]
    %v2078 = vld [vmem:[%s7 + $0x38] sm:$0xff]
    %v2079 = vld [vmem:[%s10] sm:$0xff]
    %v2080 = vld [vmem:[%s10 + $0x8] sm:$0xff]
    %v2081 = vld [vmem:[%s10 + $0x10] sm:$0xff]
    %v2082 = vld [vmem:[%s10 + $0x18] sm:$0xff]
    %v2083 = vld [vmem:[%s10 + $0x20] sm:$0xff]
    %v2084 = vld [vmem:[%s10 + $0x28] sm:$0xff]
    %v2085 = vld [vmem:[%s10 + $0x30] sm:$0xff]
    %v2086 = vld [vmem:[%s10 + $0x38] sm:$0xff]
    %v2088 = vsel %vm142, %v2063, 0
    %v2091 = vsel %vm142, %v2064, 0
    %v2094 = vsel %vm142, %v2065, 0
    %v2097 = vsel %vm142, %v2066, 0
    %v2100 = vsel %vm142, %v2067, 0
    %v2103 = vsel %vm142, %v2068, 0
    %v2106 = vsel %vm142, %v2069, 0
    %v2109 = vsel %vm142, %v2070, 0
    %2111 = vmatprep.subr.mxu0 0.0
    %2112 = vmatpush1.msra.mxu0 %v2075
    %2113 = vmatprep.subr.mxu0 0.0
    %2114 = vmatpush1.msra.mxu0 %v2076
    %2115 = vmatprep.subr.mxu0 0.0
    %2116 = vmatpush1.msra.mxu0 %v2077
    %2117 = vmatprep.subr.mxu0 0.0
    %2118 = vmatpush1.msra.mxu0 %v2078
    %2119 = vmatprep.subr.mxu0 0.0
    %2120 = vmatpush1.msra.mxu0 0.0
    %2121 = vmatprep.subr.mxu0 0.0
    %2122 = vmatpush1.msra.mxu0 0.0
    %2123 = vmatprep.subr.mxu0 0.0
    %2124 = vmatpush1.msra.mxu0 0.0
    %2125 = vmatprep.subr.mxu0 0.0
    %2126 = vmatpush1.msra.mxu0 0.0
    %2127 = vmatprep.subr.mxu0 0.0
    %2128 = vmatpush1.msra.mxu0 0.0
    %2129 = vmatprep.subr.mxu0 0.0
    %2130 = vmatpush1.msra.mxu0 0.0
    %2131 = vmatprep.subr.mxu0 0.0
    %2132 = vmatpush1.msra.mxu0 0.0
    %2133 = vmatprep.subr.mxu0 0.0
    %2134 = vmatpush1.msra.mxu0 0.0
    %2135 = vmatprep.subr.mxu0 0.0
    %2136 = vmatpush1.msra.mxu0 0.0
    %2137 = vmatprep.subr.mxu0 0.0
    %2138 = vmatpush1.msra.mxu0 0.0
    %2139 = vmatprep.subr.mxu0 0.0
    %2140 = vmatpush1.msra.mxu0 0.0
    %2141 = vmatprep.subr.mxu0 0.0
    %2142 = vmatpush1.msra.mxu0 0.0
    %2143 = vmatprep.subr.mxu0 0.0
    %2144 = vmatpush1.msra.mxu0 0.0
    %2145 = vmatprep.subr.mxu0 0.0
    %2146 = vmatpush1.msra.mxu0 0.0
    %2147 = vmatprep.subr.mxu0 0.0
    %2148 = vmatpush1.msra.mxu0 0.0
    %2149 = vmatprep.subr.mxu0 0.0
    %2150 = vmatpush1.msra.mxu0 0.0
    %2151 = vmatprep.subr.mxu0 0.0
    %2152 = vmatpush1.msra.mxu0 0.0
    %2153 = vmatprep.subr.mxu0 0.0
    %2154 = vmatpush1.msra.mxu0 0.0
    %2155 = vmatprep.subr.mxu0 0.0
    %2156 = vmatpush1.msra.mxu0 0.0
    %2157 = vmatprep.subr.mxu0 0.0
    %2158 = vmatpush1.msra.mxu0 0.0
    %2159 = vmatprep.subr.mxu0 0.0
    %2160 = vmatpush1.msra.mxu0 0.0
    %2161 = vmatprep.subr.mxu0 0.0
    %2162 = vmatpush1.msra.mxu0 0.0
    %2163 = vmatprep.subr.mxu0 0.0
    %2164 = vmatpush1.msra.mxu0 0.0
    %2165 = vmatprep.subr.mxu0 0.0
    %2166 = vmatpush1.msra.mxu0 0.0
    %2167 = vmatprep.subr.mxu0 0.0
    %2168 = vmatpush1.msra.mxu0 0.0
    %2169 = vmatprep.subr.mxu0 0.0
    %2170 = vmatpush1.msra.mxu0 0.0
    %2171 = vmatprep.subr.mxu0 0.0
    %2172 = vmatpush1.msra.mxu0 0.0
    %2173 = vmatprep.subr.mxu0 0.0
    %2174 = vmatpush1.msra.mxu0 0.0
    %2175 = vmatprep.mubr.f32.mxu0 0.0
    %2176 = vmatmul.mubr.f32.gmra.mrb[0].mxu0 %v2088
    %v2177 = vpop.f32.mrb[0].mxu0
    %v2178 = vadd.f32 0.0, %v2177
    %v2179 = vpop.f32.mrb[0].mxu0
    %2180 = vmatprep.mubr.f32.mxu0 0.0
    %2181 = vmatmul.mubr.f32.gmra.mrb[0].mxu0 %v2091
    %v2182 = vpop.f32.mrb[0].mxu0
    %v2183 = vadd.f32 0.0, %v2182
    %v2184 = vpop.f32.mrb[0].mxu0
    %2185 = vmatprep.mubr.f32.mxu0 0.0
    %2186 = vmatmul.mubr.f32.gmra.mrb[0].mxu0 %v2094
    %v2187 = vpop.f32.mrb[0].mxu0
    %v2188 = vadd.f32 0.0, %v2187
    %v2189 = vpop.f32.mrb[0].mxu0
    %2190 = vmatprep.mubr.f32.mxu0 0.0
    %2191 = vmatmul.mubr.f32.gmra.mrb[0].mxu0 %v2097
    %v2192 = vpop.f32.mrb[0].mxu0
    %v2193 = vadd.f32 0.0, %v2192
    %v2194 = vpop.f32.mrb[0].mxu0
    %2195 = vmatprep.mubr.f32.mxu0 0.0
    %2196 = vmatmul.mubr.f32.gmra.mrb[0].mxu0 %v2100
    %v2197 = vpop.f32.mrb[0].mxu0
    %v2198 = vadd.f32 0.0, %v2197
    %v2199 = vpop.f32.mrb[0].mxu0
    %2200 = vmatprep.mubr.f32.mxu0 0.0
    %2201 = vmatmul.mubr.f32.gmra.mrb[0].mxu0 %v2103
    %v2202 = vpop.f32.mrb[0].mxu0
    %v2203 = vadd.f32 0.0, %v2202
    %v2204 = vpop.f32.mrb[0].mxu0
    %2205 = vmatprep.mubr.f32.mxu0 0.0
    %2206 = vmatmul.mubr.f32.gmra.mrb[0].mxu0 %v2106
    %v2207 = vpop.f32.mrb[0].mxu0
    %v2208 = vadd.f32 0.0, %v2207
    %v2209 = vpop.f32.mrb[0].mxu0
    %2210 = vmatprep.mubr.f32.mxu0 0.0
    %2211 = vmatmul.mubr.f32.gmra.mrb[0].mxu0 %v2109
    %v2212 = vpop.f32.mrb[0].mxu0
    %v2213 = vadd.f32 0.0, %v2212
    %v2214 = vpop.f32.mrb[0].mxu0
    %2215 = vdwg.mxu0
    %v2217 = vsel %vm142, %v2055, 0
    %v2220 = vsel %vm142, %v2056, 0
    %v2223 = vsel %vm142, %v2057, 0
    %v2226 = vsel %vm142, %v2058, 0
    %v2229 = vsel %vm142, %v2059, 0
    %v2232 = vsel %vm142, %v2060, 0
    %v2235 = vsel %vm142, %v2061, 0
    %v2238 = vsel %vm142, %v2062, 0
    %2240 = vmatprep.subr.mxu0 0.0
    %2241 = vmatpush1.msra.mxu0 %v2071
    %2242 = vmatprep.subr.mxu0 0.0
    %2243 = vmatpush1.msra.mxu0 %v2072
    %2244 = vmatprep.subr.mxu0 0.0
    %2245 = vmatpush1.msra.mxu0 %v2073
    %2246 = vmatprep.subr.mxu0 0.0
    %2247 = vmatpush1.msra.mxu0 %v2074
    %2248 = vmatprep.subr.mxu0 0.0
    %2249 = vmatpush1.msra.mxu0 0.0
    %2250 = vmatprep.subr.mxu0 0.0
    %2251 = vmatpush1.msra.mxu0 0.0
    %2252 = vmatprep.subr.mxu0 0.0
    %2253 = vmatpush1.msra.mxu0 0.0
    %2254 = vmatprep.subr.mxu0 0.0
    %2255 = vmatpush1.msra.mxu0 0.0
    %2256 = vmatprep.subr.mxu0 0.0
    %2257 = vmatpush1.msra.mxu0 0.0
    %2258 = vmatprep.subr.mxu0 0.0
    %2259 = vmatpush1.msra.mxu0 0.0
    %2260 = vmatprep.subr.mxu0 0.0
    %2261 = vmatpush1.msra.mxu0 0.0
    %2262 = vmatprep.subr.mxu0 0.0
    %2263 = vmatpush1.msra.mxu0 0.0
    %2264 = vmatprep.subr.mxu0 0.0
    %2265 = vmatpush1.msra.mxu0 0.0
    %2266 = vmatprep.subr.mxu0 0.0
    %2267 = vmatpush1.msra.mxu0 0.0
    %2268 = vmatprep.subr.mxu0 0.0
    %2269 = vmatpush1.msra.mxu0 0.0
    %2270 = vmatprep.subr.mxu0 0.0
    %2271 = vmatpush1.msra.mxu0 0.0
    %2272 = vmatprep.subr.mxu0 0.0
    %2273 = vmatpush1.msra.mxu0 0.0
    %2274 = vmatprep.subr.mxu0 0.0
    %2275 = vmatpush1.msra.mxu0 0.0
    %2276 = vmatprep.subr.mxu0 0.0
    %2277 = vmatpush1.msra.mxu0 0.0
    %2278 = vmatprep.subr.mxu0 0.0
    %2279 = vmatpush1.msra.mxu0 0.0
    %2280 = vmatprep.subr.mxu0 0.0
    %2281 = vmatpush1.msra.mxu0 0.0
    %2282 = vmatprep.subr.mxu0 0.0
    %2283 = vmatpush1.msra.mxu0 0.0
    %2284 = vmatprep.subr.mxu0 0.0
    %2285 = vmatpush1.msra.mxu0 0.0
    %2286 = vmatprep.subr.mxu0 0.0
    %2287 = vmatpush1.msra.mxu0 0.0
    %2288 = vmatprep.subr.mxu0 0.0
    %2289 = vmatpush1.msra.mxu0 0.0
    %2290 = vmatprep.subr.mxu0 0.0
    %2291 = vmatpush1.msra.mxu0 0.0
    %2292 = vmatprep.subr.mxu0 0.0
    %2293 = vmatpush1.msra.mxu0 0.0
    %2294 = vmatprep.subr.mxu0 0.0
    %2295 = vmatpush1.msra.mxu0 0.0
    %2296 = vmatprep.subr.mxu0 0.0
    %2297 = vmatpush1.msra.mxu0 0.0
    %2298 = vmatprep.subr.mxu0 0.0
    %2299 = vmatpush1.msra.mxu0 0.0
    %2300 = vmatprep.subr.mxu0 0.0
    %2301 = vmatpush1.msra.mxu0 0.0
    %2302 = vmatprep.subr.mxu0 0.0
    %2303 = vmatpush1.msra.mxu0 0.0
    %2304 = vmatprep.mubr.f32.mxu0 0.0
    %2305 = vmatmul.mubr.f32.gmra.mrb[0].mxu0 %v2217
    %v2306 = vpop.f32.mrb[0].mxu0
    %v2307 = vadd.f32 %v2178, %v2306
    %v2308 = vpop.f32.mrb[0].mxu0
    %2309 = vmatprep.mubr.f32.mxu0 0.0
    %2310 = vmatmul.mubr.f32.gmra.mrb[0].mxu0 %v2220
    %v2311 = vpop.f32.mrb[0].mxu0
    %v2312 = vadd.f32 %v2183, %v2311
    %v2313 = vpop.f32.mrb[0].mxu0
    %2314 = vmatprep.mubr.f32.mxu0 0.0
    %2315 = vmatmul.mubr.f32.gmra.mrb[0].mxu0 %v2223
    %v2316 = vpop.f32.mrb[0].mxu0
    %v2317 = vadd.f32 %v2188, %v2316
    %v2318 = vpop.f32.mrb[0].mxu0
    %2319 = vmatprep.mubr.f32.mxu0 0.0
    %2320 = vmatmul.mubr.f32.gmra.mrb[0].mxu0 %v2226
    %v2321 = vpop.f32.mrb[0].mxu0
    %v2322 = vadd.f32 %v2193, %v2321
    %v2323 = vpop.f32.mrb[0].mxu0
    %2324 = vmatprep.mubr.f32.mxu0 0.0
    %2325 = vmatmul.mubr.f32.gmra.mrb[0].mxu0 %v2229
    %v2326 = vpop.f32.mrb[0].mxu0
    %v2327 = vadd.f32 %v2198, %v2326
    %v2328 = vpop.f32.mrb[0].mxu0
    %2329 = vmatprep.mubr.f32.mxu0 0.0
    %2330 = vmatmul.mubr.f32.gmra.mrb[0].mxu0 %v2232
    %v2331 = vpop.f32.mrb[0].mxu0
    %v2332 = vadd.f32 %v2203, %v2331
    %v2333 = vpop.f32.mrb[0].mxu0
    %2334 = vmatprep.mubr.f32.mxu0 0.0
    %2335 = vmatmul.mubr.f32.gmra.mrb[0].mxu0 %v2235
    %v2336 = vpop.f32.mrb[0].mxu0
    %v2337 = vadd.f32 %v2208, %v2336
    %v2338 = vpop.f32.mrb[0].mxu0
    %2339 = vmatprep.mubr.f32.mxu0 0.0
    %2340 = vmatmul.mubr.f32.gmra.mrb[0].mxu0 %v2238
    %v2341 = vpop.f32.mrb[0].mxu0
    %v2342 = vadd.f32 %v2213, %v2341
    %v2343 = vpop.f32.mrb[0].mxu0
    %2344 = vdwg.mxu0
    %2345 = vmatprep.subr.mxu0 0.0
    %2346 = vmatpush1.msra.mxu0 %v2083
    %2347 = vmatprep.subr.mxu0 0.0
    %2348 = vmatpush1.msra.mxu0 %v2084
    %2349 = vmatprep.subr.mxu0 0.0
    %2350 = vmatpush1.msra.mxu0 %v2085
    %2351 = vmatprep.subr.mxu0 0.0
    %2352 = vmatpush1.msra.mxu0 %v2086
    %2353 = vmatprep.subr.mxu0 0.0
    %2354 = vmatpush1.msra.mxu0 0.0
    %2355 = vmatprep.subr.mxu0 0.0
    %2356 = vmatpush1.msra.mxu0 0.0
    %2357 = vmatprep.subr.mxu0 0.0
    %2358 = vmatpush1.msra.mxu0 0.0
    %2359 = vmatprep.subr.mxu0 0.0
    %2360 = vmatpush1.msra.mxu0 0.0
    %2361 = vmatprep.subr.mxu0 0.0
    %2362 = vmatpush1.msra.mxu0 0.0
    %2363 = vmatprep.subr.mxu0 0.0
    %2364 = vmatpush1.msra.mxu0 0.0
    %2365 = vmatprep.subr.mxu0 0.0
    %2366 = vmatpush1.msra.mxu0 0.0
    %2367 = vmatprep.subr.mxu0 0.0
    %2368 = vmatpush1.msra.mxu0 0.0
    %2369 = vmatprep.subr.mxu0 0.0
    %2370 = vmatpush1.msra.mxu0 0.0
    %2371 = vmatprep.subr.mxu0 0.0
    %2372 = vmatpush1.msra.mxu0 0.0
    %2373 = vmatprep.subr.mxu0 0.0
    %2374 = vmatpush1.msra.mxu0 0.0
    %2375 = vmatprep.subr.mxu0 0.0
    %2376 = vmatpush1.msra.mxu0 0.0
    %2377 = vmatprep.subr.mxu0 0.0
    %2378 = vmatpush1.msra.mxu0 0.0
    %2379 = vmatprep.subr.mxu0 0.0
    %2380 = vmatpush1.msra.mxu0 0.0
    %2381 = vmatprep.subr.mxu0 0.0
    %2382 = vmatpush1.msra.mxu0 0.0
    %2383 = vmatprep.subr.mxu0 0.0
    %2384 = vmatpush1.msra.mxu0 0.0
    %2385 = vmatprep.subr.mxu0 0.0
    %2386 = vmatpush1.msra.mxu0 0.0
    %2387 = vmatprep.subr.mxu0 0.0
    %2388 = vmatpush1.msra.mxu0 0.0
    %2389 = vmatprep.subr.mxu0 0.0
    %2390 = vmatpush1.msra.mxu0 0.0
    %2391 = vmatprep.subr.mxu0 0.0
    %2392 = vmatpush1.msra.mxu0 0.0
    %2393 = vmatprep.subr.mxu0 0.0
    %2394 = vmatpush1.msra.mxu0 0.0
    %2395 = vmatprep.subr.mxu0 0.0
    %2396 = vmatpush1.msra.mxu0 0.0
    %2397 = vmatprep.subr.mxu0 0.0
    %2398 = vmatpush1.msra.mxu0 0.0
    %2399 = vmatprep.subr.mxu0 0.0
    %2400 = vmatpush1.msra.mxu0 0.0
    %2401 = vmatprep.subr.mxu0 0.0
    %2402 = vmatpush1.msra.mxu0 0.0
    %2403 = vmatprep.subr.mxu0 0.0
    %2404 = vmatpush1.msra.mxu0 0.0
    %2405 = vmatprep.subr.mxu0 0.0
    %2406 = vmatpush1.msra.mxu0 0.0
    %2407 = vmatprep.subr.mxu0 0.0
    %2408 = vmatpush1.msra.mxu0 0.0
    %2409 = vmatprep.mubr.f32.mxu0 0.0
    %2410 = vmatmul.mubr.f32.gmra.mrb[0].mxu0 %v2088
    %v2411 = vpop.f32.mrb[0].mxu0
    %v2412 = vadd.f32 0.0, %v2411
    %v2413 = vpop.f32.mrb[0].mxu0
    %2414 = vmatprep.mubr.f32.mxu0 0.0
    %2415 = vmatmul.mubr.f32.gmra.mrb[0].mxu0 %v2091
    %v2416 = vpop.f32.mrb[0].mxu0
    %v2417 = vadd.f32 0.0, %v2416
    %v2418 = vpop.f32.mrb[0].mxu0
    %2419 = vmatprep.mubr.f32.mxu0 0.0
    %2420 = vmatmul.mubr.f32.gmra.mrb[0].mxu0 %v2094
    %v2421 = vpop.f32.mrb[0].mxu0
    %v2422 = vadd.f32 0.0, %v2421
    %v2423 = vpop.f32.mrb[0].mxu0
    %2424 = vmatprep.mubr.f32.mxu0 0.0
    %2425 = vmatmul.mubr.f32.gmra.mrb[0].mxu0 %v2097
    %v2426 = vpop.f32.mrb[0].mxu0
    %v2427 = vadd.f32 0.0, %v2426
    %v2428 = vpop.f32.mrb[0].mxu0
    %2429 = vmatprep.mubr.f32.mxu0 0.0
    %2430 = vmatmul.mubr.f32.gmra.mrb[0].mxu0 %v2100
    %v2431 = vpop.f32.mrb[0].mxu0
    %v2432 = vadd.f32 0.0, %v2431
    %v2433 = vpop.f32.mrb[0].mxu0
    %2434 = vmatprep.mubr.f32.mxu0 0.0
    %2435 = vmatmul.mubr.f32.gmra.mrb[0].mxu0 %v2103
    %v2436 = vpop.f32.mrb[0].mxu0
    %v2437 = vadd.f32 0.0, %v2436
    %v2438 = vpop.f32.mrb[0].mxu0
    %2439 = vmatprep.mubr.f32.mxu0 0.0
    %2440 = vmatmul.mubr.f32.gmra.mrb[0].mxu0 %v2106
    %v2441 = vpop.f32.mrb[0].mxu0
    %v2442 = vadd.f32 0.0, %v2441
    %v2443 = vpop.f32.mrb[0].mxu0
    %2444 = vmatprep.mubr.f32.mxu0 0.0
    %2445 = vmatmul.mubr.f32.gmra.mrb[0].mxu0 %v2109
    %v2446 = vpop.f32.mrb[0].mxu0
    %v2447 = vadd.f32 0.0, %v2446
    %v2448 = vpop.f32.mrb[0].mxu0
    %2449 = vdwg.mxu0
    %2450 = vmatprep.subr.mxu0 0.0
    %2451 = vmatpush1.msra.mxu0 %v2079
    %2452 = vmatprep.subr.mxu0 0.0
    %2453 = vmatpush1.msra.mxu0 %v2080
    %2454 = vmatprep.subr.mxu0 0.0
    %2455 = vmatpush1.msra.mxu0 %v2081
    %2456 = vmatprep.subr.mxu0 0.0
    %2457 = vmatpush1.msra.mxu0 %v2082
    %2458 = vmatprep.subr.mxu0 0.0
    %2459 = vmatpush1.msra.mxu0 0.0
    %2460 = vmatprep.subr.mxu0 0.0
    %2461 = vmatpush1.msra.mxu0 0.0
    %2462 = vmatprep.subr.mxu0 0.0
    %2463 = vmatpush1.msra.mxu0 0.0
    %2464 = vmatprep.subr.mxu0 0.0
    %2465 = vmatpush1.msra.mxu0 0.0
    %2466 = vmatprep.subr.mxu0 0.0
    %2467 = vmatpush1.msra.mxu0 0.0
    %2468 = vmatprep.subr.mxu0 0.0
    %2469 = vmatpush1.msra.mxu0 0.0
    %2470 = vmatprep.subr.mxu0 0.0
    %2471 = vmatpush1.msra.mxu0 0.0
    %2472 = vmatprep.subr.mxu0 0.0
    %2473 = vmatpush1.msra.mxu0 0.0
    %2474 = vmatprep.subr.mxu0 0.0
    %2475 = vmatpush1.msra.mxu0 0.0
    %2476 = vmatprep.subr.mxu0 0.0
    %2477 = vmatpush1.msra.mxu0 0.0
    %2478 = vmatprep.subr.mxu0 0.0
    %2479 = vmatpush1.msra.mxu0 0.0
    %2480 = vmatprep.subr.mxu0 0.0
    %2481 = vmatpush1.msra.mxu0 0.0
    %2482 = vmatprep.subr.mxu0 0.0
    %2483 = vmatpush1.msra.mxu0 0.0
    %2484 = vmatprep.subr.mxu0 0.0
    %2485 = vmatpush1.msra.mxu0 0.0
    %2486 = vmatprep.subr.mxu0 0.0
    %2487 = vmatpush1.msra.mxu0 0.0
    %2488 = vmatprep.subr.mxu0 0.0
    %2489 = vmatpush1.msra.mxu0 0.0
    %2490 = vmatprep.subr.mxu0 0.0
    %2491 = vmatpush1.msra.mxu0 0.0
    %2492 = vmatprep.subr.mxu0 0.0
    %2493 = vmatpush1.msra.mxu0 0.0
    %2494 = vmatprep.subr.mxu0 0.0
    %2495 = vmatpush1.msra.mxu0 0.0
    %2496 = vmatprep.subr.mxu0 0.0
    %2497 = vmatpush1.msra.mxu0 0.0
    %2498 = vmatprep.subr.mxu0 0.0
    %2499 = vmatpush1.msra.mxu0 0.0
    %2500 = vmatprep.subr.mxu0 0.0
    %2501 = vmatpush1.msra.mxu0 0.0
    %2502 = vmatprep.subr.mxu0 0.0
    %2503 = vmatpush1.msra.mxu0 0.0
    %2504 = vmatprep.subr.mxu0 0.0
    %2505 = vmatpush1.msra.mxu0 0.0
    %2506 = vmatprep.subr.mxu0 0.0
    %2507 = vmatpush1.msra.mxu0 0.0
    %2508 = vmatprep.subr.mxu0 0.0
    %2509 = vmatpush1.msra.mxu0 0.0
    %2510 = vmatprep.subr.mxu0 0.0
    %2511 = vmatpush1.msra.mxu0 0.0
    %2512 = vmatprep.subr.mxu0 0.0
    %2513 = vmatpush1.msra.mxu0 0.0
    %2514 = vmatprep.mubr.f32.mxu0 0.0
    %2515 = vmatmul.mubr.f32.gmra.mrb[0].mxu0 %v2217
    %v2516 = vpop.f32.mrb[0].mxu0
    %v2517 = vadd.f32 %v2412, %v2516
    %v2518 = vpop.f32.mrb[0].mxu0
    %2519 = vmatprep.mubr.f32.mxu0 0.0
    %2520 = vmatmul.mubr.f32.gmra.mrb[0].mxu0 %v2220
    %v2521 = vpop.f32.mrb[0].mxu0
    %v2522 = vadd.f32 %v2417, %v2521
    %v2523 = vpop.f32.mrb[0].mxu0
    %2524 = vmatprep.mubr.f32.mxu0 0.0
    %2525 = vmatmul.mubr.f32.gmra.mrb[0].mxu0 %v2223
    %v2526 = vpop.f32.mrb[0].mxu0
    %v2527 = vadd.f32 %v2422, %v2526
    %v2528 = vpop.f32.mrb[0].mxu0
    %2529 = vmatprep.mubr.f32.mxu0 0.0
    %2530 = vmatmul.mubr.f32.gmra.mrb[0].mxu0 %v2226
    %v2531 = vpop.f32.mrb[0].mxu0
    %v2532 = vadd.f32 %v2427, %v2531
    %v2533 = vpop.f32.mrb[0].mxu0
    %2534 = vmatprep.mubr.f32.mxu0 0.0
    %2535 = vmatmul.mubr.f32.gmra.mrb[0].mxu0 %v2229
    %v2536 = vpop.f32.mrb[0].mxu0
    %v2537 = vadd.f32 %v2432, %v2536
    %v2538 = vpop.f32.mrb[0].mxu0
    %2539 = vmatprep.mubr.f32.mxu0 0.0
    %2540 = vmatmul.mubr.f32.gmra.mrb[0].mxu0 %v2232
    %v2541 = vpop.f32.mrb[0].mxu0
    %v2542 = vadd.f32 %v2437, %v2541
    %v2543 = vpop.f32.mrb[0].mxu0
    %2544 = vmatprep.mubr.f32.mxu0 0.0
    %2545 = vmatmul.mubr.f32.gmra.mrb[0].mxu0 %v2235
    %v2546 = vpop.f32.mrb[0].mxu0
    %v2547 = vadd.f32 %v2442, %v2546
    %v2548 = vpop.f32.mrb[0].mxu0
    %2549 = vmatprep.mubr.f32.mxu0 0.0
    %2550 = vmatmul.mubr.f32.gmra.mrb[0].mxu0 %v2238
    %v2551 = vpop.f32.mrb[0].mxu0
    %v2552 = vadd.f32 %v2447, %v2551
    %v2553 = vpop.f32.mrb[0].mxu0
    %2554 = vdwg.mxu0
    %v2555 = vld [vmem:[#allocation11] sm:$0x1]
    %v2557 = vlaneseq
    %v2558 = vshrl.u32 %v2557, 7
    %v2559 = vsub.s32 0, %v2558
    %v2560 = vrot.slane %v2555, %v2559
    %v2562 = vadd.f32 %v2307, %v2560
    %v2563 = vadd.f32 %v2312, %v2560
    %v2564 = vadd.f32 %v2317, %v2560
    %v2565 = vadd.f32 %v2322, %v2560
    %v2566 = vadd.f32 %v2327, %v2560
    %v2567 = vadd.f32 %v2332, %v2560
    %v2568 = vadd.f32 %v2337, %v2560
    %v2569 = vadd.f32 %v2342, %v2560
    %2570 = vst [vmem:[#allocation2] sm:$0xff] %v2562
    %2571 = vst [vmem:[#allocation2 + $0x8] sm:$0xff] %v2563
    %2572 = vst [vmem:[#allocation2 + $0x10] sm:$0xff] %v2564
    %2573 = vst [vmem:[#allocation2 + $0x18] sm:$0xff] %v2565
    %2574 = vst [vmem:[#allocation2 + $0x20] sm:$0xff] %v2566
    %2575 = vst [vmem:[#allocation2 + $0x28] sm:$0xff] %v2567
    %2576 = vst [vmem:[#allocation2 + $0x30] sm:$0xff] %v2568
    %2577 = vst [vmem:[#allocation2 + $0x38] sm:$0xff] %v2569
    %v2578 = vld [vmem:[%s12] sm:$0x1]
    %v2580 = vlaneseq
    %v2581 = vshrl.u32 %v2580, 7
    %v2582 = vsub.s32 0, %v2581
    %v2583 = vrot.slane %v2578, %v2582
    %v2585 = vadd.f32 %v2517, %v2583
    %v2586 = vadd.f32 %v2522, %v2583
    %v2587 = vadd.f32 %v2527, %v2583
    %v2588 = vadd.f32 %v2532, %v2583
    %v2589 = vadd.f32 %v2537, %v2583
    %v2590 = vadd.f32 %v2542, %v2583
    %v2591 = vadd.f32 %v2547, %v2583
    %v2592 = vadd.f32 %v2552, %v2583
    %2593 = vst [vmem:[#allocation3] sm:$0xff] %v2585
    %2594 = vst [vmem:[#allocation3 + $0x8] sm:$0xff] %v2586
    %2595 = vst [vmem:[#allocation3 + $0x10] sm:$0xff] %v2587
    %2596 = vst [vmem:[#allocation3 + $0x18] sm:$0xff] %v2588
    %2597 = vst [vmem:[#allocation3 + $0x20] sm:$0xff] %v2589
    %2598 = vst [vmem:[#allocation3 + $0x28] sm:$0xff] %v2590
    %2599 = vst [vmem:[#allocation3 + $0x30] sm:$0xff] %v2591
    %2600 = vst [vmem:[#allocation3 + $0x38] sm:$0xff] %v2592
    %v2601 = vld [vmem:[%s8] sm:$0xff]
    %v2602 = vld [vmem:[%s8 + $0x8] sm:$0xff]
    %v2603 = vld [vmem:[%s8 + $0x10] sm:$0xff]
    %v2604 = vld [vmem:[%s8 + $0x18] sm:$0xff]
    %v2605 = vld [vmem:[#allocation13] sm:$0xff]
    %v2606 = vld [vmem:[#allocation13 + $0x8] sm:$0xff]
    %v2607 = vld [vmem:[#allocation13 + $0x10] sm:$0xff]
    %v2608 = vld [vmem:[#allocation13 + $0x18] sm:$0xff]
    %v2609 = vld [vmem:[#allocation2] sm:$0xff]
    %2610 = vmatprep.subr.mxu0 0.0
    %2611 = vmatpush1.msra.mxu0 %v2601
    %2612 = vmatprep.subr.mxu0 0.0
    %2613 = vmatpush1.msra.mxu0 %v2602
    %2614 = vmatprep.subr.mxu0 0.0
    %2615 = vmatpush1.msra.mxu0 %v2603
    %2616 = vmatprep.subr.mxu0 0.0
    %2617 = vmatpush1.msra.mxu0 %v2604
    %2618 = vmatprep.subr.mxu0 0.0
    %2619 = vmatpush1.msra.mxu0 0.0
    %2620 = vmatprep.subr.mxu0 0.0
    %2621 = vmatpush1.msra.mxu0 0.0
    %2622 = vmatprep.subr.mxu0 0.0
    %2623 = vmatpush1.msra.mxu0 0.0
    %2624 = vmatprep.subr.mxu0 0.0
    %2625 = vmatpush1.msra.mxu0 0.0
    %2626 = vmatprep.subr.mxu0 0.0
    %2627 = vmatpush1.msra.mxu0 0.0
    %2628 = vmatprep.subr.mxu0 0.0
    %2629 = vmatpush1.msra.mxu0 0.0
    %2630 = vmatprep.subr.mxu0 0.0
    %2631 = vmatpush1.msra.mxu0 0.0
    %2632 = vmatprep.subr.mxu0 0.0
    %2633 = vmatpush1.msra.mxu0 0.0
    %2634 = vmatprep.subr.mxu0 0.0
    %2635 = vmatpush1.msra.mxu0 0.0
    %2636 = vmatprep.subr.mxu0 0.0
    %2637 = vmatpush1.msra.mxu0 0.0
    %2638 = vmatprep.subr.mxu0 0.0
    %2639 = vmatpush1.msra.mxu0 0.0
    %2640 = vmatprep.subr.mxu0 0.0
    %2641 = vmatpush1.msra.mxu0 0.0
    %2642 = vmatprep.subr.mxu0 0.0
    %2643 = vmatpush1.msra.mxu0 0.0
    %2644 = vmatprep.subr.mxu0 0.0
    %2645 = vmatpush1.msra.mxu0 0.0
    %2646 = vmatprep.subr.mxu0 0.0
    %2647 = vmatpush1.msra.mxu0 0.0
    %2648 = vmatprep.subr.mxu0 0.0
    %2649 = vmatpush1.msra.mxu0 0.0
    %2650 = vmatprep.subr.mxu0 0.0
    %2651 = vmatpush1.msra.mxu0 0.0
    %2652 = vmatprep.subr.mxu0 0.0
    %2653 = vmatpush1.msra.mxu0 0.0
    %2654 = vmatprep.subr.mxu0 0.0
    %2655 = vmatpush1.msra.mxu0 0.0
    %2656 = vmatprep.subr.mxu0 0.0
    %2657 = vmatpush1.msra.mxu0 0.0
    %2658 = vmatprep.subr.mxu0 0.0
    %2659 = vmatpush1.msra.mxu0 0.0
    %2660 = vmatprep.subr.mxu0 0.0
    %2661 = vmatpush1.msra.mxu0 0.0
    %2662 = vmatprep.subr.mxu0 0.0
    %2663 = vmatpush1.msra.mxu0 0.0
    %2664 = vmatprep.subr.mxu0 0.0
    %2665 = vmatpush1.msra.mxu0 0.0
    %2666 = vmatprep.subr.mxu0 0.0
    %2667 = vmatpush1.msra.mxu0 0.0
    %2668 = vmatprep.subr.mxu0 0.0
    %2669 = vmatpush1.msra.mxu0 0.0
    %2670 = vmatprep.subr.mxu0 0.0
    %2671 = vmatpush1.msra.mxu0 0.0
    %2672 = vmatprep.subr.mxu0 0.0
    %2673 = vmatpush1.msra.mxu0 0.0
    %2674 = vmatprep.mubr.f32.mxu0 0.0
    %2675 = vmatmul.mubr.f32.gmra.mrb[0].mxu0 %v410
    %v2676 = vpop.f32.mrb[0].mxu0
    %v2677 = vadd.f32 0.0, %v2676
    %v2678 = vpop.f32.mrb[0].mxu0
    %2679 = vdwg.mxu0
    %v2680 = vadd.f32 %v2609, %v2677
    %v2681 = vxor.u32 %v2680, 2147483648
    %v2682 = vmul.f32 %v2681, 1.442695
    %v2683 = vpow.pop %v2682
    %v2684 = vadd.f32 %v2683, 1.0
    %v2685 = vrcp.pop %v2684
    %v2686 = vmul.f32 1.0, %v2685
    %v2687 = vtanh.pop %v2680
    %v2688 = vmul.f32 %v2686, 0.0
    %2690 = vrot.lane.b32.xlu0 %v2687, 64
    %v2691 = vpop.permute.xlu0 %2690
    %v2693 = vmul.f32 %v2686, %v2691
    %2695 = vrot.lane.b32.xlu0 %v2693, 32
    %v2696 = vpop.permute.xlu0 %2695
    %v2698 = vadd.f32 %v2688, %v2696
    %v2699 = vtanh.pop %v2698
    %2701 = vrot.lane.b32.xlu0 %v2699, 64
    %v2702 = vpop.permute.xlu0 %2701
    %v2704 = vmul.f32 %v2686, %v2702
    %v2705 = vld [vmem:[#allocation3 + $0x38] sm:$0xff]
    %2706 = vmatprep.subr.mxu0 0.0
    %2707 = vmatpush1.msra.mxu0 %v2605
    %2708 = vmatprep.subr.mxu0 0.0
    %2709 = vmatpush1.msra.mxu0 %v2606
    %2710 = vmatprep.subr.mxu0 0.0
    %2711 = vmatpush1.msra.mxu0 %v2607
    %2712 = vmatprep.subr.mxu0 0.0
    %2713 = vmatpush1.msra.mxu0 %v2608
    %2714 = vmatprep.subr.mxu0 0.0
    %2715 = vmatpush1.msra.mxu0 0.0
    %2716 = vmatprep.subr.mxu0 0.0
    %2717 = vmatpush1.msra.mxu0 0.0
    %2718 = vmatprep.subr.mxu0 0.0
    %2719 = vmatpush1.msra.mxu0 0.0
    %2720 = vmatprep.subr.mxu0 0.0
    %2721 = vmatpush1.msra.mxu0 0.0
    %2722 = vmatprep.subr.mxu0 0.0
    %2723 = vmatpush1.msra.mxu0 0.0
    %2724 = vmatprep.subr.mxu0 0.0
    %2725 = vmatpush1.msra.mxu0 0.0
    %2726 = vmatprep.subr.mxu0 0.0
    %2727 = vmatpush1.msra.mxu0 0.0
    %2728 = vmatprep.subr.mxu0 0.0
    %2729 = vmatpush1.msra.mxu0 0.0
    %2730 = vmatprep.subr.mxu0 0.0
    %2731 = vmatpush1.msra.mxu0 0.0
    %2732 = vmatprep.subr.mxu0 0.0
    %2733 = vmatpush1.msra.mxu0 0.0
    %2734 = vmatprep.subr.mxu0 0.0
    %2735 = vmatpush1.msra.mxu0 0.0
    %2736 = vmatprep.subr.mxu0 0.0
    %2737 = vmatpush1.msra.mxu0 0.0
    %2738 = vmatprep.subr.mxu0 0.0
    %2739 = vmatpush1.msra.mxu0 0.0
    %2740 = vmatprep.subr.mxu0 0.0
    %2741 = vmatpush1.msra.mxu0 0.0
    %2742 = vmatprep.subr.mxu0 0.0
    %2743 = vmatpush1.msra.mxu0 0.0
    %2744 = vmatprep.subr.mxu0 0.0
    %2745 = vmatpush1.msra.mxu0 0.0
    %2746 = vmatprep.subr.mxu0 0.0
    %2747 = vmatpush1.msra.mxu0 0.0
    %2748 = vmatprep.subr.mxu0 0.0
    %2749 = vmatpush1.msra.mxu0 0.0
    %2750 = vmatprep.subr.mxu0 0.0
    %2751 = vmatpush1.msra.mxu0 0.0
    %2752 = vmatprep.subr.mxu0 0.0
    %2753 = vmatpush1.msra.mxu0 0.0
    %2754 = vmatprep.subr.mxu0 0.0
    %2755 = vmatpush1.msra.mxu0 0.0
    %2756 = vmatprep.subr.mxu0 0.0
    %2757 = vmatpush1.msra.mxu0 0.0
    %2758 = vmatprep.subr.mxu0 0.0
    %2759 = vmatpush1.msra.mxu0 0.0
    %2760 = vmatprep.subr.mxu0 0.0
    %2761 = vmatpush1.msra.mxu0 0.0
    %2762 = vmatprep.subr.mxu0 0.0
    %2763 = vmatpush1.msra.mxu0 0.0
    %2764 = vmatprep.subr.mxu0 0.0
    %2765 = vmatpush1.msra.mxu0 0.0
    %2766 = vmatprep.subr.mxu0 0.0
    %2767 = vmatpush1.msra.mxu0 0.0
    %2768 = vmatprep.subr.mxu0 0.0
    %2769 = vmatpush1.msra.mxu0 0.0
    %2770 = vmatprep.mubr.f32.mxu0 0.0
    %2771 = vmatmul.mubr.f32.gmra.mrb[0].mxu0 %v410
    %v2772 = vpop.f32.mrb[0].mxu0
    %v2773 = vadd.f32 0.0, %v2772
    %v2774 = vpop.f32.mrb[0].mxu0
    %2775 = vdwg.mxu0
    %v2776 = vadd.f32 %v2705, %v2773
    %v2777 = vxor.u32 %v2776, 2147483648
    %v2778 = vmul.f32 %v2777, 1.442695
    %v2779 = vpow.pop %v2778
    %v2780 = vadd.f32 %v2779, 1.0
    %v2781 = vrcp.pop %v2780
    %v2782 = vmul.f32 1.0, %v2781
    %v2783 = vtanh.pop %v2776
    %v2784 = vmul.f32 %v2782, 0.0
    %2786 = vrot.lane.b32.xlu0 %v2783, 64
    %v2787 = vpop.permute.xlu0 %2786
    %v2789 = vmul.f32 %v2782, %v2787
    %2791 = vrot.lane.b32.xlu0 %v2789, 32
    %v2792 = vpop.permute.xlu0 %2791
    %v2794 = vadd.f32 %v2784, %v2792
    %v2795 = vtanh.pop %v2794
    %2797 = vrot.lane.b32.xlu0 %v2795, 64
    %v2798 = vpop.permute.xlu0 %2797
    %v2800 = vmul.f32 %v2782, %v2798
    %v2801 = vld [vmem:[#allocation2 + $0x8] sm:$0xff]
    %2803 = vrot.lane.b32.xlu0 %v2704, 32
    %v2804 = vpop.permute.xlu0 %2803
    %v2805 = vsel %vm142, %v2804, 0
    %2807 = vmatprep.subr.mxu0 0.0
    %2808 = vmatpush1.msra.mxu0 %v2601
    %2809 = vmatprep.subr.mxu0 0.0
    %2810 = vmatpush1.msra.mxu0 %v2602
    %2811 = vmatprep.subr.mxu0 0.0
    %2812 = vmatpush1.msra.mxu0 %v2603
    %2813 = vmatprep.subr.mxu0 0.0
    %2814 = vmatpush1.msra.mxu0 %v2604
    %2815 = vmatprep.subr.mxu0 0.0
    %2816 = vmatpush1.msra.mxu0 0.0
    %2817 = vmatprep.subr.mxu0 0.0
    %2818 = vmatpush1.msra.mxu0 0.0
    %2819 = vmatprep.subr.mxu0 0.0
    %2820 = vmatpush1.msra.mxu0 0.0
    %2821 = vmatprep.subr.mxu0 0.0
    %2822 = vmatpush1.msra.mxu0 0.0
    %2823 = vmatprep.subr.mxu0 0.0
    %2824 = vmatpush1.msra.mxu0 0.0
    %2825 = vmatprep.subr.mxu0 0.0
    %2826 = vmatpush1.msra.mxu0 0.0
    %2827 = vmatprep.subr.mxu0 0.0
    %2828 = vmatpush1.msra.mxu0 0.0
    %2829 = vmatprep.subr.mxu0 0.0
    %2830 = vmatpush1.msra.mxu0 0.0
    %2831 = vmatprep.subr.mxu0 0.0
    %2832 = vmatpush1.msra.mxu0 0.0
    %2833 = vmatprep.subr.mxu0 0.0
    %2834 = vmatpush1.msra.mxu0 0.0
    %2835 = vmatprep.subr.mxu0 0.0
    %2836 = vmatpush1.msra.mxu0 0.0
    %2837 = vmatprep.subr.mxu0 0.0
    %2838 = vmatpush1.msra.mxu0 0.0
    %2839 = vmatprep.subr.mxu0 0.0
    %2840 = vmatpush1.msra.mxu0 0.0
    %2841 = vmatprep.subr.mxu0 0.0
    %2842 = vmatpush1.msra.mxu0 0.0
    %2843 = vmatprep.subr.mxu0 0.0
    %2844 = vmatpush1.msra.mxu0 0.0
    %2845 = vmatprep.subr.mxu0 0.0
    %2846 = vmatpush1.msra.mxu0 0.0
    %2847 = vmatprep.subr.mxu0 0.0
    %2848 = vmatpush1.msra.mxu0 0.0
    %2849 = vmatprep.subr.mxu0 0.0
    %2850 = vmatpush1.msra.mxu0 0.0
    %2851 = vmatprep.subr.mxu0 0.0
    %2852 = vmatpush1.msra.mxu0 0.0
    %2853 = vmatprep.subr.mxu0 0.0
    %2854 = vmatpush1.msra.mxu0 0.0
    %2855 = vmatprep.subr.mxu0 0.0
    %2856 = vmatpush1.msra.mxu0 0.0
    %2857 = vmatprep.subr.mxu0 0.0
    %2858 = vmatpush1.msra.mxu0 0.0
    %2859 = vmatprep.subr.mxu0 0.0
    %2860 = vmatpush1.msra.mxu0 0.0
    %2861 = vmatprep.subr.mxu0 0.0
    %2862 = vmatpush1.msra.mxu0 0.0
    %2863 = vmatprep.subr.mxu0 0.0
    %2864 = vmatpush1.msra.mxu0 0.0
    %2865 = vmatprep.subr.mxu0 0.0
    %2866 = vmatpush1.msra.mxu0 0.0
    %2867 = vmatprep.subr.mxu0 0.0
    %2868 = vmatpush1.msra.mxu0 0.0
    %2869 = vmatprep.subr.mxu0 0.0
    %2870 = vmatpush1.msra.mxu0 0.0
    %2871 = vmatprep.mubr.f32.mxu0 0.0
    %2872 = vmatmul.mubr.f32.gmra.mrb[0].mxu0 %v2805
    %v2873 = vpop.f32.mrb[0].mxu0
    %v2874 = vadd.f32 0.0, %v2873
    %v2875 = vpop.f32.mrb[0].mxu0
    %2876 = vdwg.mxu0
    %v2877 = vadd.f32 %v2801, %v2874
    %v2878 = vxor.u32 %v2877, 2147483648
    %v2879 = vmul.f32 %v2878, 1.442695
    %v2880 = vpow.pop %v2879
    %v2881 = vadd.f32 %v2880, 1.0
    %v2882 = vrcp.pop %v2881
    %v2883 = vmul.f32 1.0, %v2882
    %v2884 = vtanh.pop %v2877
    %v2885 = vmul.f32 %v2883, %v2698
    %2887 = vrot.lane.b32.xlu0 %v2884, 64
    %v2888 = vpop.permute.xlu0 %2887
    %v2890 = vmul.f32 %v2883, %v2888
    %2892 = vrot.lane.b32.xlu0 %v2890, 32
    %v2893 = vpop.permute.xlu0 %2892
    %v2895 = vadd.f32 %v2885, %v2893
    %v2896 = vtanh.pop %v2895
    %2898 = vrot.lane.b32.xlu0 %v2896, 64
    %v2899 = vpop.permute.xlu0 %2898
    %v2901 = vmul.f32 %v2883, %v2899
    %v2902 = vld [vmem:[#allocation3 + $0x30] sm:$0xff]
    %2904 = vrot.lane.b32.xlu0 %v2800, 32
    %v2905 = vpop.permute.xlu0 %2904
    %v2906 = vsel %vm142, %v2905, 0
    %2908 = vmatprep.subr.mxu0 0.0
    %2909 = vmatpush1.msra.mxu0 %v2605
    %2910 = vmatprep.subr.mxu0 0.0
    %2911 = vmatpush1.msra.mxu0 %v2606
    %2912 = vmatprep.subr.mxu0 0.0
    %2913 = vmatpush1.msra.mxu0 %v2607
    %2914 = vmatprep.subr.mxu0 0.0
    %2915 = vmatpush1.msra.mxu0 %v2608
    %2916 = vmatprep.subr.mxu0 0.0
    %2917 = vmatpush1.msra.mxu0 0.0
    %2918 = vmatprep.subr.mxu0 0.0
    %2919 = vmatpush1.msra.mxu0 0.0
    %2920 = vmatprep.subr.mxu0 0.0
    %2921 = vmatpush1.msra.mxu0 0.0
    %2922 = vmatprep.subr.mxu0 0.0
    %2923 = vmatpush1.msra.mxu0 0.0
    %2924 = vmatprep.subr.mxu0 0.0
    %2925 = vmatpush1.msra.mxu0 0.0
    %2926 = vmatprep.subr.mxu0 0.0
    %2927 = vmatpush1.msra.mxu0 0.0
    %2928 = vmatprep.subr.mxu0 0.0
    %2929 = vmatpush1.msra.mxu0 0.0
    %2930 = vmatprep.subr.mxu0 0.0
    %2931 = vmatpush1.msra.mxu0 0.0
    %2932 = vmatprep.subr.mxu0 0.0
    %2933 = vmatpush1.msra.mxu0 0.0
    %2934 = vmatprep.subr.mxu0 0.0
    %2935 = vmatpush1.msra.mxu0 0.0
    %2936 = vmatprep.subr.mxu0 0.0
    %2937 = vmatpush1.msra.mxu0 0.0
    %2938 = vmatprep.subr.mxu0 0.0
    %2939 = vmatpush1.msra.mxu0 0.0
    %2940 = vmatprep.subr.mxu0 0.0
    %2941 = vmatpush1.msra.mxu0 0.0
    %2942 = vmatprep.subr.mxu0 0.0
    %2943 = vmatpush1.msra.mxu0 0.0
    %2944 = vmatprep.subr.mxu0 0.0
    %2945 = vmatpush1.msra.mxu0 0.0
    %2946 = vmatprep.subr.mxu0 0.0
    %2947 = vmatpush1.msra.mxu0 0.0
    %2948 = vmatprep.subr.mxu0 0.0
    %2949 = vmatpush1.msra.mxu0 0.0
    %2950 = vmatprep.subr.mxu0 0.0
    %2951 = vmatpush1.msra.mxu0 0.0
    %2952 = vmatprep.subr.mxu0 0.0
    %2953 = vmatpush1.msra.mxu0 0.0
    %2954 = vmatprep.subr.mxu0 0.0
    %2955 = vmatpush1.msra.mxu0 0.0
    %2956 = vmatprep.subr.mxu0 0.0
    %2957 = vmatpush1.msra.mxu0 0.0
    %2958 = vmatprep.subr.mxu0 0.0
    %2959 = vmatpush1.msra.mxu0 0.0
    %2960 = vmatprep.subr.mxu0 0.0
    %2961 = vmatpush1.msra.mxu0 0.0
    %2962 = vmatprep.subr.mxu0 0.0
    %2963 = vmatpush1.msra.mxu0 0.0
    %2964 = vmatprep.subr.mxu0 0.0
    %2965 = vmatpush1.msra.mxu0 0.0
    %2966 = vmatprep.subr.mxu0 0.0
    %2967 = vmatpush1.msra.mxu0 0.0
    %2968 = vmatprep.subr.mxu0 0.0
    %2969 = vmatpush1.msra.mxu0 0.0
    %2970 = vmatprep.subr.mxu0 0.0
    %2971 = vmatpush1.msra.mxu0 0.0
    %2972 = vmatprep.mubr.f32.mxu0 0.0
    %2973 = vmatmul.mubr.f32.gmra.mrb[0].mxu0 %v2906
    %v2974 = vpop.f32.mrb[0].mxu0
    %v2975 = vadd.f32 0.0, %v2974
    %v2976 = vpop.f32.mrb[0].mxu0
    %2977 = vdwg.mxu0
    %v2978 = vadd.f32 %v2902, %v2975
    %v2979 = vxor.u32 %v2978, 2147483648
    %v2980 = vmul.f32 %v2979, 1.442695
    %v2981 = vpow.pop %v2980
    %v2982 = vadd.f32 %v2981, 1.0
    %v2983 = vrcp.pop %v2982
    %v2984 = vmul.f32 1.0, %v2983
    %v2985 = vtanh.pop %v2978
    %v2986 = vmul.f32 %v2984, %v2794
    %2988 = vrot.lane.b32.xlu0 %v2985, 64
    %v2989 = vpop.permute.xlu0 %2988
    %v2991 = vmul.f32 %v2984, %v2989
    %2993 = vrot.lane.b32.xlu0 %v2991, 32
    %v2994 = vpop.permute.xlu0 %2993
    %v2996 = vadd.f32 %v2986, %v2994
    %v2997 = vtanh.pop %v2996
    %2999 = vrot.lane.b32.xlu0 %v2997, 64
    %v3000 = vpop.permute.xlu0 %2999
    %v3002 = vmul.f32 %v2984, %v3000
    %v3003 = vld [vmem:[#allocation2 + $0x10] sm:$0xff]
    %3005 = vrot.lane.b32.xlu0 %v2901, 32
    %v3006 = vpop.permute.xlu0 %3005
    %v3007 = vsel %vm142, %v3006, 0
    %3009 = vmatprep.subr.mxu0 0.0
    %3010 = vmatpush1.msra.mxu0 %v2601
    %3011 = vmatprep.subr.mxu0 0.0
    %3012 = vmatpush1.msra.mxu0 %v2602
    %3013 = vmatprep.subr.mxu0 0.0
    %3014 = vmatpush1.msra.mxu0 %v2603
    %3015 = vmatprep.subr.mxu0 0.0
    %3016 = vmatpush1.msra.mxu0 %v2604
    %3017 = vmatprep.subr.mxu0 0.0
    %3018 = vmatpush1.msra.mxu0 0.0
    %3019 = vmatprep.subr.mxu0 0.0
    %3020 = vmatpush1.msra.mxu0 0.0
    %3021 = vmatprep.subr.mxu0 0.0
    %3022 = vmatpush1.msra.mxu0 0.0
    %3023 = vmatprep.subr.mxu0 0.0
    %3024 = vmatpush1.msra.mxu0 0.0
    %3025 = vmatprep.subr.mxu0 0.0
    %3026 = vmatpush1.msra.mxu0 0.0
    %3027 = vmatprep.subr.mxu0 0.0
    %3028 = vmatpush1.msra.mxu0 0.0
    %3029 = vmatprep.subr.mxu0 0.0
    %3030 = vmatpush1.msra.mxu0 0.0
    %3031 = vmatprep.subr.mxu0 0.0
    %3032 = vmatpush1.msra.mxu0 0.0
    %3033 = vmatprep.subr.mxu0 0.0
    %3034 = vmatpush1.msra.mxu0 0.0
    %3035 = vmatprep.subr.mxu0 0.0
    %3036 = vmatpush1.msra.mxu0 0.0
    %3037 = vmatprep.subr.mxu0 0.0
    %3038 = vmatpush1.msra.mxu0 0.0
    %3039 = vmatprep.subr.mxu0 0.0
    %3040 = vmatpush1.msra.mxu0 0.0
    %3041 = vmatprep.subr.mxu0 0.0
    %3042 = vmatpush1.msra.mxu0 0.0
    %3043 = vmatprep.subr.mxu0 0.0
    %3044 = vmatpush1.msra.mxu0 0.0
    %3045 = vmatprep.subr.mxu0 0.0
    %3046 = vmatpush1.msra.mxu0 0.0
    %3047 = vmatprep.subr.mxu0 0.0
    %3048 = vmatpush1.msra.mxu0 0.0
    %3049 = vmatprep.subr.mxu0 0.0
    %3050 = vmatpush1.msra.mxu0 0.0
    %3051 = vmatprep.subr.mxu0 0.0
    %3052 = vmatpush1.msra.mxu0 0.0
    %3053 = vmatprep.subr.mxu0 0.0
    %3054 = vmatpush1.msra.mxu0 0.0
    %3055 = vmatprep.subr.mxu0 0.0
    %3056 = vmatpush1.msra.mxu0 0.0
    %3057 = vmatprep.subr.mxu0 0.0
    %3058 = vmatpush1.msra.mxu0 0.0
    %3059 = vmatprep.subr.mxu0 0.0
    %3060 = vmatpush1.msra.mxu0 0.0
    %3061 = vmatprep.subr.mxu0 0.0
    %3062 = vmatpush1.msra.mxu0 0.0
    %3063 = vmatprep.subr.mxu0 0.0
    %3064 = vmatpush1.msra.mxu0 0.0
    %3065 = vmatprep.subr.mxu0 0.0
    %3066 = vmatpush1.msra.mxu0 0.0
    %3067 = vmatprep.subr.mxu0 0.0
    %3068 = vmatpush1.msra.mxu0 0.0
    %3069 = vmatprep.subr.mxu0 0.0
    %3070 = vmatpush1.msra.mxu0 0.0
    %3071 = vmatprep.subr.mxu0 0.0
    %3072 = vmatpush1.msra.mxu0 0.0
    %3073 = vmatprep.mubr.f32.mxu0 0.0
    %3074 = vmatmul.mubr.f32.gmra.mrb[0].mxu0 %v3007
    %v3075 = vpop.f32.mrb[0].mxu0
    %v3076 = vadd.f32 0.0, %v3075
    %v3077 = vpop.f32.mrb[0].mxu0
    %3078 = vdwg.mxu0
    %v3079 = vadd.f32 %v3003, %v3076
    %v3080 = vxor.u32 %v3079, 2147483648
    %v3081 = vmul.f32 %v3080, 1.442695
    %v3082 = vpow.pop %v3081
    %v3083 = vadd.f32 %v3082, 1.0
    %v3084 = vrcp.pop %v3083
    %v3085 = vmul.f32 1.0, %v3084
    %v3086 = vtanh.pop %v3079
    %v3087 = vmul.f32 %v3085, %v2895
    %3089 = vrot.lane.b32.xlu0 %v3086, 64
    %v3090 = vpop.permute.xlu0 %3089
    %v3092 = vmul.f32 %v3085, %v3090
    %3094 = vrot.lane.b32.xlu0 %v3092, 32
    %v3095 = vpop.permute.xlu0 %3094
    %v3097 = vadd.f32 %v3087, %v3095
    %v3098 = vtanh.pop %v3097
    %3100 = vrot.lane.b32.xlu0 %v3098, 64
    %v3101 = vpop.permute.xlu0 %3100
    %v3103 = vmul.f32 %v3085, %v3101
    %v3104 = vld [vmem:[#allocation3 + $0x28] sm:$0xff]
    %3106 = vrot.lane.b32.xlu0 %v3002, 32
    %v3107 = vpop.permute.xlu0 %3106
    %v3108 = vsel %vm142, %v3107, 0
    %3110 = vmatprep.subr.mxu0 0.0
    %3111 = vmatpush1.msra.mxu0 %v2605
    %3112 = vmatprep.subr.mxu0 0.0
    %3113 = vmatpush1.msra.mxu0 %v2606
    %3114 = vmatprep.subr.mxu0 0.0
    %3115 = vmatpush1.msra.mxu0 %v2607
    %3116 = vmatprep.subr.mxu0 0.0
    %3117 = vmatpush1.msra.mxu0 %v2608
    %3118 = vmatprep.subr.mxu0 0.0
    %3119 = vmatpush1.msra.mxu0 0.0
    %3120 = vmatprep.subr.mxu0 0.0
    %3121 = vmatpush1.msra.mxu0 0.0
    %3122 = vmatprep.subr.mxu0 0.0
    %3123 = vmatpush1.msra.mxu0 0.0
    %3124 = vmatprep.subr.mxu0 0.0
    %3125 = vmatpush1.msra.mxu0 0.0
    %3126 = vmatprep.subr.mxu0 0.0
    %3127 = vmatpush1.msra.mxu0 0.0
    %3128 = vmatprep.subr.mxu0 0.0
    %3129 = vmatpush1.msra.mxu0 0.0
    %3130 = vmatprep.subr.mxu0 0.0
    %3131 = vmatpush1.msra.mxu0 0.0
    %3132 = vmatprep.subr.mxu0 0.0
    %3133 = vmatpush1.msra.mxu0 0.0
    %3134 = vmatprep.subr.mxu0 0.0
    %3135 = vmatpush1.msra.mxu0 0.0
    %3136 = vmatprep.subr.mxu0 0.0
    %3137 = vmatpush1.msra.mxu0 0.0
    %3138 = vmatprep.subr.mxu0 0.0
    %3139 = vmatpush1.msra.mxu0 0.0
    %3140 = vmatprep.subr.mxu0 0.0
    %3141 = vmatpush1.msra.mxu0 0.0
    %3142 = vmatprep.subr.mxu0 0.0
    %3143 = vmatpush1.msra.mxu0 0.0
    %3144 = vmatprep.subr.mxu0 0.0
    %3145 = vmatpush1.msra.mxu0 0.0
    %3146 = vmatprep.subr.mxu0 0.0
    %3147 = vmatpush1.msra.mxu0 0.0
    %3148 = vmatprep.subr.mxu0 0.0
    %3149 = vmatpush1.msra.mxu0 0.0
    %3150 = vmatprep.subr.mxu0 0.0
    %3151 = vmatpush1.msra.mxu0 0.0
    %3152 = vmatprep.subr.mxu0 0.0
    %3153 = vmatpush1.msra.mxu0 0.0
    %3154 = vmatprep.subr.mxu0 0.0
    %3155 = vmatpush1.msra.mxu0 0.0
    %3156 = vmatprep.subr.mxu0 0.0
    %3157 = vmatpush1.msra.mxu0 0.0
    %3158 = vmatprep.subr.mxu0 0.0
    %3159 = vmatpush1.msra.mxu0 0.0
    %3160 = vmatprep.subr.mxu0 0.0
    %3161 = vmatpush1.msra.mxu0 0.0
    %3162 = vmatprep.subr.mxu0 0.0
    %3163 = vmatpush1.msra.mxu0 0.0
    %3164 = vmatprep.subr.mxu0 0.0
    %3165 = vmatpush1.msra.mxu0 0.0
    %3166 = vmatprep.subr.mxu0 0.0
    %3167 = vmatpush1.msra.mxu0 0.0
    %3168 = vmatprep.subr.mxu0 0.0
    %3169 = vmatpush1.msra.mxu0 0.0
    %3170 = vmatprep.subr.mxu0 0.0
    %3171 = vmatpush1.msra.mxu0 0.0
    %3172 = vmatprep.subr.mxu0 0.0
    %3173 = vmatpush1.msra.mxu0 0.0
    %3174 = vmatprep.mubr.f32.mxu0 0.0
    %3175 = vmatmul.mubr.f32.gmra.mrb[0].mxu0 %v3108
    %v3176 = vpop.f32.mrb[0].mxu0
    %v3177 = vadd.f32 0.0, %v3176
    %v3178 = vpop.f32.mrb[0].mxu0
    %3179 = vdwg.mxu0
    %v3180 = vadd.f32 %v3104, %v3177
    %v3181 = vxor.u32 %v3180, 2147483648
    %v3182 = vmul.f32 %v3181, 1.442695
    %v3183 = vpow.pop %v3182
    %v3184 = vadd.f32 %v3183, 1.0
    %v3185 = vrcp.pop %v3184
    %v3186 = vmul.f32 1.0, %v3185
    %v3187 = vtanh.pop %v3180
    %v3188 = vmul.f32 %v3186, %v2996
    %3190 = vrot.lane.b32.xlu0 %v3187, 64
    %v3191 = vpop.permute.xlu0 %3190
    %v3193 = vmul.f32 %v3186, %v3191
    %3195 = vrot.lane.b32.xlu0 %v3193, 32
    %v3196 = vpop.permute.xlu0 %3195
    %v3198 = vadd.f32 %v3188, %v3196
    %v3199 = vtanh.pop %v3198
    %3201 = vrot.lane.b32.xlu0 %v3199, 64
    %v3202 = vpop.permute.xlu0 %3201
    %v3204 = vmul.f32 %v3186, %v3202
    %v3205 = vld [vmem:[#allocation2 + $0x18] sm:$0xff]
    %3207 = vrot.lane.b32.xlu0 %v3103, 32
    %v3208 = vpop.permute.xlu0 %3207
    %v3209 = vsel %vm142, %v3208, 0
    %3211 = vmatprep.subr.mxu0 0.0
    %3212 = vmatpush1.msra.mxu0 %v2601
    %3213 = vmatprep.subr.mxu0 0.0
    %3214 = vmatpush1.msra.mxu0 %v2602
    %3215 = vmatprep.subr.mxu0 0.0
    %3216 = vmatpush1.msra.mxu0 %v2603
    %3217 = vmatprep.subr.mxu0 0.0
    %3218 = vmatpush1.msra.mxu0 %v2604
    %3219 = vmatprep.subr.mxu0 0.0
    %3220 = vmatpush1.msra.mxu0 0.0
    %3221 = vmatprep.subr.mxu0 0.0
    %3222 = vmatpush1.msra.mxu0 0.0
    %3223 = vmatprep.subr.mxu0 0.0
    %3224 = vmatpush1.msra.mxu0 0.0
    %3225 = vmatprep.subr.mxu0 0.0
    %3226 = vmatpush1.msra.mxu0 0.0
    %3227 = vmatprep.subr.mxu0 0.0
    %3228 = vmatpush1.msra.mxu0 0.0
    %3229 = vmatprep.subr.mxu0 0.0
    %3230 = vmatpush1.msra.mxu0 0.0
    %3231 = vmatprep.subr.mxu0 0.0
    %3232 = vmatpush1.msra.mxu0 0.0
    %3233 = vmatprep.subr.mxu0 0.0
    %3234 = vmatpush1.msra.mxu0 0.0
    %3235 = vmatprep.subr.mxu0 0.0
    %3236 = vmatpush1.msra.mxu0 0.0
    %3237 = vmatprep.subr.mxu0 0.0
    %3238 = vmatpush1.msra.mxu0 0.0
    %3239 = vmatprep.subr.mxu0 0.0
    %3240 = vmatpush1.msra.mxu0 0.0
    %3241 = vmatprep.subr.mxu0 0.0
    %3242 = vmatpush1.msra.mxu0 0.0
    %3243 = vmatprep.subr.mxu0 0.0
    %3244 = vmatpush1.msra.mxu0 0.0
    %3245 = vmatprep.subr.mxu0 0.0
    %3246 = vmatpush1.msra.mxu0 0.0
    %3247 = vmatprep.subr.mxu0 0.0
    %3248 = vmatpush1.msra.mxu0 0.0
    %3249 = vmatprep.subr.mxu0 0.0
    %3250 = vmatpush1.msra.mxu0 0.0
    %3251 = vmatprep.subr.mxu0 0.0
    %3252 = vmatpush1.msra.mxu0 0.0
    %3253 = vmatprep.subr.mxu0 0.0
    %3254 = vmatpush1.msra.mxu0 0.0
    %3255 = vmatprep.subr.mxu0 0.0
    %3256 = vmatpush1.msra.mxu0 0.0
    %3257 = vmatprep.subr.mxu0 0.0
    %3258 = vmatpush1.msra.mxu0 0.0
    %3259 = vmatprep.subr.mxu0 0.0
    %3260 = vmatpush1.msra.mxu0 0.0
    %3261 = vmatprep.subr.mxu0 0.0
    %3262 = vmatpush1.msra.mxu0 0.0
    %3263 = vmatprep.subr.mxu0 0.0
    %3264 = vmatpush1.msra.mxu0 0.0
    %3265 = vmatprep.subr.mxu0 0.0
    %3266 = vmatpush1.msra.mxu0 0.0
    %3267 = vmatprep.subr.mxu0 0.0
    %3268 = vmatpush1.msra.mxu0 0.0
    %3269 = vmatprep.subr.mxu0 0.0
    %3270 = vmatpush1.msra.mxu0 0.0
    %3271 = vmatprep.subr.mxu0 0.0
    %3272 = vmatpush1.msra.mxu0 0.0
    %3273 = vmatprep.subr.mxu0 0.0
    %3274 = vmatpush1.msra.mxu0 0.0
    %3275 = vmatprep.mubr.f32.mxu0 0.0
    %3276 = vmatmul.mubr.f32.gmra.mrb[0].mxu0 %v3209
    %v3277 = vpop.f32.mrb[0].mxu0
    %v3278 = vadd.f32 0.0, %v3277
    %v3279 = vpop.f32.mrb[0].mxu0
    %3280 = vdwg.mxu0
    %v3281 = vadd.f32 %v3205, %v3278
    %v3282 = vxor.u32 %v3281, 2147483648
    %v3283 = vmul.f32 %v3282, 1.442695
    %v3284 = vpow.pop %v3283
    %v3285 = vadd.f32 %v3284, 1.0
    %v3286 = vrcp.pop %v3285
    %v3287 = vmul.f32 1.0, %v3286
    %v3288 = vtanh.pop %v3281
    %v3289 = vmul.f32 %v3287, %v3097
    %3291 = vrot.lane.b32.xlu0 %v3288, 64
    %v3292 = vpop.permute.xlu0 %3291
    %v3294 = vmul.f32 %v3287, %v3292
    %3296 = vrot.lane.b32.xlu0 %v3294, 32
    %v3297 = vpop.permute.xlu0 %3296
    %v3299 = vadd.f32 %v3289, %v3297
    %v3300 = vtanh.pop %v3299
    %3302 = vrot.lane.b32.xlu0 %v3300, 64
    %v3303 = vpop.permute.xlu0 %3302
    %v3305 = vmul.f32 %v3287, %v3303
    %v3306 = vld [vmem:[#allocation3 + $0x20] sm:$0xff]
    %3308 = vrot.lane.b32.xlu0 %v3204, 32
    %v3309 = vpop.permute.xlu0 %3308
    %v3310 = vsel %vm142, %v3309, 0
    %3312 = vmatprep.subr.mxu0 0.0
    %3313 = vmatpush1.msra.mxu0 %v2605
    %3314 = vmatprep.subr.mxu0 0.0
    %3315 = vmatpush1.msra.mxu0 %v2606
    %3316 = vmatprep.subr.mxu0 0.0
    %3317 = vmatpush1.msra.mxu0 %v2607
    %3318 = vmatprep.subr.mxu0 0.0
    %3319 = vmatpush1.msra.mxu0 %v2608
    %3320 = vmatprep.subr.mxu0 0.0
    %3321 = vmatpush1.msra.mxu0 0.0
    %3322 = vmatprep.subr.mxu0 0.0
    %3323 = vmatpush1.msra.mxu0 0.0
    %3324 = vmatprep.subr.mxu0 0.0
    %3325 = vmatpush1.msra.mxu0 0.0
    %3326 = vmatprep.subr.mxu0 0.0
    %3327 = vmatpush1.msra.mxu0 0.0
    %3328 = vmatprep.subr.mxu0 0.0
    %3329 = vmatpush1.msra.mxu0 0.0
    %3330 = vmatprep.subr.mxu0 0.0
    %3331 = vmatpush1.msra.mxu0 0.0
    %3332 = vmatprep.subr.mxu0 0.0
    %3333 = vmatpush1.msra.mxu0 0.0
    %3334 = vmatprep.subr.mxu0 0.0
    %3335 = vmatpush1.msra.mxu0 0.0
    %3336 = vmatprep.subr.mxu0 0.0
    %3337 = vmatpush1.msra.mxu0 0.0
    %3338 = vmatprep.subr.mxu0 0.0
    %3339 = vmatpush1.msra.mxu0 0.0
    %3340 = vmatprep.subr.mxu0 0.0
    %3341 = vmatpush1.msra.mxu0 0.0
    %3342 = vmatprep.subr.mxu0 0.0
    %3343 = vmatpush1.msra.mxu0 0.0
    %3344 = vmatprep.subr.mxu0 0.0
    %3345 = vmatpush1.msra.mxu0 0.0
    %3346 = vmatprep.subr.mxu0 0.0
    %3347 = vmatpush1.msra.mxu0 0.0
    %3348 = vmatprep.subr.mxu0 0.0
    %3349 = vmatpush1.msra.mxu0 0.0
    %3350 = vmatprep.subr.mxu0 0.0
    %3351 = vmatpush1.msra.mxu0 0.0
    %3352 = vmatprep.subr.mxu0 0.0
    %3353 = vmatpush1.msra.mxu0 0.0
    %3354 = vmatprep.subr.mxu0 0.0
    %3355 = vmatpush1.msra.mxu0 0.0
    %3356 = vmatprep.subr.mxu0 0.0
    %3357 = vmatpush1.msra.mxu0 0.0
    %3358 = vmatprep.subr.mxu0 0.0
    %3359 = vmatpush1.msra.mxu0 0.0
    %3360 = vmatprep.subr.mxu0 0.0
    %3361 = vmatpush1.msra.mxu0 0.0
    %3362 = vmatprep.subr.mxu0 0.0
    %3363 = vmatpush1.msra.mxu0 0.0
    %3364 = vmatprep.subr.mxu0 0.0
    %3365 = vmatpush1.msra.mxu0 0.0
    %3366 = vmatprep.subr.mxu0 0.0
    %3367 = vmatpush1.msra.mxu0 0.0
    %3368 = vmatprep.subr.mxu0 0.0
    %3369 = vmatpush1.msra.mxu0 0.0
    %3370 = vmatprep.subr.mxu0 0.0
    %3371 = vmatpush1.msra.mxu0 0.0
    %3372 = vmatprep.subr.mxu0 0.0
    %3373 = vmatpush1.msra.mxu0 0.0
    %3374 = vmatprep.subr.mxu0 0.0
    %3375 = vmatpush1.msra.mxu0 0.0
    %3376 = vmatprep.mubr.f32.mxu0 0.0
    %3377 = vmatmul.mubr.f32.gmra.mrb[0].mxu0 %v3310
    %v3378 = vpop.f32.mrb[0].mxu0
    %v3379 = vadd.f32 0.0, %v3378
    %v3380 = vpop.f32.mrb[0].mxu0
    %3381 = vdwg.mxu0
    %v3382 = vadd.f32 %v3306, %v3379
    %v3383 = vxor.u32 %v3382, 2147483648
    %v3384 = vmul.f32 %v3383, 1.442695
    %v3385 = vpow.pop %v3384
    %v3386 = vadd.f32 %v3385, 1.0
    %v3387 = vrcp.pop %v3386
    %v3388 = vmul.f32 1.0, %v3387
    %v3389 = vtanh.pop %v3382
    %v3390 = vmul.f32 %v3388, %v3198
    %3392 = vrot.lane.b32.xlu0 %v3389, 64
    %v3393 = vpop.permute.xlu0 %3392
    %v3395 = vmul.f32 %v3388, %v3393
    %3397 = vrot.lane.b32.xlu0 %v3395, 32
    %v3398 = vpop.permute.xlu0 %3397
    %v3400 = vadd.f32 %v3390, %v3398
    %v3401 = vtanh.pop %v3400
    %3403 = vrot.lane.b32.xlu0 %v3401, 64
    %v3404 = vpop.permute.xlu0 %3403
    %v3406 = vmul.f32 %v3388, %v3404
    %v3407 = vld [vmem:[#allocation2 + $0x20] sm:$0xff]
    %3409 = vrot.lane.b32.xlu0 %v3305, 32
    %v3410 = vpop.permute.xlu0 %3409
    %v3411 = vsel %vm142, %v3410, 0
    %3413 = vmatprep.subr.mxu0 0.0
    %3414 = vmatpush1.msra.mxu0 %v2601
    %3415 = vmatprep.subr.mxu0 0.0
    %3416 = vmatpush1.msra.mxu0 %v2602
    %3417 = vmatprep.subr.mxu0 0.0
    %3418 = vmatpush1.msra.mxu0 %v2603
    %3419 = vmatprep.subr.mxu0 0.0
    %3420 = vmatpush1.msra.mxu0 %v2604
    %3421 = vmatprep.subr.mxu0 0.0
    %3422 = vmatpush1.msra.mxu0 0.0
    %3423 = vmatprep.subr.mxu0 0.0
    %3424 = vmatpush1.msra.mxu0 0.0
    %3425 = vmatprep.subr.mxu0 0.0
    %3426 = vmatpush1.msra.mxu0 0.0
    %3427 = vmatprep.subr.mxu0 0.0
    %3428 = vmatpush1.msra.mxu0 0.0
    %3429 = vmatprep.subr.mxu0 0.0
    %3430 = vmatpush1.msra.mxu0 0.0
    %3431 = vmatprep.subr.mxu0 0.0
    %3432 = vmatpush1.msra.mxu0 0.0
    %3433 = vmatprep.subr.mxu0 0.0
    %3434 = vmatpush1.msra.mxu0 0.0
    %3435 = vmatprep.subr.mxu0 0.0
    %3436 = vmatpush1.msra.mxu0 0.0
    %3437 = vmatprep.subr.mxu0 0.0
    %3438 = vmatpush1.msra.mxu0 0.0
    %3439 = vmatprep.subr.mxu0 0.0
    %3440 = vmatpush1.msra.mxu0 0.0
    %3441 = vmatprep.subr.mxu0 0.0
    %3442 = vmatpush1.msra.mxu0 0.0
    %3443 = vmatprep.subr.mxu0 0.0
    %3444 = vmatpush1.msra.mxu0 0.0
    %3445 = vmatprep.subr.mxu0 0.0
    %3446 = vmatpush1.msra.mxu0 0.0
    %3447 = vmatprep.subr.mxu0 0.0
    %3448 = vmatpush1.msra.mxu0 0.0
    %3449 = vmatprep.subr.mxu0 0.0
    %3450 = vmatpush1.msra.mxu0 0.0
    %3451 = vmatprep.subr.mxu0 0.0
    %3452 = vmatpush1.msra.mxu0 0.0
    %3453 = vmatprep.subr.mxu0 0.0
    %3454 = vmatpush1.msra.mxu0 0.0
    %3455 = vmatprep.subr.mxu0 0.0
    %3456 = vmatpush1.msra.mxu0 0.0
    %3457 = vmatprep.subr.mxu0 0.0
    %3458 = vmatpush1.msra.mxu0 0.0
    %3459 = vmatprep.subr.mxu0 0.0
    %3460 = vmatpush1.msra.mxu0 0.0
    %3461 = vmatprep.subr.mxu0 0.0
    %3462 = vmatpush1.msra.mxu0 0.0
    %3463 = vmatprep.subr.mxu0 0.0
    %3464 = vmatpush1.msra.mxu0 0.0
    %3465 = vmatprep.subr.mxu0 0.0
    %3466 = vmatpush1.msra.mxu0 0.0
    %3467 = vmatprep.subr.mxu0 0.0
    %3468 = vmatpush1.msra.mxu0 0.0
    %3469 = vmatprep.subr.mxu0 0.0
    %3470 = vmatpush1.msra.mxu0 0.0
    %3471 = vmatprep.subr.mxu0 0.0
    %3472 = vmatpush1.msra.mxu0 0.0
    %3473 = vmatprep.subr.mxu0 0.0
    %3474 = vmatpush1.msra.mxu0 0.0
    %3475 = vmatprep.subr.mxu0 0.0
    %3476 = vmatpush1.msra.mxu0 0.0
    %3477 = vmatprep.mubr.f32.mxu0 0.0
    %3478 = vmatmul.mubr.f32.gmra.mrb[0].mxu0 %v3411
    %v3479 = vpop.f32.mrb[0].mxu0
    %v3480 = vadd.f32 0.0, %v3479
    %v3481 = vpop.f32.mrb[0].mxu0
    %3482 = vdwg.mxu0
    %v3483 = vadd.f32 %v3407, %v3480
    %v3484 = vxor.u32 %v3483, 2147483648
    %v3485 = vmul.f32 %v3484, 1.442695
    %v3486 = vpow.pop %v3485
    %v3487 = vadd.f32 %v3486, 1.0
    %v3488 = vrcp.pop %v3487
    %v3489 = vmul.f32 1.0, %v3488
    %v3490 = vtanh.pop %v3483
    %v3491 = vmul.f32 %v3489, %v3299
    %3493 = vrot.lane.b32.xlu0 %v3490, 64
    %v3494 = vpop.permute.xlu0 %3493
    %v3496 = vmul.f32 %v3489, %v3494
    %3498 = vrot.lane.b32.xlu0 %v3496, 32
    %v3499 = vpop.permute.xlu0 %3498
    %v3501 = vadd.f32 %v3491, %v3499
    %v3502 = vtanh.pop %v3501
    %3504 = vrot.lane.b32.xlu0 %v3502, 64
    %v3505 = vpop.permute.xlu0 %3504
    %v3507 = vmul.f32 %v3489, %v3505
    %v3508 = vld [vmem:[#allocation3 + $0x18] sm:$0xff]
    %3510 = vrot.lane.b32.xlu0 %v3406, 32
    %v3511 = vpop.permute.xlu0 %3510
    %v3512 = vsel %vm142, %v3511, 0
    %3514 = vmatprep.subr.mxu0 0.0
    %3515 = vmatpush1.msra.mxu0 %v2605
    %3516 = vmatprep.subr.mxu0 0.0
    %3517 = vmatpush1.msra.mxu0 %v2606
    %3518 = vmatprep.subr.mxu0 0.0
    %3519 = vmatpush1.msra.mxu0 %v2607
    %3520 = vmatprep.subr.mxu0 0.0
    %3521 = vmatpush1.msra.mxu0 %v2608
    %3522 = vmatprep.subr.mxu0 0.0
    %3523 = vmatpush1.msra.mxu0 0.0
    %3524 = vmatprep.subr.mxu0 0.0
    %3525 = vmatpush1.msra.mxu0 0.0
    %3526 = vmatprep.subr.mxu0 0.0
    %3527 = vmatpush1.msra.mxu0 0.0
    %3528 = vmatprep.subr.mxu0 0.0
    %3529 = vmatpush1.msra.mxu0 0.0
    %3530 = vmatprep.subr.mxu0 0.0
    %3531 = vmatpush1.msra.mxu0 0.0
    %3532 = vmatprep.subr.mxu0 0.0
    %3533 = vmatpush1.msra.mxu0 0.0
    %3534 = vmatprep.subr.mxu0 0.0
    %3535 = vmatpush1.msra.mxu0 0.0
    %3536 = vmatprep.subr.mxu0 0.0
    %3537 = vmatpush1.msra.mxu0 0.0
    %3538 = vmatprep.subr.mxu0 0.0
    %3539 = vmatpush1.msra.mxu0 0.0
    %3540 = vmatprep.subr.mxu0 0.0
    %3541 = vmatpush1.msra.mxu0 0.0
    %3542 = vmatprep.subr.mxu0 0.0
    %3543 = vmatpush1.msra.mxu0 0.0
    %3544 = vmatprep.subr.mxu0 0.0
    %3545 = vmatpush1.msra.mxu0 0.0
    %3546 = vmatprep.subr.mxu0 0.0
    %3547 = vmatpush1.msra.mxu0 0.0
    %3548 = vmatprep.subr.mxu0 0.0
    %3549 = vmatpush1.msra.mxu0 0.0
    %3550 = vmatprep.subr.mxu0 0.0
    %3551 = vmatpush1.msra.mxu0 0.0
    %3552 = vmatprep.subr.mxu0 0.0
    %3553 = vmatpush1.msra.mxu0 0.0
    %3554 = vmatprep.subr.mxu0 0.0
    %3555 = vmatpush1.msra.mxu0 0.0
    %3556 = vmatprep.subr.mxu0 0.0
    %3557 = vmatpush1.msra.mxu0 0.0
    %3558 = vmatprep.subr.mxu0 0.0
    %3559 = vmatpush1.msra.mxu0 0.0
    %3560 = vmatprep.subr.mxu0 0.0
    %3561 = vmatpush1.msra.mxu0 0.0
    %3562 = vmatprep.subr.mxu0 0.0
    %3563 = vmatpush1.msra.mxu0 0.0
    %3564 = vmatprep.subr.mxu0 0.0
    %3565 = vmatpush1.msra.mxu0 0.0
    %3566 = vmatprep.subr.mxu0 0.0
    %3567 = vmatpush1.msra.mxu0 0.0
    %3568 = vmatprep.subr.mxu0 0.0
    %3569 = vmatpush1.msra.mxu0 0.0
    %3570 = vmatprep.subr.mxu0 0.0
    %3571 = vmatpush1.msra.mxu0 0.0
    %3572 = vmatprep.subr.mxu0 0.0
    %3573 = vmatpush1.msra.mxu0 0.0
    %3574 = vmatprep.subr.mxu0 0.0
    %3575 = vmatpush1.msra.mxu0 0.0
    %3576 = vmatprep.subr.mxu0 0.0
    %3577 = vmatpush1.msra.mxu0 0.0
    %3578 = vmatprep.mubr.f32.mxu0 0.0
    %3579 = vmatmul.mubr.f32.gmra.mrb[0].mxu0 %v3512
    %v3580 = vpop.f32.mrb[0].mxu0
    %v3581 = vadd.f32 0.0, %v3580
    %v3582 = vpop.f32.mrb[0].mxu0
    %3583 = vdwg.mxu0
    %v3584 = vadd.f32 %v3508, %v3581
    %v3585 = vxor.u32 %v3584, 2147483648
    %v3586 = vmul.f32 %v3585, 1.442695
    %v3587 = vpow.pop %v3586
    %v3588 = vadd.f32 %v3587, 1.0
    %v3589 = vrcp.pop %v3588
    %v3590 = vmul.f32 1.0, %v3589
    %v3591 = vtanh.pop %v3584
    %v3592 = vmul.f32 %v3590, %v3400
    %3594 = vrot.lane.b32.xlu0 %v3591, 64
    %v3595 = vpop.permute.xlu0 %3594
    %v3597 = vmul.f32 %v3590, %v3595
    %3599 = vrot.lane.b32.xlu0 %v3597, 32
    %v3600 = vpop.permute.xlu0 %3599
    %v3602 = vadd.f32 %v3592, %v3600
    %v3603 = vtanh.pop %v3602
    %3605 = vrot.lane.b32.xlu0 %v3603, 64
    %v3606 = vpop.permute.xlu0 %3605
    %v3608 = vmul.f32 %v3590, %v3606
    %v3609 = vld [vmem:[#allocation2 + $0x28] sm:$0xff]
    %3611 = vrot.lane.b32.xlu0 %v3507, 32
    %v3612 = vpop.permute.xlu0 %3611
    %v3613 = vsel %vm142, %v3612, 0
    %3615 = vmatprep.subr.mxu0 0.0
    %3616 = vmatpush1.msra.mxu0 %v2601
    %3617 = vmatprep.subr.mxu0 0.0
    %3618 = vmatpush1.msra.mxu0 %v2602
    %3619 = vmatprep.subr.mxu0 0.0
    %3620 = vmatpush1.msra.mxu0 %v2603
    %3621 = vmatprep.subr.mxu0 0.0
    %3622 = vmatpush1.msra.mxu0 %v2604
    %3623 = vmatprep.subr.mxu0 0.0
    %3624 = vmatpush1.msra.mxu0 0.0
    %3625 = vmatprep.subr.mxu0 0.0
    %3626 = vmatpush1.msra.mxu0 0.0
    %3627 = vmatprep.subr.mxu0 0.0
    %3628 = vmatpush1.msra.mxu0 0.0
    %3629 = vmatprep.subr.mxu0 0.0
    %3630 = vmatpush1.msra.mxu0 0.0
    %3631 = vmatprep.subr.mxu0 0.0
    %3632 = vmatpush1.msra.mxu0 0.0
    %3633 = vmatprep.subr.mxu0 0.0
    %3634 = vmatpush1.msra.mxu0 0.0
    %3635 = vmatprep.subr.mxu0 0.0
    %3636 = vmatpush1.msra.mxu0 0.0
    %3637 = vmatprep.subr.mxu0 0.0
    %3638 = vmatpush1.msra.mxu0 0.0
    %3639 = vmatprep.subr.mxu0 0.0
    %3640 = vmatpush1.msra.mxu0 0.0
    %3641 = vmatprep.subr.mxu0 0.0
    %3642 = vmatpush1.msra.mxu0 0.0
    %3643 = vmatprep.subr.mxu0 0.0
    %3644 = vmatpush1.msra.mxu0 0.0
    %3645 = vmatprep.subr.mxu0 0.0
    %3646 = vmatpush1.msra.mxu0 0.0
    %3647 = vmatprep.subr.mxu0 0.0
    %3648 = vmatpush1.msra.mxu0 0.0
    %3649 = vmatprep.subr.mxu0 0.0
    %3650 = vmatpush1.msra.mxu0 0.0
    %3651 = vmatprep.subr.mxu0 0.0
    %3652 = vmatpush1.msra.mxu0 0.0
    %3653 = vmatprep.subr.mxu0 0.0
    %3654 = vmatpush1.msra.mxu0 0.0
    %3655 = vmatprep.subr.mxu0 0.0
    %3656 = vmatpush1.msra.mxu0 0.0
    %3657 = vmatprep.subr.mxu0 0.0
    %3658 = vmatpush1.msra.mxu0 0.0
    %3659 = vmatprep.subr.mxu0 0.0
    %3660 = vmatpush1.msra.mxu0 0.0
    %3661 = vmatprep.subr.mxu0 0.0
    %3662 = vmatpush1.msra.mxu0 0.0
    %3663 = vmatprep.subr.mxu0 0.0
    %3664 = vmatpush1.msra.mxu0 0.0
    %3665 = vmatprep.subr.mxu0 0.0
    %3666 = vmatpush1.msra.mxu0 0.0
    %3667 = vmatprep.subr.mxu0 0.0
    %3668 = vmatpush1.msra.mxu0 0.0
    %3669 = vmatprep.subr.mxu0 0.0
    %3670 = vmatpush1.msra.mxu0 0.0
    %3671 = vmatprep.subr.mxu0 0.0
    %3672 = vmatpush1.msra.mxu0 0.0
    %3673 = vmatprep.subr.mxu0 0.0
    %3674 = vmatpush1.msra.mxu0 0.0
    %3675 = vmatprep.subr.mxu0 0.0
    %3676 = vmatpush1.msra.mxu0 0.0
    %3677 = vmatprep.subr.mxu0 0.0
    %3678 = vmatpush1.msra.mxu0 0.0
    %3679 = vmatprep.mubr.f32.mxu0 0.0
    %3680 = vmatmul.mubr.f32.gmra.mrb[0].mxu0 %v3613
    %v3681 = vpop.f32.mrb[0].mxu0
    %v3682 = vadd.f32 0.0, %v3681
    %v3683 = vpop.f32.mrb[0].mxu0
    %3684 = vdwg.mxu0
    %v3685 = vadd.f32 %v3609, %v3682
    %v3686 = vxor.u32 %v3685, 2147483648
    %v3687 = vmul.f32 %v3686, 1.442695
    %v3688 = vpow.pop %v3687
    %v3689 = vadd.f32 %v3688, 1.0
    %v3690 = vrcp.pop %v3689
    %v3691 = vmul.f32 1.0, %v3690
    %v3692 = vtanh.pop %v3685
    %v3693 = vmul.f32 %v3691, %v3501
    %3695 = vrot.lane.b32.xlu0 %v3692, 64
    %v3696 = vpop.permute.xlu0 %3695
    %v3698 = vmul.f32 %v3691, %v3696
    %3700 = vrot.lane.b32.xlu0 %v3698, 32
    %v3701 = vpop.permute.xlu0 %3700
    %v3703 = vadd.f32 %v3693, %v3701
    %v3704 = vtanh.pop %v3703
    %3706 = vrot.lane.b32.xlu0 %v3704, 64
    %v3707 = vpop.permute.xlu0 %3706
    %v3709 = vmul.f32 %v3691, %v3707
    %v3710 = vld [vmem:[#allocation3 + $0x10] sm:$0xff]
    %3712 = vrot.lane.b32.xlu0 %v3608, 32
    %v3713 = vpop.permute.xlu0 %3712
    %v3714 = vsel %vm142, %v3713, 0
    %3716 = vmatprep.subr.mxu0 0.0
    %3717 = vmatpush1.msra.mxu0 %v2605
    %3718 = vmatprep.subr.mxu0 0.0
    %3719 = vmatpush1.msra.mxu0 %v2606
    %3720 = vmatprep.subr.mxu0 0.0
    %3721 = vmatpush1.msra.mxu0 %v2607
    %3722 = vmatprep.subr.mxu0 0.0
    %3723 = vmatpush1.msra.mxu0 %v2608
    %3724 = vmatprep.subr.mxu0 0.0
    %3725 = vmatpush1.msra.mxu0 0.0
    %3726 = vmatprep.subr.mxu0 0.0
    %3727 = vmatpush1.msra.mxu0 0.0
    %3728 = vmatprep.subr.mxu0 0.0
    %3729 = vmatpush1.msra.mxu0 0.0
    %3730 = vmatprep.subr.mxu0 0.0
    %3731 = vmatpush1.msra.mxu0 0.0
    %3732 = vmatprep.subr.mxu0 0.0
    %3733 = vmatpush1.msra.mxu0 0.0
    %3734 = vmatprep.subr.mxu0 0.0
    %3735 = vmatpush1.msra.mxu0 0.0
    %3736 = vmatprep.subr.mxu0 0.0
    %3737 = vmatpush1.msra.mxu0 0.0
    %3738 = vmatprep.subr.mxu0 0.0
    %3739 = vmatpush1.msra.mxu0 0.0
    %3740 = vmatprep.subr.mxu0 0.0
    %3741 = vmatpush1.msra.mxu0 0.0
    %3742 = vmatprep.subr.mxu0 0.0
    %3743 = vmatpush1.msra.mxu0 0.0
    %3744 = vmatprep.subr.mxu0 0.0
    %3745 = vmatpush1.msra.mxu0 0.0
    %3746 = vmatprep.subr.mxu0 0.0
    %3747 = vmatpush1.msra.mxu0 0.0
    %3748 = vmatprep.subr.mxu0 0.0
    %3749 = vmatpush1.msra.mxu0 0.0
    %3750 = vmatprep.subr.mxu0 0.0
    %3751 = vmatpush1.msra.mxu0 0.0
    %3752 = vmatprep.subr.mxu0 0.0
    %3753 = vmatpush1.msra.mxu0 0.0
    %3754 = vmatprep.subr.mxu0 0.0
    %3755 = vmatpush1.msra.mxu0 0.0
    %3756 = vmatprep.subr.mxu0 0.0
    %3757 = vmatpush1.msra.mxu0 0.0
    %3758 = vmatprep.subr.mxu0 0.0
    %3759 = vmatpush1.msra.mxu0 0.0
    %3760 = vmatprep.subr.mxu0 0.0
    %3761 = vmatpush1.msra.mxu0 0.0
    %3762 = vmatprep.subr.mxu0 0.0
    %3763 = vmatpush1.msra.mxu0 0.0
    %3764 = vmatprep.subr.mxu0 0.0
    %3765 = vmatpush1.msra.mxu0 0.0
    %3766 = vmatprep.subr.mxu0 0.0
    %3767 = vmatpush1.msra.mxu0 0.0
    %3768 = vmatprep.subr.mxu0 0.0
    %3769 = vmatpush1.msra.mxu0 0.0
    %3770 = vmatprep.subr.mxu0 0.0
    %3771 = vmatpush1.msra.mxu0 0.0
    %3772 = vmatprep.subr.mxu0 0.0
    %3773 = vmatpush1.msra.mxu0 0.0
    %3774 = vmatprep.subr.mxu0 0.0
    %3775 = vmatpush1.msra.mxu0 0.0
    %3776 = vmatprep.subr.mxu0 0.0
    %3777 = vmatpush1.msra.mxu0 0.0
    %3778 = vmatprep.subr.mxu0 0.0
    %3779 = vmatpush1.msra.mxu0 0.0
    %3780 = vmatprep.mubr.f32.mxu0 0.0
    %3781 = vmatmul.mubr.f32.gmra.mrb[0].mxu0 %v3714
    %v3782 = vpop.f32.mrb[0].mxu0
    %v3783 = vadd.f32 0.0, %v3782
    %v3784 = vpop.f32.mrb[0].mxu0
    %3785 = vdwg.mxu0
    %v3786 = vadd.f32 %v3710, %v3783
    %v3787 = vxor.u32 %v3786, 2147483648
    %v3788 = vmul.f32 %v3787, 1.442695
    %v3789 = vpow.pop %v3788
    %v3790 = vadd.f32 %v3789, 1.0
    %v3791 = vrcp.pop %v3790
    %v3792 = vmul.f32 1.0, %v3791
    %v3793 = vtanh.pop %v3786
    %v3794 = vmul.f32 %v3792, %v3602
    %3796 = vrot.lane.b32.xlu0 %v3793, 64
    %v3797 = vpop.permute.xlu0 %3796
    %v3799 = vmul.f32 %v3792, %v3797
    %3801 = vrot.lane.b32.xlu0 %v3799, 32
    %v3802 = vpop.permute.xlu0 %3801
    %v3804 = vadd.f32 %v3794, %v3802
    %v3805 = vtanh.pop %v3804
    %3807 = vrot.lane.b32.xlu0 %v3805, 64
    %v3808 = vpop.permute.xlu0 %3807
    %v3810 = vmul.f32 %v3792, %v3808
    %v3811 = vld [vmem:[#allocation2 + $0x30] sm:$0xff]
    %3813 = vrot.lane.b32.xlu0 %v3709, 32
    %v3814 = vpop.permute.xlu0 %3813
    %v3815 = vsel %vm142, %v3814, 0
    %3817 = vmatprep.subr.mxu0 0.0
    %3818 = vmatpush1.msra.mxu0 %v2601
    %3819 = vmatprep.subr.mxu0 0.0
    %3820 = vmatpush1.msra.mxu0 %v2602
    %3821 = vmatprep.subr.mxu0 0.0
    %3822 = vmatpush1.msra.mxu0 %v2603
    %3823 = vmatprep.subr.mxu0 0.0
    %3824 = vmatpush1.msra.mxu0 %v2604
    %3825 = vmatprep.subr.mxu0 0.0
    %3826 = vmatpush1.msra.mxu0 0.0
    %3827 = vmatprep.subr.mxu0 0.0
    %3828 = vmatpush1.msra.mxu0 0.0
    %3829 = vmatprep.subr.mxu0 0.0
    %3830 = vmatpush1.msra.mxu0 0.0
    %3831 = vmatprep.subr.mxu0 0.0
    %3832 = vmatpush1.msra.mxu0 0.0
    %3833 = vmatprep.subr.mxu0 0.0
    %3834 = vmatpush1.msra.mxu0 0.0
    %3835 = vmatprep.subr.mxu0 0.0
    %3836 = vmatpush1.msra.mxu0 0.0
    %3837 = vmatprep.subr.mxu0 0.0
    %3838 = vmatpush1.msra.mxu0 0.0
    %3839 = vmatprep.subr.mxu0 0.0
    %3840 = vmatpush1.msra.mxu0 0.0
    %3841 = vmatprep.subr.mxu0 0.0
    %3842 = vmatpush1.msra.mxu0 0.0
    %3843 = vmatprep.subr.mxu0 0.0
    %3844 = vmatpush1.msra.mxu0 0.0
    %3845 = vmatprep.subr.mxu0 0.0
    %3846 = vmatpush1.msra.mxu0 0.0
    %3847 = vmatprep.subr.mxu0 0.0
    %3848 = vmatpush1.msra.mxu0 0.0
    %3849 = vmatprep.subr.mxu0 0.0
    %3850 = vmatpush1.msra.mxu0 0.0
    %3851 = vmatprep.subr.mxu0 0.0
    %3852 = vmatpush1.msra.mxu0 0.0
    %3853 = vmatprep.subr.mxu0 0.0
    %3854 = vmatpush1.msra.mxu0 0.0
    %3855 = vmatprep.subr.mxu0 0.0
    %3856 = vmatpush1.msra.mxu0 0.0
    %3857 = vmatprep.subr.mxu0 0.0
    %3858 = vmatpush1.msra.mxu0 0.0
    %3859 = vmatprep.subr.mxu0 0.0
    %3860 = vmatpush1.msra.mxu0 0.0
    %3861 = vmatprep.subr.mxu0 0.0
    %3862 = vmatpush1.msra.mxu0 0.0
    %3863 = vmatprep.subr.mxu0 0.0
    %3864 = vmatpush1.msra.mxu0 0.0
    %3865 = vmatprep.subr.mxu0 0.0
    %3866 = vmatpush1.msra.mxu0 0.0
    %3867 = vmatprep.subr.mxu0 0.0
    %3868 = vmatpush1.msra.mxu0 0.0
    %3869 = vmatprep.subr.mxu0 0.0
    %3870 = vmatpush1.msra.mxu0 0.0
    %3871 = vmatprep.subr.mxu0 0.0
    %3872 = vmatpush1.msra.mxu0 0.0
    %3873 = vmatprep.subr.mxu0 0.0
    %3874 = vmatpush1.msra.mxu0 0.0
    %3875 = vmatprep.subr.mxu0 0.0
    %3876 = vmatpush1.msra.mxu0 0.0
    %3877 = vmatprep.subr.mxu0 0.0
    %3878 = vmatpush1.msra.mxu0 0.0
    %3879 = vmatprep.subr.mxu0 0.0
    %3880 = vmatpush1.msra.mxu0 0.0
    %3881 = vmatprep.mubr.f32.mxu0 0.0
    %3882 = vmatmul.mubr.f32.gmra.mrb[0].mxu0 %v3815
    %v3883 = vpop.f32.mrb[0].mxu0
    %v3884 = vadd.f32 0.0, %v3883
    %v3885 = vpop.f32.mrb[0].mxu0
    %3886 = vdwg.mxu0
    %v3887 = vadd.f32 %v3811, %v3884
    %v3888 = vxor.u32 %v3887, 2147483648
    %v3889 = vmul.f32 %v3888, 1.442695
    %v3890 = vpow.pop %v3889
    %v3891 = vadd.f32 %v3890, 1.0
    %v3892 = vrcp.pop %v3891
    %v3893 = vmul.f32 1.0, %v3892
    %v3894 = vtanh.pop %v3887
    %v3895 = vmul.f32 %v3893, %v3703
    %3897 = vrot.lane.b32.xlu0 %v3894, 64
    %v3898 = vpop.permute.xlu0 %3897
    %v3900 = vmul.f32 %v3893, %v3898
    %3902 = vrot.lane.b32.xlu0 %v3900, 32
    %v3903 = vpop.permute.xlu0 %3902
    %v3905 = vadd.f32 %v3895, %v3903
    %v3906 = vtanh.pop %v3905
    %3908 = vrot.lane.b32.xlu0 %v3906, 64
    %v3909 = vpop.permute.xlu0 %3908
    %v3911 = vmul.f32 %v3893, %v3909
    %v3912 = vld [vmem:[#allocation3 + $0x8] sm:$0xff]
    %3914 = vrot.lane.b32.xlu0 %v3810, 32
    %v3915 = vpop.permute.xlu0 %3914
    %v3916 = vsel %vm142, %v3915, 0
    %3918 = vmatprep.subr.mxu0 0.0
    %3919 = vmatpush1.msra.mxu0 %v2605
    %3920 = vmatprep.subr.mxu0 0.0
    %3921 = vmatpush1.msra.mxu0 %v2606
    %3922 = vmatprep.subr.mxu0 0.0
    %3923 = vmatpush1.msra.mxu0 %v2607
    %3924 = vmatprep.subr.mxu0 0.0
    %3925 = vmatpush1.msra.mxu0 %v2608
    %3926 = vmatprep.subr.mxu0 0.0
    %3927 = vmatpush1.msra.mxu0 0.0
    %3928 = vmatprep.subr.mxu0 0.0
    %3929 = vmatpush1.msra.mxu0 0.0
    %3930 = vmatprep.subr.mxu0 0.0
    %3931 = vmatpush1.msra.mxu0 0.0
    %3932 = vmatprep.subr.mxu0 0.0
    %3933 = vmatpush1.msra.mxu0 0.0
    %3934 = vmatprep.subr.mxu0 0.0
    %3935 = vmatpush1.msra.mxu0 0.0
    %3936 = vmatprep.subr.mxu0 0.0
    %3937 = vmatpush1.msra.mxu0 0.0
    %3938 = vmatprep.subr.mxu0 0.0
    %3939 = vmatpush1.msra.mxu0 0.0
    %3940 = vmatprep.subr.mxu0 0.0
    %3941 = vmatpush1.msra.mxu0 0.0
    %3942 = vmatprep.subr.mxu0 0.0
    %3943 = vmatpush1.msra.mxu0 0.0
    %3944 = vmatprep.subr.mxu0 0.0
    %3945 = vmatpush1.msra.mxu0 0.0
    %3946 = vmatprep.subr.mxu0 0.0
    %3947 = vmatpush1.msra.mxu0 0.0
    %3948 = vmatprep.subr.mxu0 0.0
    %3949 = vmatpush1.msra.mxu0 0.0
    %3950 = vmatprep.subr.mxu0 0.0
    %3951 = vmatpush1.msra.mxu0 0.0
    %3952 = vmatprep.subr.mxu0 0.0
    %3953 = vmatpush1.msra.mxu0 0.0
    %3954 = vmatprep.subr.mxu0 0.0
    %3955 = vmatpush1.msra.mxu0 0.0
    %3956 = vmatprep.subr.mxu0 0.0
    %3957 = vmatpush1.msra.mxu0 0.0
    %3958 = vmatprep.subr.mxu0 0.0
    %3959 = vmatpush1.msra.mxu0 0.0
    %3960 = vmatprep.subr.mxu0 0.0
    %3961 = vmatpush1.msra.mxu0 0.0
    %3962 = vmatprep.subr.mxu0 0.0
    %3963 = vmatpush1.msra.mxu0 0.0
    %3964 = vmatprep.subr.mxu0 0.0
    %3965 = vmatpush1.msra.mxu0 0.0
    %3966 = vmatprep.subr.mxu0 0.0
    %3967 = vmatpush1.msra.mxu0 0.0
    %3968 = vmatprep.subr.mxu0 0.0
    %3969 = vmatpush1.msra.mxu0 0.0
    %3970 = vmatprep.subr.mxu0 0.0
    %3971 = vmatpush1.msra.mxu0 0.0
    %3972 = vmatprep.subr.mxu0 0.0
    %3973 = vmatpush1.msra.mxu0 0.0
    %3974 = vmatprep.subr.mxu0 0.0
    %3975 = vmatpush1.msra.mxu0 0.0
    %3976 = vmatprep.subr.mxu0 0.0
    %3977 = vmatpush1.msra.mxu0 0.0
    %3978 = vmatprep.subr.mxu0 0.0
    %3979 = vmatpush1.msra.mxu0 0.0
    %3980 = vmatprep.subr.mxu0 0.0
    %3981 = vmatpush1.msra.mxu0 0.0
    %3982 = vmatprep.mubr.f32.mxu0 0.0
    %3983 = vmatmul.mubr.f32.gmra.mrb[0].mxu0 %v3916
    %v3984 = vpop.f32.mrb[0].mxu0
    %v3985 = vadd.f32 0.0, %v3984
    %v3986 = vpop.f32.mrb[0].mxu0
    %3987 = vdwg.mxu0
    %v3988 = vadd.f32 %v3912, %v3985
    %v3989 = vxor.u32 %v3988, 2147483648
    %v3990 = vmul.f32 %v3989, 1.442695
    %v3991 = vpow.pop %v3990
    %v3992 = vadd.f32 %v3991, 1.0
    %v3993 = vrcp.pop %v3992
    %v3994 = vmul.f32 1.0, %v3993
    %v3995 = vtanh.pop %v3988
    %v3996 = vmul.f32 %v3994, %v3804
    %3998 = vrot.lane.b32.xlu0 %v3995, 64
    %v3999 = vpop.permute.xlu0 %3998
    %v4001 = vmul.f32 %v3994, %v3999
    %4003 = vrot.lane.b32.xlu0 %v4001, 32
    %v4004 = vpop.permute.xlu0 %4003
    %v4006 = vadd.f32 %v3996, %v4004
    %v4007 = vtanh.pop %v4006
    %4009 = vrot.lane.b32.xlu0 %v4007, 64
    %v4010 = vpop.permute.xlu0 %4009
    %v4012 = vmul.f32 %v3994, %v4010
    %v4013 = vld [vmem:[#allocation2 + $0x38] sm:$0xff]
    %4015 = vrot.lane.b32.xlu0 %v3911, 32
    %v4016 = vpop.permute.xlu0 %4015
    %v4017 = vsel %vm142, %v4016, 0
    %4019 = vmatprep.subr.mxu0 0.0
    %4020 = vmatpush1.msra.mxu0 %v2601
    %4021 = vmatprep.subr.mxu0 0.0
    %4022 = vmatpush1.msra.mxu0 %v2602
    %4023 = vmatprep.subr.mxu0 0.0
    %4024 = vmatpush1.msra.mxu0 %v2603
    %4025 = vmatprep.subr.mxu0 0.0
    %4026 = vmatpush1.msra.mxu0 %v2604
    %4027 = vmatprep.subr.mxu0 0.0
    %4028 = vmatpush1.msra.mxu0 0.0
    %4029 = vmatprep.subr.mxu0 0.0
    %4030 = vmatpush1.msra.mxu0 0.0
    %4031 = vmatprep.subr.mxu0 0.0
    %4032 = vmatpush1.msra.mxu0 0.0
    %4033 = vmatprep.subr.mxu0 0.0
    %4034 = vmatpush1.msra.mxu0 0.0
    %4035 = vmatprep.subr.mxu0 0.0
    %4036 = vmatpush1.msra.mxu0 0.0
    %4037 = vmatprep.subr.mxu0 0.0
    %4038 = vmatpush1.msra.mxu0 0.0
    %4039 = vmatprep.subr.mxu0 0.0
    %4040 = vmatpush1.msra.mxu0 0.0
    %4041 = vmatprep.subr.mxu0 0.0
    %4042 = vmatpush1.msra.mxu0 0.0
    %4043 = vmatprep.subr.mxu0 0.0
    %4044 = vmatpush1.msra.mxu0 0.0
    %4045 = vmatprep.subr.mxu0 0.0
    %4046 = vmatpush1.msra.mxu0 0.0
    %4047 = vmatprep.subr.mxu0 0.0
    %4048 = vmatpush1.msra.mxu0 0.0
    %4049 = vmatprep.subr.mxu0 0.0
    %4050 = vmatpush1.msra.mxu0 0.0
    %4051 = vmatprep.subr.mxu0 0.0
    %4052 = vmatpush1.msra.mxu0 0.0
    %4053 = vmatprep.subr.mxu0 0.0
    %4054 = vmatpush1.msra.mxu0 0.0
    %4055 = vmatprep.subr.mxu0 0.0
    %4056 = vmatpush1.msra.mxu0 0.0
    %4057 = vmatprep.subr.mxu0 0.0
    %4058 = vmatpush1.msra.mxu0 0.0
    %4059 = vmatprep.subr.mxu0 0.0
    %4060 = vmatpush1.msra.mxu0 0.0
    %4061 = vmatprep.subr.mxu0 0.0
    %4062 = vmatpush1.msra.mxu0 0.0
    %4063 = vmatprep.subr.mxu0 0.0
    %4064 = vmatpush1.msra.mxu0 0.0
    %4065 = vmatprep.subr.mxu0 0.0
    %4066 = vmatpush1.msra.mxu0 0.0
    %4067 = vmatprep.subr.mxu0 0.0
    %4068 = vmatpush1.msra.mxu0 0.0
    %4069 = vmatprep.subr.mxu0 0.0
    %4070 = vmatpush1.msra.mxu0 0.0
    %4071 = vmatprep.subr.mxu0 0.0
    %4072 = vmatpush1.msra.mxu0 0.0
    %4073 = vmatprep.subr.mxu0 0.0
    %4074 = vmatpush1.msra.mxu0 0.0
    %4075 = vmatprep.subr.mxu0 0.0
    %4076 = vmatpush1.msra.mxu0 0.0
    %4077 = vmatprep.subr.mxu0 0.0
    %4078 = vmatpush1.msra.mxu0 0.0
    %4079 = vmatprep.subr.mxu0 0.0
    %4080 = vmatpush1.msra.mxu0 0.0
    %4081 = vmatprep.subr.mxu0 0.0
    %4082 = vmatpush1.msra.mxu0 0.0
    %4083 = vmatprep.mubr.f32.mxu0 0.0
    %4084 = vmatmul.mubr.f32.gmra.mrb[0].mxu0 %v4017
    %v4085 = vpop.f32.mrb[0].mxu0
    %v4086 = vadd.f32 0.0, %v4085
    %v4087 = vpop.f32.mrb[0].mxu0
    %4088 = vdwg.mxu0
    %v4089 = vadd.f32 %v4013, %v4086
    %v4090 = vxor.u32 %v4089, 2147483648
    %v4091 = vmul.f32 %v4090, 1.442695
    %v4092 = vpow.pop %v4091
    %v4093 = vadd.f32 %v4092, 1.0
    %v4094 = vrcp.pop %v4093
    %v4095 = vmul.f32 1.0, %v4094
    %v4096 = vtanh.pop %v4089
    %v4097 = vmul.f32 %v4095, %v3905
    %4099 = vrot.lane.b32.xlu0 %v4096, 64
    %v4100 = vpop.permute.xlu0 %4099
    %v4102 = vmul.f32 %v4095, %v4100
    %4104 = vrot.lane.b32.xlu0 %v4102, 32
    %v4105 = vpop.permute.xlu0 %4104
    %v4107 = vadd.f32 %v4097, %v4105
    %v4108 = vtanh.pop %v4107
    %4110 = vrot.lane.b32.xlu0 %v4108, 64
    %v4111 = vpop.permute.xlu0 %4110
    %v4113 = vmul.f32 %v4095, %v4111
    %v4114 = vld [vmem:[#allocation3] sm:$0xff]
    %4116 = vrot.lane.b32.xlu0 %v4012, 32
    %v4117 = vpop.permute.xlu0 %4116
    %v4118 = vsel %vm142, %v4117, 0
    %4120 = vmatprep.subr.mxu0 0.0
    %4121 = vmatpush1.msra.mxu0 %v2605
    %4122 = vmatprep.subr.mxu0 0.0
    %4123 = vmatpush1.msra.mxu0 %v2606
    %4124 = vmatprep.subr.mxu0 0.0
    %4125 = vmatpush1.msra.mxu0 %v2607
    %4126 = vmatprep.subr.mxu0 0.0
    %4127 = vmatpush1.msra.mxu0 %v2608
    %4128 = vmatprep.subr.mxu0 0.0
    %4129 = vmatpush1.msra.mxu0 0.0
    %4130 = vmatprep.subr.mxu0 0.0
    %4131 = vmatpush1.msra.mxu0 0.0
    %4132 = vmatprep.subr.mxu0 0.0
    %4133 = vmatpush1.msra.mxu0 0.0
    %4134 = vmatprep.subr.mxu0 0.0
    %4135 = vmatpush1.msra.mxu0 0.0
    %4136 = vmatprep.subr.mxu0 0.0
    %4137 = vmatpush1.msra.mxu0 0.0
    %4138 = vmatprep.subr.mxu0 0.0
    %4139 = vmatpush1.msra.mxu0 0.0
    %4140 = vmatprep.subr.mxu0 0.0
    %4141 = vmatpush1.msra.mxu0 0.0
    %4142 = vmatprep.subr.mxu0 0.0
    %4143 = vmatpush1.msra.mxu0 0.0
    %4144 = vmatprep.subr.mxu0 0.0
    %4145 = vmatpush1.msra.mxu0 0.0
    %4146 = vmatprep.subr.mxu0 0.0
    %4147 = vmatpush1.msra.mxu0 0.0
    %4148 = vmatprep.subr.mxu0 0.0
    %4149 = vmatpush1.msra.mxu0 0.0
    %4150 = vmatprep.subr.mxu0 0.0
    %4151 = vmatpush1.msra.mxu0 0.0
    %4152 = vmatprep.subr.mxu0 0.0
    %4153 = vmatpush1.msra.mxu0 0.0
    %4154 = vmatprep.subr.mxu0 0.0
    %4155 = vmatpush1.msra.mxu0 0.0
    %4156 = vmatprep.subr.mxu0 0.0
    %4157 = vmatpush1.msra.mxu0 0.0
    %4158 = vmatprep.subr.mxu0 0.0
    %4159 = vmatpush1.msra.mxu0 0.0
    %4160 = vmatprep.subr.mxu0 0.0
    %4161 = vmatpush1.msra.mxu0 0.0
    %4162 = vmatprep.subr.mxu0 0.0
    %4163 = vmatpush1.msra.mxu0 0.0
    %4164 = vmatprep.subr.mxu0 0.0
    %4165 = vmatpush1.msra.mxu0 0.0
    %4166 = vmatprep.subr.mxu0 0.0
    %4167 = vmatpush1.msra.mxu0 0.0
    %4168 = vmatprep.subr.mxu0 0.0
    %4169 = vmatpush1.msra.mxu0 0.0
    %4170 = vmatprep.subr.mxu0 0.0
    %4171 = vmatpush1.msra.mxu0 0.0
    %4172 = vmatprep.subr.mxu0 0.0
    %4173 = vmatpush1.msra.mxu0 0.0
    %4174 = vmatprep.subr.mxu0 0.0
    %4175 = vmatpush1.msra.mxu0 0.0
    %4176 = vmatprep.subr.mxu0 0.0
    %4177 = vmatpush1.msra.mxu0 0.0
    %4178 = vmatprep.subr.mxu0 0.0
    %4179 = vmatpush1.msra.mxu0 0.0
    %4180 = vmatprep.subr.mxu0 0.0
    %4181 = vmatpush1.msra.mxu0 0.0
    %4182 = vmatprep.subr.mxu0 0.0
    %4183 = vmatpush1.msra.mxu0 0.0
    %4184 = vmatprep.mubr.f32.mxu0 0.0
    %4185 = vmatmul.mubr.f32.gmra.mrb[0].mxu0 %v4118
    %v4186 = vpop.f32.mrb[0].mxu0
    %v4187 = vadd.f32 0.0, %v4186
    %v4188 = vpop.f32.mrb[0].mxu0
    %4189 = vdwg.mxu0
    %v4190 = vadd.f32 %v4114, %v4187
    %v4191 = vxor.u32 %v4190, 2147483648
    %v4192 = vmul.f32 %v4191, 1.442695
    %v4193 = vpow.pop %v4192
    %v4194 = vadd.f32 %v4193, 1.0
    %v4195 = vrcp.pop %v4194
    %v4196 = vmul.f32 1.0, %v4195
    %v4197 = vtanh.pop %v4190
    %v4198 = vmul.f32 %v4196, %v4006
    %4200 = vrot.lane.b32.xlu0 %v4197, 64
    %v4201 = vpop.permute.xlu0 %4200
    %v4203 = vmul.f32 %v4196, %v4201
    %4205 = vrot.lane.b32.xlu0 %v4203, 32
    %v4206 = vpop.permute.xlu0 %4205
    %v4208 = vadd.f32 %v4198, %v4206
    %v4209 = vtanh.pop %v4208
    %4211 = vrot.lane.b32.xlu0 %v4209, 64
    %v4212 = vpop.permute.xlu0 %4211
    %v4214 = vmul.f32 %v4196, %v4212
    %v4215 = vld [vmem:[%s13] sm:$0x1]
    %v4216 = vtanh.pop %v2704
    %v4218 = vlaneseq
    %v4219 = vshrl.u32 %v4218, 7
    %v4220 = vsub.s32 0, %v4219
    %v4221 = vrot.slane %v4215, %v4220
    %4222 = vrot.lane.b32.xlu0 %v4221, 96
    %v4223 = vpop.permute.xlu0 %4222
    %v4225 = vmul.f32 %v4216, %v4223
    %v4226 = vtanh.pop %v4214
    %4227 = vrot.lane.b32.xlu0 %v4221, 64
    %v4228 = vpop.permute.xlu0 %4227
    %v4230 = vmul.f32 %v4226, %v4228
    %v4231 = vadd.f32 %v4225, %v4230
    %4233 = vrot.lane.b32.xlu0 %v4231, 32
    %v4234 = vpop.permute.xlu0 %4233
    %v4236 = vsel %vm142, %v4234, 0.0
    %4237 = vadd.xlane.f32.xlu0 %v4236
    %v4238 = vpop.xlane.xlu0 %4237
    %v4239 = vtanh.pop %v2901
    %v4240 = vmul.f32 %v4239, %v4223
    %v4241 = vtanh.pop %v4012
    %v4242 = vmul.f32 %v4241, %v4228
    %v4243 = vadd.f32 %v4240, %v4242
    %4245 = vrot.lane.b32.xlu0 %v4243, 32
    %v4246 = vpop.permute.xlu0 %4245
    %v4248 = vsel %vm142, %v4246, 0.0
    %4249 = vadd.xlane.f32.xlu0 %v4248
    %v4250 = vpop.xlane.xlu0 %4249
    %v4251 = vtanh.pop %v3103
    %v4252 = vmul.f32 %v4251, %v4223
    %v4253 = vtanh.pop %v3810
    %v4254 = vmul.f32 %v4253, %v4228
    %v4255 = vadd.f32 %v4252, %v4254
    %4257 = vrot.lane.b32.xlu0 %v4255, 32
    %v4258 = vpop.permute.xlu0 %4257
    %v4260 = vsel %vm142, %v4258, 0.0
    %4261 = vadd.xlane.f32.xlu0 %v4260
    %v4262 = vpop.xlane.xlu0 %4261
    %v4263 = vtanh.pop %v3305
    %v4264 = vmul.f32 %v4263, %v4223
    %v4265 = vtanh.pop %v3608
    %v4266 = vmul.f32 %v4265, %v4228
    %v4267 = vadd.f32 %v4264, %v4266
    %4269 = vrot.lane.b32.xlu0 %v4267, 32
    %v4270 = vpop.permute.xlu0 %4269
    %v4272 = vsel %vm142, %v4270, 0.0
    %4273 = vadd.xlane.f32.xlu0 %v4272
    %v4274 = vpop.xlane.xlu0 %4273
    %v4275 = vtanh.pop %v3507
    %v4276 = vmul.f32 %v4275, %v4223
    %v4277 = vtanh.pop %v3406
    %v4278 = vmul.f32 %v4277, %v4228
    %v4279 = vadd.f32 %v4276, %v4278
    %4281 = vrot.lane.b32.xlu0 %v4279, 32
    %v4282 = vpop.permute.xlu0 %4281
    %v4284 = vsel %vm142, %v4282, 0.0
    %4285 = vadd.xlane.f32.xlu0 %v4284
    %v4286 = vpop.xlane.xlu0 %4285
    %v4287 = vtanh.pop %v3709
    %v4288 = vmul.f32 %v4287, %v4223
    %v4289 = vtanh.pop %v3204
    %v4290 = vmul.f32 %v4289, %v4228
    %v4291 = vadd.f32 %v4288, %v4290
    %4293 = vrot.lane.b32.xlu0 %v4291, 32
    %v4294 = vpop.permute.xlu0 %4293
    %v4296 = vsel %vm142, %v4294, 0.0
    %4297 = vadd.xlane.f32.xlu0 %v4296
    %v4298 = vpop.xlane.xlu0 %4297
    %v4299 = vtanh.pop %v3911
    %v4300 = vmul.f32 %v4299, %v4223
    %v4301 = vtanh.pop %v3002
    %v4302 = vmul.f32 %v4301, %v4228
    %v4303 = vadd.f32 %v4300, %v4302
    %4305 = vrot.lane.b32.xlu0 %v4303, 32
    %v4306 = vpop.permute.xlu0 %4305
    %v4308 = vsel %vm142, %v4306, 0.0
    %4309 = vadd.xlane.f32.xlu0 %v4308
    %v4310 = vpop.xlane.xlu0 %4309
    %v4311 = vtanh.pop %v4113
    %v4312 = vmul.f32 %v4311, %v4223
    %v4313 = vtanh.pop %v2800
    %v4314 = vmul.f32 %v4313, %v4228
    %v4315 = vadd.f32 %v4312, %v4314
    %4317 = vrot.lane.b32.xlu0 %v4315, 32
    %v4318 = vpop.permute.xlu0 %4317
    %v4320 = vsel %vm142, %v4318, 0.0
    %4321 = vadd.xlane.f32.xlu0 %v4320
    %v4322 = vpop.xlane.xlu0 %4321
    %v4323 = vmax.f32 %v4238, %v4250
    %v4324 = vmax.f32 %v4323, %v4262
    %v4325 = vmax.f32 %v4324, %v4274
    %v4326 = vmax.f32 %v4325, %v4286
    %v4327 = vmax.f32 %v4326, %v4298
    %v4328 = vmax.f32 %v4327, %v4310
    %v4329 = vmax.f32 %v4328, %v4322
    %v4330 = vsub.f32 %v4238, %v4329
    %v4331 = vmul.f32 %v4330, 1.442695
    %v4332 = vpow.pop %v4331
    %v4333 = vsub.f32 %v4250, %v4329
    %v4334 = vmul.f32 %v4333, 1.442695
    %v4335 = vpow.pop %v4334
    %v4336 = vsub.f32 %v4262, %v4329
    %v4337 = vmul.f32 %v4336, 1.442695
    %v4338 = vpow.pop %v4337
    %v4339 = vsub.f32 %v4274, %v4329
    %v4340 = vmul.f32 %v4339, 1.442695
    %v4341 = vpow.pop %v4340
    %v4342 = vsub.f32 %v4286, %v4329
    %v4343 = vmul.f32 %v4342, 1.442695
    %v4344 = vpow.pop %v4343
    %v4345 = vsub.f32 %v4298, %v4329
    %v4346 = vmul.f32 %v4345, 1.442695
    %v4347 = vpow.pop %v4346
    %v4348 = vsub.f32 %v4310, %v4329
    %v4349 = vmul.f32 %v4348, 1.442695
    %v4350 = vpow.pop %v4349
    %v4351 = vsub.f32 %v4322, %v4329
    %v4352 = vmul.f32 %v4351, 1.442695
    %v4353 = vpow.pop %v4352
    %v4354 = vadd.f32 %v4332, %v4335
    %v4355 = vadd.f32 %v4354, %v4338
    %v4356 = vadd.f32 %v4355, %v4341
    %v4357 = vadd.f32 %v4356, %v4344
    %v4358 = vadd.f32 %v4357, %v4347
    %v4359 = vadd.f32 %v4358, %v4350
    %v4360 = vadd.f32 %v4359, %v4353
    %v4361 = vrcp.pop %v4360
    %v4362 = vmul.f32 %v4332, %v4361
    %v4363 = vmul.f32 %v4362, %v2704
    %v4364 = vadd.f32 %v4363, 0.0
    %v4365 = vmul.f32 %v4362, %v4214
    %v4366 = vadd.f32 %v4365, 0.0
    %v4367 = vmul.f32 %v4335, %v4361
    %v4368 = vmul.f32 %v4367, %v2901
    %v4369 = vadd.f32 %v4364, %v4368
    %v4370 = vmul.f32 %v4367, %v4012
    %v4371 = vadd.f32 %v4366, %v4370
    %v4372 = vmul.f32 %v4338, %v4361
    %v4373 = vmul.f32 %v4372, %v3103
    %v4374 = vadd.f32 %v4369, %v4373
    %v4375 = vmul.f32 %v4372, %v3810
    %v4376 = vadd.f32 %v4371, %v4375
    %v4377 = vmul.f32 %v4341, %v4361
    %v4378 = vmul.f32 %v4377, %v3305
    %v4379 = vadd.f32 %v4374, %v4378
    %v4380 = vmul.f32 %v4377, %v3608
    %v4381 = vadd.f32 %v4376, %v4380
    %v4382 = vmul.f32 %v4344, %v4361
    %v4383 = vmul.f32 %v4382, %v3507
    %v4384 = vadd.f32 %v4379, %v4383
    %v4385 = vmul.f32 %v4382, %v3406
    %v4386 = vadd.f32 %v4381, %v4385
    %v4387 = vmul.f32 %v4347, %v4361
    %v4388 = vmul.f32 %v4387, %v3709
    %v4389 = vadd.f32 %v4384, %v4388
    %v4390 = vmul.f32 %v4387, %v3204
    %v4391 = vadd.f32 %v4386, %v4390
    %v4392 = vmul.f32 %v4350, %v4361
    %v4393 = vmul.f32 %v4392, %v3911
    %v4394 = vadd.f32 %v4389, %v4393
    %v4395 = vmul.f32 %v4392, %v3002
    %v4396 = vadd.f32 %v4391, %v4395
    %v4397 = vmul.f32 %v4353, %v4361
    %v4398 = vmul.f32 %v4397, %v4113
    %v4399 = vadd.f32 %v4394, %v4398
    %v4400 = vmul.f32 %v4397, %v2800
    %v4401 = vadd.f32 %v4396, %v4400
    %v4402 = vmax.f32 %v4399, 0.0
    %v4403 = vmax.f32 %v4401, 0.0
    %v4404 = vld [vmem:[%s14] sm:$0xff]
    %v4405 = vld [vmem:[%s14 + $0x8] sm:$0xff]
    %v4406 = vld [vmem:[%s14 + $0x10] sm:$0xff]
    %v4407 = vld [vmem:[%s14 + $0x18] sm:$0xff]
    %v4408 = vld [vmem:[%s14 + $0x20] sm:$0xff]
    %v4409 = vld [vmem:[%s14 + $0x28] sm:$0xff]
    %v4410 = vld [vmem:[%s14 + $0x30] sm:$0xff]
    %v4411 = vld [vmem:[%s14 + $0x38] sm:$0xff]
    %4413 = vrot.lane.b32.xlu0 %v4403, 32
    %v4414 = vpop.permute.xlu0 %4413
    %v4415 = vsel %vm142, %v4414, 0
    %4417 = vmatprep.subr.mxu0 0.0
    %4418 = vmatpush1.msra.mxu0 %v4408
    %4419 = vmatprep.subr.mxu0 0.0
    %4420 = vmatpush1.msra.mxu0 %v4409
    %4421 = vmatprep.subr.mxu0 0.0
    %4422 = vmatpush1.msra.mxu0 %v4410
    %4423 = vmatprep.subr.mxu0 0.0
    %4424 = vmatpush1.msra.mxu0 %v4411
    %4425 = vmatprep.subr.mxu0 0.0
    %4426 = vmatpush1.msra.mxu0 0.0
    %4427 = vmatprep.subr.mxu0 0.0
    %4428 = vmatpush1.msra.mxu0 0.0
    %4429 = vmatprep.subr.mxu0 0.0
    %4430 = vmatpush1.msra.mxu0 0.0
    %4431 = vmatprep.subr.mxu0 0.0
    %4432 = vmatpush1.msra.mxu0 0.0
    %4433 = vmatprep.subr.mxu0 0.0
    %4434 = vmatpush1.msra.mxu0 0.0
    %4435 = vmatprep.subr.mxu0 0.0
    %4436 = vmatpush1.msra.mxu0 0.0
    %4437 = vmatprep.subr.mxu0 0.0
    %4438 = vmatpush1.msra.mxu0 0.0
    %4439 = vmatprep.subr.mxu0 0.0
    %4440 = vmatpush1.msra.mxu0 0.0
    %4441 = vmatprep.subr.mxu0 0.0
    %4442 = vmatpush1.msra.mxu0 0.0
    %4443 = vmatprep.subr.mxu0 0.0
    %4444 = vmatpush1.msra.mxu0 0.0
    %4445 = vmatprep.subr.mxu0 0.0
    %4446 = vmatpush1.msra.mxu0 0.0
    %4447 = vmatprep.subr.mxu0 0.0
    %4448 = vmatpush1.msra.mxu0 0.0
    %4449 = vmatprep.subr.mxu0 0.0
    %4450 = vmatpush1.msra.mxu0 0.0
    %4451 = vmatprep.subr.mxu0 0.0
    %4452 = vmatpush1.msra.mxu0 0.0
    %4453 = vmatprep.subr.mxu0 0.0
    %4454 = vmatpush1.msra.mxu0 0.0
    %4455 = vmatprep.subr.mxu0 0.0
    %4456 = vmatpush1.msra.mxu0 0.0
    %4457 = vmatprep.subr.mxu0 0.0
    %4458 = vmatpush1.msra.mxu0 0.0
    %4459 = vmatprep.subr.mxu0 0.0
    %4460 = vmatpush1.msra.mxu0 0.0
    %4461 = vmatprep.subr.mxu0 0.0
    %4462 = vmatpush1.msra.mxu0 0.0
    %4463 = vmatprep.subr.mxu0 0.0
    %4464 = vmatpush1.msra.mxu0 0.0
    %4465 = vmatprep.subr.mxu0 0.0
    %4466 = vmatpush1.msra.mxu0 0.0
    %4467 = vmatprep.subr.mxu0 0.0
    %4468 = vmatpush1.msra.mxu0 0.0
    %4469 = vmatprep.subr.mxu0 0.0
    %4470 = vmatpush1.msra.mxu0 0.0
    %4471 = vmatprep.subr.mxu0 0.0
    %4472 = vmatpush1.msra.mxu0 0.0
    %4473 = vmatprep.subr.mxu0 0.0
    %4474 = vmatpush1.msra.mxu0 0.0
    %4475 = vmatprep.subr.mxu0 0.0
    %4476 = vmatpush1.msra.mxu0 0.0
    %4477 = vmatprep.subr.mxu0 0.0
    %4478 = vmatpush1.msra.mxu0 0.0
    %4479 = vmatprep.subr.mxu0 0.0
    %4480 = vmatpush1.msra.mxu0 0.0
    %4481 = vmatprep.mubr.f32.mxu0 0.0
    %4482 = vmatmul.mubr.f32.gmra.mrb[0].mxu0 %v4415
    %v4483 = vpop.f32.mrb[0].mxu0
    %v4484 = vadd.f32 0.0, %v4483
    %v4485 = vpop.f32.mrb[0].mxu0
    %4486 = vdwg.mxu0
    %4488 = vrot.lane.b32.xlu0 %v4402, 32
    %v4489 = vpop.permute.xlu0 %4488
    %v4490 = vsel %vm142, %v4489, 0
    %4492 = vmatprep.subr.mxu0 0.0
    %4493 = vmatpush1.msra.mxu0 %v4404
    %4494 = vmatprep.subr.mxu0 0.0
    %4495 = vmatpush1.msra.mxu0 %v4405
    %4496 = vmatprep.subr.mxu0 0.0
    %4497 = vmatpush1.msra.mxu0 %v4406
    %4498 = vmatprep.subr.mxu0 0.0
    %4499 = vmatpush1.msra.mxu0 %v4407
    %4500 = vmatprep.subr.mxu0 0.0
    %4501 = vmatpush1.msra.mxu0 0.0
    %4502 = vmatprep.subr.mxu0 0.0
    %4503 = vmatpush1.msra.mxu0 0.0
    %4504 = vmatprep.subr.mxu0 0.0
    %4505 = vmatpush1.msra.mxu0 0.0
    %4506 = vmatprep.subr.mxu0 0.0
    %4507 = vmatpush1.msra.mxu0 0.0
    %4508 = vmatprep.subr.mxu0 0.0
    %4509 = vmatpush1.msra.mxu0 0.0
    %4510 = vmatprep.subr.mxu0 0.0
    %4511 = vmatpush1.msra.mxu0 0.0
    %4512 = vmatprep.subr.mxu0 0.0
    %4513 = vmatpush1.msra.mxu0 0.0
    %4514 = vmatprep.subr.mxu0 0.0
    %4515 = vmatpush1.msra.mxu0 0.0
    %4516 = vmatprep.subr.mxu0 0.0
    %4517 = vmatpush1.msra.mxu0 0.0
    %4518 = vmatprep.subr.mxu0 0.0
    %4519 = vmatpush1.msra.mxu0 0.0
    %4520 = vmatprep.subr.mxu0 0.0
    %4521 = vmatpush1.msra.mxu0 0.0
    %4522 = vmatprep.subr.mxu0 0.0
    %4523 = vmatpush1.msra.mxu0 0.0
    %4524 = vmatprep.subr.mxu0 0.0
    %4525 = vmatpush1.msra.mxu0 0.0
    %4526 = vmatprep.subr.mxu0 0.0
    %4527 = vmatpush1.msra.mxu0 0.0
    %4528 = vmatprep.subr.mxu0 0.0
    %4529 = vmatpush1.msra.mxu0 0.0
    %4530 = vmatprep.subr.mxu0 0.0
    %4531 = vmatpush1.msra.mxu0 0.0
    %4532 = vmatprep.subr.mxu0 0.0
    %4533 = vmatpush1.msra.mxu0 0.0
    %4534 = vmatprep.subr.mxu0 0.0
    %4535 = vmatpush1.msra.mxu0 0.0
    %4536 = vmatprep.subr.mxu0 0.0
    %4537 = vmatpush1.msra.mxu0 0.0
    %4538 = vmatprep.subr.mxu0 0.0
    %4539 = vmatpush1.msra.mxu0 0.0
    %4540 = vmatprep.subr.mxu0 0.0
    %4541 = vmatpush1.msra.mxu0 0.0
    %4542 = vmatprep.subr.mxu0 0.0
    %4543 = vmatpush1.msra.mxu0 0.0
    %4544 = vmatprep.subr.mxu0 0.0
    %4545 = vmatpush1.msra.mxu0 0.0
    %4546 = vmatprep.subr.mxu0 0.0
    %4547 = vmatpush1.msra.mxu0 0.0
    %4548 = vmatprep.subr.mxu0 0.0
    %4549 = vmatpush1.msra.mxu0 0.0
    %4550 = vmatprep.subr.mxu0 0.0
    %4551 = vmatpush1.msra.mxu0 0.0
    %4552 = vmatprep.subr.mxu0 0.0
    %4553 = vmatpush1.msra.mxu0 0.0
    %4554 = vmatprep.subr.mxu0 0.0
    %4555 = vmatpush1.msra.mxu0 0.0
    %4556 = vmatprep.mubr.f32.mxu0 0.0
    %4557 = vmatmul.mubr.f32.gmra.mrb[0].mxu0 %v4490
    %v4558 = vpop.f32.mrb[0].mxu0
    %v4559 = vadd.f32 %v4484, %v4558
    %v4560 = vpop.f32.mrb[0].mxu0
    %4561 = vdwg.mxu0
    %v4562 = vld [vmem:[%s15] sm:$0x1]
    %v4564 = vlaneseq
    %v4565 = vshrl.u32 %v4564, 7
    %v4566 = vsub.s32 0, %v4565
    %v4567 = vrot.slane %v4562, %v4566
    %v4569 = vadd.f32 %v4559, %v4567
    %vm4570 = vcmask 31744
    %4571 = vst.msk [vmem:[%s16] sm:$0xff] %vm4570, %v4569
    // Predicated region
    $region86: #{tpu_custom_call.1} parent=1 // pred_check
      _
    $region87: #{tpu_custom_call.1} parent=1 // pred_check_branch
      %4573 = sbr.rel (0) target = $region89
    $region88: #{tpu_custom_call.1} parent=1 // pred_region
      _
    $region89: #{tpu_custom_call.1} parent=1 // pred_fallthru
      _
    // Predicated region
    $region90: #{tpu_custom_call.1} parent=1 // pred_check
      _
    $region91: #{tpu_custom_call.1} parent=1 // pred_check_branch
      %4575 = sbr.rel (0) target = $region93
    $region92: #{tpu_custom_call.1} parent=1 // pred_region
      _
    $region93: #{tpu_custom_call.1} parent=1 // pred_fallthru
      _
    %4576 = vsyncpa [#allocation7], 1
    %4577 = vsyncpa [#allocation9], 1
    %4578 = vsyncpa [#allocation12], 1

</llo_original>
